<compile_context>
chip_gen: v7x
topology: tpu7x:2x2x1
jax: 0.10.0
libtpu: 0.0.40
codegen_flags: <defaults>
</compile_context>

<pallas_src>
import functools
import math

import jax
import jax.numpy as jnp
import numpy as np
from jax.experimental import pallas as pl
from jax.experimental.pallas import tpu as pltpu


# ----------------------------- Pallas kernels ------------------------------

def cnn_proj_kernel(x_ref, w1_ref, b1_ref, w2_ref, b2_ref, wih_ref, bl_ref, o_ref):
    """One (tm, F) row tile:
       o = relu(relu(x@W1+b1)@W2+b2) @ W_ih^T + (b_ih+b_hh), written in bf16.

    Weights arrive pre-cast to bf16; every jnp.dot accumulates in f32 on the MXU.
    Bias-add + ReLU stay in f32 (v5e has no bf16 VPU)."""
    x = x_ref[...].astype(jnp.bfloat16)
    h = jnp.dot(x, w1_ref[...], preferred_element_type=jnp.float32) + b1_ref[...]
    h = jnp.maximum(h, 0.0).astype(jnp.bfloat16)
    f = jnp.dot(h, w2_ref[...], preferred_element_type=jnp.float32) + b2_ref[...]
    f = jnp.maximum(f, 0.0).astype(jnp.bfloat16)
    g = jnp.dot(f, wih_ref[...], preferred_element_type=jnp.float32) + bl_ref[...]
    o_ref[...] = g.astype(o_ref.dtype)                       # bf16 HBM writeback


def lstm_cls_kernel(xg_ref, whh_ref, wc1_ref, bc1_ref, wc2_ref, bc2_ref,
                    out_ref, h_scr, c_scr, *, tc, hidden, t_real):
    """One (batch-tile, time-chunk) grid step of the LSTM recurrence + fused head.

    xg_ref  : (tc, bb, 4H) bf16   time-major precomputed x@W_ih^T + (b_ih+b_hh)
    whh_ref : (H, 4H) f32         W_hh^T (constant index_map -> stays resident)
    wc1/bc1 : (H, 128)/(1, 128)   classifier layer 1
    wc2/bc2 : (128, CPAD)/(1, CPAD) classifier layer 2, zero-padded to 128 lanes
    out_ref : (bb, CPAD) f32      written once per batch tile, on the last chunk.
                                  NOTE: only correct because the output index_map
                                  is constant along the time axis (the block stays
                                  resident until the batch index advances).
    h_scr/c_scr : (bb, H) f32     recurrent state carried across time chunks.
    """
    chunk = pl.program_id(1)                                 # time-chunk index

    @pl.when(chunk == 0)
    def _():
        h_scr[...] = jnp.zeros_like(h_scr)
        c_scr[...] = jnp.zeros_like(c_scr)

    H = hidden

    def step(t, carry):
        h, c = carry
        # Per-timestep ref read (contiguous (bb, 4H) tile) inside the loop keeps
        # the live set to a few vregs instead of materializing the whole chunk
        # slab (register-spill hazard).  Accumulation stays f32.
        g = (xg_ref[t].astype(jnp.float32)
             + jnp.dot(h, whh_ref[...], preferred_element_type=jnp.float32))
        i_g = jax.nn.sigmoid(g[:, 0 * H:1 * H])              # PyTorch gate order: i,f,g,o
        f_g = jax.nn.sigmoid(g[:, 1 * H:2 * H])
        g_g = jnp.tanh(g[:, 2 * H:3 * H])
        o_g = jax.nn.sigmoid(g[:, 3 * H:4 * H])
        c_new = f_g * c + i_g * g_g
        h_new = o_g * jnp.tanh(c_new)
        if t_real % tc == 0:                                 # static: no padded tail
            return h_new, c_new
        valid = (chunk * tc + t) < t_real                    # mask padded timesteps
        return jnp.where(valid, h_new, h), jnp.where(valid, c_new, c)

    # Unrolled fori_loop: bounded live ranges + LLO scheduler visibility.
    h, c = jax.lax.fori_loop(0, tc, step, (h_scr[...], c_scr[...]), unroll=True)
    h_scr[...] = h
    c_scr[...] = c

    @pl.when(chunk == pl.num_programs(1) - 1)
    def _():
        hc = jnp.dot(h, wc1_ref[...], preferred_element_type=jnp.float32) + bc1_ref[...]
        hc = jnp.maximum(hc, 0.0)
        out_ref[...] = (jnp.dot(hc, wc2_ref[...], preferred_element_type=jnp.float32)
                        + bc2_ref[...])


# ------------------------------ wrappers ------------------------------------

def fused_cnn_proj(x2d, w1, b1, w2, b2, wih_t, b_lstm, *, tm=1024):
    """Row-tiled fused cnn + LSTM input projection.  x2d: (B*T, F) -> (B*T, 4H) bf16.

    tm defaults to 1024 (v6e/v7x tile-sweep sweet spot); with bf16 weights this
    also fits v5e's 16 MiB scoped-VMEM default -- drop to 512 (or raise
    vmem_limit_bytes) if F grows much beyond ~1100."""
    bt, f = x2d.shape
    if tm >= bt:
        tm = bt                             # single full block (legal at any row count)
    else:
        tm = max(8, (tm // 8) * 8)          # keep sublane dim a multiple of 8
    pad = (-bt) % tm
    if pad:
        x2d = jnp.pad(x2d, ((0, pad), (0, 0)))
    rows = x2d.shape[0]
    g4h = wih_t.shape[1]

    out = pl.pallas_call(
        cnn_proj_kernel,
        out_shape=jax.ShapeDtypeStruct((rows, g4h), jnp.bfloat16),
        grid_spec=pltpu.PrefetchScalarGridSpec(
            num_scalar_prefetch=0,
            grid=(rows // tm,),
            in_specs=[
                pl.BlockSpec((tm, f), lambda i: (i, 0)),       # activation row tile
                pl.BlockSpec(w1.shape, lambda i: (0, 0)),      # W1 bf16 (resident)
                pl.BlockSpec(b1.shape, lambda i: (0, 0)),
                pl.BlockSpec(w2.shape, lambda i: (0, 0)),      # W2 bf16 (resident)
                pl.BlockSpec(b2.shape, lambda i: (0, 0)),
                pl.BlockSpec(wih_t.shape, lambda i: (0, 0)),   # W_ih^T bf16 (resident)
                pl.BlockSpec(b_lstm.shape, lambda i: (0, 0)),
            ],
            out_specs=pl.BlockSpec((tm, g4h), lambda i: (i, 0)),
        ),
        compiler_params=pltpu.CompilerParams(
            dimension_semantics=("parallel",)),                # megacore-shardable
    )(x2d, w1, b1, w2, b2, wih_t, b_lstm)
    return out[:bt] if pad else out


def _pick_time_chunk(T, cap=64):
    """Largest divisor of T up to `cap` (no padded steps).  If the best divisor is
    tiny (<8) fall back to `cap`: the wrapper pads T and the kernel masks the tail.
    tc is the *leading* dim of the time-major block, so it has no (8,128) legality
    constraint -- this is purely a grid-overhead / padded-work tradeoff."""
    best = 1
    for cand in range(1, min(T, cap) + 1):
        if T % cand == 0:
            best = cand
    if best >= 8 or best == T:
        return best
    return min(cap, T)


def lstm_classifier(xg_tm, whh_t, wc1, bc1, wc2p, bc2p, *, t_real, tc, bb):
    """xg_tm: (T_pad, B_pad, 4H) bf16 time-major gates.  Returns (B_pad, CPAD) f32."""
    Tp, Bp, G = xg_tm.shape
    H = whh_t.shape[0]
    cpad = wc2p.shape[1]
    kernel = functools.partial(lstm_cls_kernel, tc=tc, hidden=H, t_real=t_real)

    return pl.pallas_call(
        kernel,
        out_shape=jax.ShapeDtypeStruct((Bp, cpad), jnp.float32),
        grid_spec=pltpu.PrefetchScalarGridSpec(
            num_scalar_prefetch=0,
            grid=(Bp // bb, Tp // tc),      # (parallel batch tiles, serial time chunks)
            in_specs=[
                pl.BlockSpec((tc, bb, G), lambda b, c: (c, b, 0)),   # time-chunk slab
                pl.BlockSpec(whh_t.shape, lambda b, c: (0, 0)),      # W_hh^T (resident)
                pl.BlockSpec(wc1.shape, lambda b, c: (0, 0)),
                pl.BlockSpec(bc1.shape, lambda b, c: (0, 0)),
                pl.BlockSpec(wc2p.shape, lambda b, c: (0, 0)),
                pl.BlockSpec(bc2p.shape, lambda b, c: (0, 0)),
            ],
            out_specs=pl.BlockSpec((bb, cpad), lambda b, c: (b, 0)),  # lane-dense
            scratch_shapes=[pltpu.VMEM((bb, H), jnp.float32),         # h_t
                            pltpu.VMEM((bb, H), jnp.float32)],        # c_t
        ),
        compiler_params=pltpu.CompilerParams(
            dimension_semantics=("parallel", "arbitrary")),  # batch || , time serial
    )(xg_tm, whh_t, wc1, bc1, wc2p, bc2p)


@functools.partial(jax.jit, static_argnames=("row_tile", "batch_tile", "time_chunk"))
def cnn_rnn_forward(x, params, *, row_tile=1024, batch_tile=8, time_chunk=None):
    """Equivalent of CNNRNNModel.forward for x of shape (B, T, F)."""
    B, T, F = x.shape

    # ---- Kernel A: fused feature extractor + hoisted LSTM input projection ----
    w1 = params["w1"].astype(jnp.bfloat16)          # bf16 MXU operands,
    w2 = params["w2"].astype(jnp.bfloat16)          # f32 accumulation in-kernel
    wih = params["wih_t"].astype(jnp.bfloat16)
    xg = fused_cnn_proj(x.reshape(B * T, F), w1, params["b1"], w2, params["b2"],
                        wih, params["b_lstm"], tm=row_tile)          # (B*T, 4H) bf16
    G = xg.shape[-1]

    # ---- layout for the recurrence: time-major, batch / time padded ----
    tc = time_chunk if time_chunk is not None else _pick_time_chunk(T)
    bb = max(8, (batch_tile // 8) * 8)              # batch tile: sublane multiple
    Bp = ((B + bb - 1) // bb) * bb
    Tp = ((T + tc - 1) // tc) * tc
    xg = xg.reshape(B, T, G).transpose(1, 0, 2)     # single wrapper transpose (bf16)
    xg = jnp.pad(xg, ((0, Tp - T), (0, Bp - B), (0, 0)))

    # ---- Kernel B: LSTM recurrence + classifier head (lane-dense padded out) ----
    nc = params["wc2"].shape[1]
    cpad = ((nc + 127) // 128) * 128
    wc2p = jnp.pad(params["wc2"], ((0, 0), (0, cpad - nc)))
    bc2p = jnp.pad(params["bc2"], ((0, 0), (0, cpad - nc)))
    logits_p = lstm_classifier(xg, params["whh_t"], params["wc1"], params["bc1"],
                               wc2p, bc2p, t_real=T, tc=tc, bb=bb)
    return logits_p[:B, :nc]


# --------------------------- reference (plain JAX) ---------------------------

def reference_forward(x, params):
    B, T, F = x.shape
    h = jnp.maximum(x.reshape(B * T, F) @ params["w1"] + params["b1"], 0.0)
    feats = jnp.maximum(h @ params["w2"] + params["b2"], 0.0).reshape(B, T, -1)
    H = params["whh_t"].shape[0]

    def step(carry, x_t):
        h_t, c_t = carry
        gates = x_t @ params["wih_t"] + h_t @ params["whh_t"] + params["b_lstm"]
        i = jax.nn.sigmoid(gates[:, :H])
        f = jax.nn.sigmoid(gates[:, H:2 * H])
        g = jnp.tanh(gates[:, 2 * H:3 * H])
        o = jax.nn.sigmoid(gates[:, 3 * H:])
        c_t = f * c_t + i * g
        h_t = o * jnp.tanh(c_t)
        return (h_t, c_t), None

    init = (jnp.zeros((B, H), jnp.float32), jnp.zeros((B, H), jnp.float32))
    (h_t, _), _ = jax.lax.scan(step, init, feats.transpose(1, 0, 2))
    hc = jnp.maximum(h_t @ params["wc1"] + params["bc1"], 0.0)
    return hc @ params["wc2"] + params["bc2"]


# ------------------------------ param init -----------------------------------

def init_params(key, input_size, cnn_out, hidden_size, num_classes,
                cnn_hidden=512, cls_hidden=128):
    """Synthetic params mirroring the PyTorch module's shapes (weights transposed)."""
    keys = jax.random.split(key, 16)

    def lin(kw, kb, fan_in, fan_out):
        bound = 1.0 / math.sqrt(fan_in)
        w = jax.random.uniform(kw, (fan_in, fan_out), jnp.float32, -bound, bound)
        b = jax.random.uniform(kb, (1, fan_out), jnp.float32, -bound, bound)
        return w, b

    w1, b1 = lin(keys[0], keys[1], input_size, cnn_hidden)
    w2, b2 = lin(keys[2], keys[3], cnn_hidden, cnn_out)
    wc1, bc1 = lin(keys[4], keys[5], hidden_size, cls_hidden)
    wc2, bc2 = lin(keys[6], keys[7], cls_hidden, num_classes)

    kH = 1.0 / math.sqrt(hidden_size)
    wih_t = jax.random.uniform(keys[8], (cnn_out, 4 * hidden_size), jnp.float32, -kH, kH)
    whh_t = jax.random.uniform(keys[9], (hidden_size, 4 * hidden_size), jnp.float32, -kH, kH)
    b_ih = jax.random.uniform(keys[10], (1, 4 * hidden_size), jnp.float32, -kH, kH)
    b_hh = jax.random.uniform(keys[11], (1, 4 * hidden_size), jnp.float32, -kH, kH)

    return dict(w1=w1, b1=b1, w2=w2, b2=b2,
                wih_t=wih_t, whh_t=whh_t, b_lstm=b_ih + b_hh,
                wc1=wc1, bc1=bc1, wc2=wc2, bc2=bc2)


# --------------------------------- main ---------------------------------------

if __name__ == "__main__":
    # Small shapes consistent with the module's forward: x is (B, T, input_size).
    # B=16 / T=16 exercises the 2-D recurrence grid (2 batch tiles x 2 time
    # chunks) and a 4-block row grid in Kernel A, while staying tiny.
    B, T, INPUT_SIZE = 16, 16, 64
    CNN_OUT, HIDDEN, NUM_CLASSES = 256, 128, 10

    key = jax.random.PRNGKey(0)
    k_x, k_p = jax.random.split(key)
    x = jax.random.normal(k_x, (B, T, INPUT_SIZE), jnp.float32)
    params = init_params(k_p, INPUT_SIZE, CNN_OUT, HIDDEN, NUM_CLASSES)

    # row_tile=64 / time_chunk=8 exercise multi-block grids at demo scale; at
    # production shapes use the defaults (row_tile=1024, auto time chunk).
    out = cnn_rnn_forward(x, params, row_tile=64, batch_tile=8, time_chunk=8)
    out = jax.block_until_ready(out)
    assert out.shape == (B, NUM_CLASSES), out.shape

    ref = jax.block_until_ready(reference_forward(x, params))
    # bf16 matmul operands / bf16 gates writeback (f32 accumulation + f32 cell
    # state) -> slightly looser tolerance than pure-f32.
    np.testing.assert_allclose(np.asarray(out), np.asarray(ref), rtol=3e-2, atol=3e-2)

    print("KERNEL_OK")
</pallas_src>

<mosaic_0001>
module attributes {stable_mosaic.version = 11 : i64} {
  func.func @cnn_proj_kernel(%arg0: i32, %arg1: memref<64x64xf32, #tpu.memory_space<vmem>>, %arg2: memref<64x512xbf16, #tpu.memory_space<vmem>>, %arg3: memref<1x512xf32, #tpu.memory_space<vmem>>, %arg4: memref<512x256xbf16, #tpu.memory_space<vmem>>, %arg5: memref<1x256xf32, #tpu.memory_space<vmem>>, %arg6: memref<256x512xbf16, #tpu.memory_space<vmem>>, %arg7: memref<1x512xf32, #tpu.memory_space<vmem>>, %arg8: memref<64x512xbf16, #tpu.memory_space<vmem>>) attributes {dimension_semantics = [#tpu.dimension_semantics<parallel>], iteration_bounds = array<i64: 4>, scalar_prefetch = 0 : i64, scratch_operands = 0 : i64, tpu.core_type = #tpu.core_type<tc>, window_params = [{transform_indices = @transform_0, window_bounds = array<i64: 64, 64>}, {pipeline_mode = #tpu.pipeline_mode<synchronous>, transform_indices = @transform_1, window_bounds = array<i64: 64, 512>}, {pipeline_mode = #tpu.pipeline_mode<synchronous>, transform_indices = @transform_2, window_bounds = array<i64: 1, 512>}, {pipeline_mode = #tpu.pipeline_mode<synchronous>, transform_indices = @transform_3, window_bounds = array<i64: 512, 256>}, {pipeline_mode = #tpu.pipeline_mode<synchronous>, transform_indices = @transform_4, window_bounds = array<i64: 1, 256>}, {pipeline_mode = #tpu.pipeline_mode<synchronous>, transform_indices = @transform_5, window_bounds = array<i64: 256, 512>}, {pipeline_mode = #tpu.pipeline_mode<synchronous>, transform_indices = @transform_6, window_bounds = array<i64: 1, 512>}, {transform_indices = @transform_7, window_bounds = array<i64: 64, 512>}]} {
    %c0 = arith.constant 0 : index
    %c0_0 = arith.constant 0 : index
    %0 = vector.load %arg1[%c0, %c0_0] : memref<64x64xf32, #tpu.memory_space<vmem>>, vector<64x64xf32>
    %1 = arith.truncf %0 : vector<64x64xf32> to vector<64x64xbf16>
    %c0_1 = arith.constant 0 : index
    %c0_2 = arith.constant 0 : index
    %2 = vector.load %arg2[%c0_1, %c0_2] : memref<64x512xbf16, #tpu.memory_space<vmem>>, vector<64x512xbf16>
    %cst = arith.constant dense<0.000000e+00> : vector<64x512xf32>
    %3 = tpu.matmul %1, %2, %cst {dimension_numbers = #tpu.dot_dimension_numbers<[1], [0], [0], [1], [0, 0, 1, 1], [], []>} : vector<64x64xbf16>, vector<64x512xbf16>, vector<64x512xf32> -> vector<64x512xf32>
    %c0_3 = arith.constant 0 : index
    %c0_4 = arith.constant 0 : index
    %4 = vector.load %arg3[%c0_3, %c0_4] : memref<1x512xf32, #tpu.memory_space<vmem>>, vector<1x512xf32>
    %5 = vector.broadcast %4 : vector<1x512xf32> to vector<64x512xf32>
    %6 = arith.addf %3, %5 : vector<64x512xf32>
    %cst_5 = arith.constant 0.000000e+00 : f32
    %7 = vector.broadcast %cst_5 : f32 to vector<64x512xf32>
    %8 = arith.maximumf %6, %7 : vector<64x512xf32>
    %9 = arith.truncf %8 : vector<64x512xf32> to vector<64x512xbf16>
    %c0_6 = arith.constant 0 : index
    %c0_7 = arith.constant 0 : index
    %10 = vector.load %arg4[%c0_6, %c0_7] : memref<512x256xbf16, #tpu.memory_space<vmem>>, vector<512x256xbf16>
    %cst_8 = arith.constant dense<0.000000e+00> : vector<64x256xf32>
    %11 = tpu.matmul %9, %10, %cst_8 {dimension_numbers = #tpu.dot_dimension_numbers<[1], [0], [0], [1], [0, 0, 1, 1], [], []>} : vector<64x512xbf16>, vector<512x256xbf16>, vector<64x256xf32> -> vector<64x256xf32>
    %c0_9 = arith.constant 0 : index
    %c0_10 = arith.constant 0 : index
    %12 = vector.load %arg5[%c0_9, %c0_10] : memref<1x256xf32, #tpu.memory_space<vmem>>, vector<1x256xf32>
    %13 = vector.broadcast %12 : vector<1x256xf32> to vector<64x256xf32>
    %14 = arith.addf %11, %13 : vector<64x256xf32>
    %cst_11 = arith.constant 0.000000e+00 : f32
    %15 = vector.broadcast %cst_11 : f32 to vector<64x256xf32>
    %16 = arith.maximumf %14, %15 : vector<64x256xf32>
    %17 = arith.truncf %16 : vector<64x256xf32> to vector<64x256xbf16>
    %c0_12 = arith.constant 0 : index
    %c0_13 = arith.constant 0 : index
    %18 = vector.load %arg6[%c0_12, %c0_13] : memref<256x512xbf16, #tpu.memory_space<vmem>>, vector<256x512xbf16>
    %cst_14 = arith.constant dense<0.000000e+00> : vector<64x512xf32>
    %19 = tpu.matmul %17, %18, %cst_14 {dimension_numbers = #tpu.dot_dimension_numbers<[1], [0], [0], [1], [0, 0, 1, 1], [], []>} : vector<64x256xbf16>, vector<256x512xbf16>, vector<64x512xf32> -> vector<64x512xf32>
    %c0_15 = arith.constant 0 : index
    %c0_16 = arith.constant 0 : index
    %20 = vector.load %arg7[%c0_15, %c0_16] : memref<1x512xf32, #tpu.memory_space<vmem>>, vector<1x512xf32>
    %21 = vector.broadcast %20 : vector<1x512xf32> to vector<64x512xf32>
    %22 = arith.addf %19, %21 : vector<64x512xf32>
    %23 = arith.truncf %22 : vector<64x512xf32> to vector<64x512xbf16>
    %c0_17 = arith.constant 0 : index
    %c0_18 = arith.constant 0 : index
    %24 = vector.load %arg8[%c0_17, %c0_18] : memref<64x512xbf16, #tpu.memory_space<vmem>>, vector<64x512xbf16>
    tpu.vector_store %arg8[%c0_17, %c0_18], %23 {strides = array<i32>} : memref<64x512xbf16, #tpu.memory_space<vmem>>, vector<64x512xbf16>,
    return
  }
  func.func @transform_0(%arg0: i32) -> (i32, i32) {
    %c0_i32 = arith.constant 0 : i32
    %c0_i32_0 = arith.constant 0 : i32
    return %arg0, %c0_i32 : i32, i32
  }
  func.func @transform_1(%arg0: i32) -> (i32, i32) {
    %c0_i32 = arith.constant 0 : i32
    %c0_i32_0 = arith.constant 0 : i32
    %c0_i32_1 = arith.constant 0 : i32
    return %c0_i32, %c0_i32_0 : i32, i32
  }
  func.func @transform_2(%arg0: i32) -> (i32, i32) {
    %c0_i32 = arith.constant 0 : i32
    %c0_i32_0 = arith.constant 0 : i32
    %c0_i32_1 = arith.constant 0 : i32
    return %c0_i32, %c0_i32_0 : i32, i32
  }
  func.func @transform_3(%arg0: i32) -> (i32, i32) {
    %c0_i32 = arith.constant 0 : i32
    %c0_i32_0 = arith.constant 0 : i32
    %c0_i32_1 = arith.constant 0 : i32
    return %c0_i32, %c0_i32_0 : i32, i32
  }
  func.func @transform_4(%arg0: i32) -> (i32, i32) {
    %c0_i32 = arith.constant 0 : i32
    %c0_i32_0 = arith.constant 0 : i32
    %c0_i32_1 = arith.constant 0 : i32
    return %c0_i32, %c0_i32_0 : i32, i32
  }
  func.func @transform_5(%arg0: i32) -> (i32, i32) {
    %c0_i32 = arith.constant 0 : i32
    %c0_i32_0 = arith.constant 0 : i32
    %c0_i32_1 = arith.constant 0 : i32
    return %c0_i32, %c0_i32_0 : i32, i32
  }
  func.func @transform_6(%arg0: i32) -> (i32, i32) {
    %c0_i32 = arith.constant 0 : i32
    %c0_i32_0 = arith.constant 0 : i32
    %c0_i32_1 = arith.constant 0 : i32
    return %c0_i32, %c0_i32_0 : i32, i32
  }
  func.func @transform_7(%arg0: i32) -> (i32, i32) {
    %c0_i32 = arith.constant 0 : i32
    %c0_i32_0 = arith.constant 0 : i32
    return %arg0, %c0_i32 : i32, i32
  }
}

module attributes {stable_mosaic.version = 11 : i64} {
  func.func @lstm_cls_kernel(%arg0: i32, %arg1: i32, %arg2: memref<8x8x512xbf16, #tpu.memory_space<vmem>>, %arg3: memref<128x512xf32, #tpu.memory_space<vmem>>, %arg4: memref<128x128xf32, #tpu.memory_space<vmem>>, %arg5: memref<1x128xf32, #tpu.memory_space<vmem>>, %arg6: memref<128x128xf32, #tpu.memory_space<vmem>>, %arg7: memref<1x128xf32, #tpu.memory_space<vmem>>, %arg8: memref<8x128xf32, #tpu.memory_space<vmem>>, %arg9: memref<8x128xf32, #tpu.memory_space<vmem>>, %arg10: memref<8x128xf32, #tpu.memory_space<vmem>>) attributes {dimension_semantics = [#tpu.dimension_semantics<parallel>, #tpu.dimension_semantics<arbitrary>], iteration_bounds = array<i64: 2, 2>, scalar_prefetch = 0 : i64, scratch_operands = 2 : i64, tpu.core_type = #tpu.core_type<tc>, window_params = [{transform_indices = @transform_0, window_bounds = array<i64: 8, 8, 512>}, {pipeline_mode = #tpu.pipeline_mode<synchronous>, transform_indices = @transform_1, window_bounds = array<i64: 128, 512>}, {pipeline_mode = #tpu.pipeline_mode<synchronous>, transform_indices = @transform_2, window_bounds = array<i64: 128, 128>}, {pipeline_mode = #tpu.pipeline_mode<synchronous>, transform_indices = @transform_3, window_bounds = array<i64: 1, 128>}, {pipeline_mode = #tpu.pipeline_mode<synchronous>, transform_indices = @transform_4, window_bounds = array<i64: 128, 128>}, {pipeline_mode = #tpu.pipeline_mode<synchronous>, transform_indices = @transform_5, window_bounds = array<i64: 1, 128>}, {transform_indices = @transform_6, window_bounds = array<i64: 8, 128>}]} {
    %c0_i32 = arith.constant 0 : i32
    %0 = arith.cmpi eq, %arg1, %c0_i32 : i32
    %1 = arith.extui %0 : i1 to i32
    %c0_i32_0 = arith.constant 0 : i32
    %2 = arith.cmpi ne, %1, %c0_i32_0 : i32
    scf.if %2 {
      %cst_74 = arith.constant 0.000000e+00 : f32
      %266 = vector.broadcast %cst_74 : f32 to vector<8x128xf32>
      %c0_75 = arith.constant 0 : index
      %c0_76 = arith.constant 0 : index
      %267 = vector.load %arg9[%c0_75, %c0_76] : memref<8x128xf32, #tpu.memory_space<vmem>>, vector<8x128xf32>
      tpu.vector_store %arg9[%c0_75, %c0_76], %266 {strides = array<i32>} : memref<8x128xf32, #tpu.memory_space<vmem>>, vector<8x128xf32>,
      %cst_77 = arith.constant 0.000000e+00 : f32
      %268 = vector.broadcast %cst_77 : f32 to vector<8x128xf32>
      %c0_78 = arith.constant 0 : index
      %c0_79 = arith.constant 0 : index
      %269 = vector.load %arg10[%c0_78, %c0_79] : memref<8x128xf32, #tpu.memory_space<vmem>>, vector<8x128xf32>
      tpu.vector_store %arg10[%c0_78, %c0_79], %268 {strides = array<i32>} : memref<8x128xf32, #tpu.memory_space<vmem>>, vector<8x128xf32>,
    } else {
    }
    %c0 = arith.constant 0 : index
    %c0_1 = arith.constant 0 : index
    %3 = vector.load %arg9[%c0, %c0_1] : memref<8x128xf32, #tpu.memory_space<vmem>>, vector<8x128xf32>
    %c0_2 = arith.constant 0 : index
    %c0_3 = arith.constant 0 : index
    %4 = vector.load %arg10[%c0_2, %c0_3] : memref<8x128xf32, #tpu.memory_space<vmem>>, vector<8x128xf32>
    %c0_i32_4 = arith.constant 0 : i32
    %5 = arith.index_cast %c0_i32_4 : i32 to index
    %c0_5 = arith.constant 0 : index
    %c0_6 = arith.constant 0 : index
    %6 = vector.load %arg2[%5, %c0_5, %c0_6] : memref<8x8x512xbf16, #tpu.memory_space<vmem>>, vector<1x8x512xbf16>
    %7 = vector.shape_cast %6 : vector<1x8x512xbf16> to vector<8x512xbf16>
    %8 = arith.extf %7 : vector<8x512xbf16> to vector<8x512xf32>
    %c0_7 = arith.constant 0 : index
    %c0_8 = arith.constant 0 : index
    %9 = vector.load %arg3[%c0_7, %c0_8] : memref<128x512xf32, #tpu.memory_space<vmem>>, vector<128x512xf32>
    %cst = arith.constant dense<0.000000e+00> : vector<8x512xf32>
    %10 = tpu.matmul %3, %9, %cst {dimension_numbers = #tpu.dot_dimension_numbers<[1], [0], [0], [1], [0, 0, 1, 1], [], []>} : vector<8x128xf32>, vector<128x512xf32>, vector<8x512xf32> -> vector<8x512xf32>
    %11 = arith.addf %8, %10 : vector<8x512xf32>
    %12 = vector.extract_strided_slice %11 {offsets = [0, 0], sizes = [8, 128], strides = [1, 1]} : vector<8x512xf32> to vector<8x128xf32>
    %13 = arith.negf %12 : vector<8x128xf32>
    %14 = math.exp %13 : vector<8x128xf32>
    %cst_9 = arith.constant 1.000000e+00 : f32
    %15 = vector.broadcast %cst_9 : f32 to vector<8x128xf32>
    %16 = arith.addf %15, %14 : vector<8x128xf32>
    %17 = arith.divf %15, %16 : vector<8x128xf32>
    %18 = vector.extract_strided_slice %11 {offsets = [0, 128], sizes = [8, 128], strides = [1, 1]} : vector<8x512xf32> to vector<8x128xf32>
    %19 = arith.negf %18 : vector<8x128xf32>
    %20 = math.exp %19 : vector<8x128xf32>
    %cst_10 = arith.constant 1.000000e+00 : f32
    %21 = vector.broadcast %cst_10 : f32 to vector<8x128xf32>
    %22 = arith.addf %21, %20 : vector<8x128xf32>
    %23 = arith.divf %21, %22 : vector<8x128xf32>
    %24 = vector.extract_strided_slice %11 {offsets = [0, 256], sizes = [8, 128], strides = [1, 1]} : vector<8x512xf32> to vector<8x128xf32>
    %25 = math.tanh %24 : vector<8x128xf32>
    %26 = vector.extract_strided_slice %11 {offsets = [0, 384], sizes = [8, 128], strides = [1, 1]} : vector<8x512xf32> to vector<8x128xf32>
    %27 = arith.negf %26 : vector<8x128xf32>
    %28 = math.exp %27 : vector<8x128xf32>
    %cst_11 = arith.constant 1.000000e+00 : f32
    %29 = vector.broadcast %cst_11 : f32 to vector<8x128xf32>
    %30 = arith.addf %29, %28 : vector<8x128xf32>
    %31 = arith.divf %29, %30 : vector<8x128xf32>
    %32 = arith.mulf %23, %4 : vector<8x128xf32>
    %33 = arith.mulf %17, %25 : vector<8x128xf32>
    %34 = arith.addf %32, %33 : vector<8x128xf32>
    %35 = math.tanh %34 : vector<8x128xf32>
    %36 = arith.mulf %31, %35 : vector<8x128xf32>
    %c1_i32 = arith.constant 1 : i32
    %37 = arith.index_cast %c1_i32 : i32 to index
    %c0_12 = arith.constant 0 : index
    %c0_13 = arith.constant 0 : index
    %38 = vector.load %arg2[%37, %c0_12, %c0_13] : memref<8x8x512xbf16, #tpu.memory_space<vmem>>, vector<1x8x512xbf16>
    %39 = vector.shape_cast %38 : vector<1x8x512xbf16> to vector<8x512xbf16>
    %40 = arith.extf %39 : vector<8x512xbf16> to vector<8x512xf32>
    %c0_14 = arith.constant 0 : index
    %c0_15 = arith.constant 0 : index
    %41 = vector.load %arg3[%c0_14, %c0_15] : memref<128x512xf32, #tpu.memory_space<vmem>>, vector<128x512xf32>
    %cst_16 = arith.constant dense<0.000000e+00> : vector<8x512xf32>
    %42 = tpu.matmul %36, %41, %cst_16 {dimension_numbers = #tpu.dot_dimension_numbers<[1], [0], [0], [1], [0, 0, 1, 1], [], []>} : vector<8x128xf32>, vector<128x512xf32>, vector<8x512xf32> -> vector<8x512xf32>
    %43 = arith.addf %40, %42 : vector<8x512xf32>
    %44 = vector.extract_strided_slice %43 {offsets = [0, 0], sizes = [8, 128], strides = [1, 1]} : vector<8x512xf32> to vector<8x128xf32>
    %45 = arith.negf %44 : vector<8x128xf32>
    %46 = math.exp %45 : vector<8x128xf32>
    %cst_17 = arith.constant 1.000000e+00 : f32
    %47 = vector.broadcast %cst_17 : f32 to vector<8x128xf32>
    %48 = arith.addf %47, %46 : vector<8x128xf32>
    %49 = arith.divf %47, %48 : vector<8x128xf32>
    %50 = vector.extract_strided_slice %43 {offsets = [0, 128], sizes = [8, 128], strides = [1, 1]} : vector<8x512xf32> to vector<8x128xf32>
    %51 = arith.negf %50 : vector<8x128xf32>
    %52 = math.exp %51 : vector<8x128xf32>
    %cst_18 = arith.constant 1.000000e+00 : f32
    %53 = vector.broadcast %cst_18 : f32 to vector<8x128xf32>
    %54 = arith.addf %53, %52 : vector<8x128xf32>
    %55 = arith.divf %53, %54 : vector<8x128xf32>
    %56 = vector.extract_strided_slice %43 {offsets = [0, 256], sizes = [8, 128], strides = [1, 1]} : vector<8x512xf32> to vector<8x128xf32>
    %57 = math.tanh %56 : vector<8x128xf32>
    %58 = vector.extract_strided_slice %43 {offsets = [0, 384], sizes = [8, 128], strides = [1, 1]} : vector<8x512xf32> to vector<8x128xf32>
    %59 = arith.negf %58 : vector<8x128xf32>
    %60 = math.exp %59 : vector<8x128xf32>
    %cst_19 = arith.constant 1.000000e+00 : f32
    %61 = vector.broadcast %cst_19 : f32 to vector<8x128xf32>
    %62 = arith.addf %61, %60 : vector<8x128xf32>
    %63 = arith.divf %61, %62 : vector<8x128xf32>
    %64 = arith.mulf %55, %34 : vector<8x128xf32>
    %65 = arith.mulf %49, %57 : vector<8x128xf32>
    %66 = arith.addf %64, %65 : vector<8x128xf32>
    %67 = math.tanh %66 : vector<8x128xf32>
    %68 = arith.mulf %63, %67 : vector<8x128xf32>
    %c2_i32 = arith.constant 2 : i32
    %69 = arith.index_cast %c2_i32 : i32 to index
    %c0_20 = arith.constant 0 : index
    %c0_21 = arith.constant 0 : index
    %70 = vector.load %arg2[%69, %c0_20, %c0_21] : memref<8x8x512xbf16, #tpu.memory_space<vmem>>, vector<1x8x512xbf16>
    %71 = vector.shape_cast %70 : vector<1x8x512xbf16> to vector<8x512xbf16>
    %72 = arith.extf %71 : vector<8x512xbf16> to vector<8x512xf32>
    %c0_22 = arith.constant 0 : index
    %c0_23 = arith.constant 0 : index
    %73 = vector.load %arg3[%c0_22, %c0_23] : memref<128x512xf32, #tpu.memory_space<vmem>>, vector<128x512xf32>
    %cst_24 = arith.constant dense<0.000000e+00> : vector<8x512xf32>
    %74 = tpu.matmul %68, %73, %cst_24 {dimension_numbers = #tpu.dot_dimension_numbers<[1], [0], [0], [1], [0, 0, 1, 1], [], []>} : vector<8x128xf32>, vector<128x512xf32>, vector<8x512xf32> -> vector<8x512xf32>
    %75 = arith.addf %72, %74 : vector<8x512xf32>
    %76 = vector.extract_strided_slice %75 {offsets = [0, 0], sizes = [8, 128], strides = [1, 1]} : vector<8x512xf32> to vector<8x128xf32>
    %77 = arith.negf %76 : vector<8x128xf32>
    %78 = math.exp %77 : vector<8x128xf32>
    %cst_25 = arith.constant 1.000000e+00 : f32
    %79 = vector.broadcast %cst_25 : f32 to vector<8x128xf32>
    %80 = arith.addf %79, %78 : vector<8x128xf32>
    %81 = arith.divf %79, %80 : vector<8x128xf32>
    %82 = vector.extract_strided_slice %75 {offsets = [0, 128], sizes = [8, 128], strides = [1, 1]} : vector<8x512xf32> to vector<8x128xf32>
    %83 = arith.negf %82 : vector<8x128xf32>
    %84 = math.exp %83 : vector<8x128xf32>
    %cst_26 = arith.constant 1.000000e+00 : f32
    %85 = vector.broadcast %cst_26 : f32 to vector<8x128xf32>
    %86 = arith.addf %85, %84 : vector<8x128xf32>
    %87 = arith.divf %85, %86 : vector<8x128xf32>
    %88 = vector.extract_strided_slice %75 {offsets = [0, 256], sizes = [8, 128], strides = [1, 1]} : vector<8x512xf32> to vector<8x128xf32>
    %89 = math.tanh %88 : vector<8x128xf32>
    %90 = vector.extract_strided_slice %75 {offsets = [0, 384], sizes = [8, 128], strides = [1, 1]} : vector<8x512xf32> to vector<8x128xf32>
    %91 = arith.negf %90 : vector<8x128xf32>
    %92 = math.exp %91 : vector<8x128xf32>
    %cst_27 = arith.constant 1.000000e+00 : f32
    %93 = vector.broadcast %cst_27 : f32 to vector<8x128xf32>
    %94 = arith.addf %93, %92 : vector<8x128xf32>
    %95 = arith.divf %93, %94 : vector<8x128xf32>
    %96 = arith.mulf %87, %66 : vector<8x128xf32>
    %97 = arith.mulf %81, %89 : vector<8x128xf32>
    %98 = arith.addf %96, %97 : vector<8x128xf32>
    %99 = math.tanh %98 : vector<8x128xf32>
    %100 = arith.mulf %95, %99 : vector<8x128xf32>
    %c3_i32 = arith.constant 3 : i32
    %101 = arith.index_cast %c3_i32 : i32 to index
    %c0_28 = arith.constant 0 : index
    %c0_29 = arith.constant 0 : index
    %102 = vector.load %arg2[%101, %c0_28, %c0_29] : memref<8x8x512xbf16, #tpu.memory_space<vmem>>, vector<1x8x512xbf16>
    %103 = vector.shape_cast %102 : vector<1x8x512xbf16> to vector<8x512xbf16>
    %104 = arith.extf %103 : vector<8x512xbf16> to vector<8x512xf32>
    %c0_30 = arith.constant 0 : index
    %c0_31 = arith.constant 0 : index
    %105 = vector.load %arg3[%c0_30, %c0_31] : memref<128x512xf32, #tpu.memory_space<vmem>>, vector<128x512xf32>
    %cst_32 = arith.constant dense<0.000000e+00> : vector<8x512xf32>
    %106 = tpu.matmul %100, %105, %cst_32 {dimension_numbers = #tpu.dot_dimension_numbers<[1], [0], [0], [1], [0, 0, 1, 1], [], []>} : vector<8x128xf32>, vector<128x512xf32>, vector<8x512xf32> -> vector<8x512xf32>
    %107 = arith.addf %104, %106 : vector<8x512xf32>
    %108 = vector.extract_strided_slice %107 {offsets = [0, 0], sizes = [8, 128], strides = [1, 1]} : vector<8x512xf32> to vector<8x128xf32>
    %109 = arith.negf %108 : vector<8x128xf32>
    %110 = math.exp %109 : vector<8x128xf32>
    %cst_33 = arith.constant 1.000000e+00 : f32
    %111 = vector.broadcast %cst_33 : f32 to vector<8x128xf32>
    %112 = arith.addf %111, %110 : vector<8x128xf32>
    %113 = arith.divf %111, %112 : vector<8x128xf32>
    %114 = vector.extract_strided_slice %107 {offsets = [0, 128], sizes = [8, 128], strides = [1, 1]} : vector<8x512xf32> to vector<8x128xf32>
    %115 = arith.negf %114 : vector<8x128xf32>
    %116 = math.exp %115 : vector<8x128xf32>
    %cst_34 = arith.constant 1.000000e+00 : f32
    %117 = vector.broadcast %cst_34 : f32 to vector<8x128xf32>
    %118 = arith.addf %117, %116 : vector<8x128xf32>
    %119 = arith.divf %117, %118 : vector<8x128xf32>
    %120 = vector.extract_strided_slice %107 {offsets = [0, 256], sizes = [8, 128], strides = [1, 1]} : vector<8x512xf32> to vector<8x128xf32>
    %121 = math.tanh %120 : vector<8x128xf32>
    %122 = vector.extract_strided_slice %107 {offsets = [0, 384], sizes = [8, 128], strides = [1, 1]} : vector<8x512xf32> to vector<8x128xf32>
    %123 = arith.negf %122 : vector<8x128xf32>
    %124 = math.exp %123 : vector<8x128xf32>
    %cst_35 = arith.constant 1.000000e+00 : f32
    %125 = vector.broadcast %cst_35 : f32 to vector<8x128xf32>
    %126 = arith.addf %125, %124 : vector<8x128xf32>
    %127 = arith.divf %125, %126 : vector<8x128xf32>
    %128 = arith.mulf %119, %98 : vector<8x128xf32>
    %129 = arith.mulf %113, %121 : vector<8x128xf32>
    %130 = arith.addf %128, %129 : vector<8x128xf32>
    %131 = math.tanh %130 : vector<8x128xf32>
    %132 = arith.mulf %127, %131 : vector<8x128xf32>
    %c4_i32 = arith.constant 4 : i32
    %133 = arith.index_cast %c4_i32 : i32 to index
    %c0_36 = arith.constant 0 : index
    %c0_37 = arith.constant 0 : index
    %134 = vector.load %arg2[%133, %c0_36, %c0_37] : memref<8x8x512xbf16, #tpu.memory_space<vmem>>, vector<1x8x512xbf16>
    %135 = vector.shape_cast %134 : vector<1x8x512xbf16> to vector<8x512xbf16>
    %136 = arith.extf %135 : vector<8x512xbf16> to vector<8x512xf32>
    %c0_38 = arith.constant 0 : index
    %c0_39 = arith.constant 0 : index
    %137 = vector.load %arg3[%c0_38, %c0_39] : memref<128x512xf32, #tpu.memory_space<vmem>>, vector<128x512xf32>
    %cst_40 = arith.constant dense<0.000000e+00> : vector<8x512xf32>
    %138 = tpu.matmul %132, %137, %cst_40 {dimension_numbers = #tpu.dot_dimension_numbers<[1], [0], [0], [1], [0, 0, 1, 1], [], []>} : vector<8x128xf32>, vector<128x512xf32>, vector<8x512xf32> -> vector<8x512xf32>
    %139 = arith.addf %136, %138 : vector<8x512xf32>
    %140 = vector.extract_strided_slice %139 {offsets = [0, 0], sizes = [8, 128], strides = [1, 1]} : vector<8x512xf32> to vector<8x128xf32>
    %141 = arith.negf %140 : vector<8x128xf32>
    %142 = math.exp %141 : vector<8x128xf32>
    %cst_41 = arith.constant 1.000000e+00 : f32
    %143 = vector.broadcast %cst_41 : f32 to vector<8x128xf32>
    %144 = arith.addf %143, %142 : vector<8x128xf32>
    %145 = arith.divf %143, %144 : vector<8x128xf32>
    %146 = vector.extract_strided_slice %139 {offsets = [0, 128], sizes = [8, 128], strides = [1, 1]} : vector<8x512xf32> to vector<8x128xf32>
    %147 = arith.negf %146 : vector<8x128xf32>
    %148 = math.exp %147 : vector<8x128xf32>
    %cst_42 = arith.constant 1.000000e+00 : f32
    %149 = vector.broadcast %cst_42 : f32 to vector<8x128xf32>
    %150 = arith.addf %149, %148 : vector<8x128xf32>
    %151 = arith.divf %149, %150 : vector<8x128xf32>
    %152 = vector.extract_strided_slice %139 {offsets = [0, 256], sizes = [8, 128], strides = [1, 1]} : vector<8x512xf32> to vector<8x128xf32>
    %153 = math.tanh %152 : vector<8x128xf32>
    %154 = vector.extract_strided_slice %139 {offsets = [0, 384], sizes = [8, 128], strides = [1, 1]} : vector<8x512xf32> to vector<8x128xf32>
    %155 = arith.negf %154 : vector<8x128xf32>
    %156 = math.exp %155 : vector<8x128xf32>
    %cst_43 = arith.constant 1.000000e+00 : f32
    %157 = vector.broadcast %cst_43 : f32 to vector<8x128xf32>
    %158 = arith.addf %157, %156 : vector<8x128xf32>
    %159 = arith.divf %157, %158 : vector<8x128xf32>
    %160 = arith.mulf %151, %130 : vector<8x128xf32>
    %161 = arith.mulf %145, %153 : vector<8x128xf32>
    %162 = arith.addf %160, %161 : vector<8x128xf32>
    %163 = math.tanh %162 : vector<8x128xf32>
    %164 = arith.mulf %159, %163 : vector<8x128xf32>
    %c5_i32 = arith.constant 5 : i32
    %165 = arith.index_cast %c5_i32 : i32 to index
    %c0_44 = arith.constant 0 : index
    %c0_45 = arith.constant 0 : index
    %166 = vector.load %arg2[%165, %c0_44, %c0_45] : memref<8x8x512xbf16, #tpu.memory_space<vmem>>, vector<1x8x512xbf16>
    %167 = vector.shape_cast %166 : vector<1x8x512xbf16> to vector<8x512xbf16>
    %168 = arith.extf %167 : vector<8x512xbf16> to vector<8x512xf32>
    %c0_46 = arith.constant 0 : index
    %c0_47 = arith.constant 0 : index
    %169 = vector.load %arg3[%c0_46, %c0_47] : memref<128x512xf32, #tpu.memory_space<vmem>>, vector<128x512xf32>
    %cst_48 = arith.constant dense<0.000000e+00> : vector<8x512xf32>
    %170 = tpu.matmul %164, %169, %cst_48 {dimension_numbers = #tpu.dot_dimension_numbers<[1], [0], [0], [1], [0, 0, 1, 1], [], []>} : vector<8x128xf32>, vector<128x512xf32>, vector<8x512xf32> -> vector<8x512xf32>
    %171 = arith.addf %168, %170 : vector<8x512xf32>
    %172 = vector.extract_strided_slice %171 {offsets = [0, 0], sizes = [8, 128], strides = [1, 1]} : vector<8x512xf32> to vector<8x128xf32>
    %173 = arith.negf %172 : vector<8x128xf32>
    %174 = math.exp %173 : vector<8x128xf32>
    %cst_49 = arith.constant 1.000000e+00 : f32
    %175 = vector.broadcast %cst_49 : f32 to vector<8x128xf32>
    %176 = arith.addf %175, %174 : vector<8x128xf32>
    %177 = arith.divf %175, %176 : vector<8x128xf32>
    %178 = vector.extract_strided_slice %171 {offsets = [0, 128], sizes = [8, 128], strides = [1, 1]} : vector<8x512xf32> to vector<8x128xf32>
    %179 = arith.negf %178 : vector<8x128xf32>
    %180 = math.exp %179 : vector<8x128xf32>
    %cst_50 = arith.constant 1.000000e+00 : f32
    %181 = vector.broadcast %cst_50 : f32 to vector<8x128xf32>
    %182 = arith.addf %181, %180 : vector<8x128xf32>
    %183 = arith.divf %181, %182 : vector<8x128xf32>
    %184 = vector.extract_strided_slice %171 {offsets = [0, 256], sizes = [8, 128], strides = [1, 1]} : vector<8x512xf32> to vector<8x128xf32>
    %185 = math.tanh %184 : vector<8x128xf32>
    %186 = vector.extract_strided_slice %171 {offsets = [0, 384], sizes = [8, 128], strides = [1, 1]} : vector<8x512xf32> to vector<8x128xf32>
    %187 = arith.negf %186 : vector<8x128xf32>
    %188 = math.exp %187 : vector<8x128xf32>
    %cst_51 = arith.constant 1.000000e+00 : f32
    %189 = vector.broadcast %cst_51 : f32 to vector<8x128xf32>
    %190 = arith.addf %189, %188 : vector<8x128xf32>
    %191 = arith.divf %189, %190 : vector<8x128xf32>
    %192 = arith.mulf %183, %162 : vector<8x128xf32>
    %193 = arith.mulf %177, %185 : vector<8x128xf32>
    %194 = arith.addf %192, %193 : vector<8x128xf32>
    %195 = math.tanh %194 : vector<8x128xf32>
    %196 = arith.mulf %191, %195 : vector<8x128xf32>
    %c6_i32 = arith.constant 6 : i32
    %197 = arith.index_cast %c6_i32 : i32 to index
    %c0_52 = arith.constant 0 : index
    %c0_53 = arith.constant 0 : index
    %198 = vector.load %arg2[%197, %c0_52, %c0_53] : memref<8x8x512xbf16, #tpu.memory_space<vmem>>, vector<1x8x512xbf16>
    %199 = vector.shape_cast %198 : vector<1x8x512xbf16> to vector<8x512xbf16>
    %200 = arith.extf %199 : vector<8x512xbf16> to vector<8x512xf32>
    %c0_54 = arith.constant 0 : index
    %c0_55 = arith.constant 0 : index
    %201 = vector.load %arg3[%c0_54, %c0_55] : memref<128x512xf32, #tpu.memory_space<vmem>>, vector<128x512xf32>
    %cst_56 = arith.constant dense<0.000000e+00> : vector<8x512xf32>
    %202 = tpu.matmul %196, %201, %cst_56 {dimension_numbers = #tpu.dot_dimension_numbers<[1], [0], [0], [1], [0, 0, 1, 1], [], []>} : vector<8x128xf32>, vector<128x512xf32>, vector<8x512xf32> -> vector<8x512xf32>
    %203 = arith.addf %200, %202 : vector<8x512xf32>
    %204 = vector.extract_strided_slice %203 {offsets = [0, 0], sizes = [8, 128], strides = [1, 1]} : vector<8x512xf32> to vector<8x128xf32>
    %205 = arith.negf %204 : vector<8x128xf32>
    %206 = math.exp %205 : vector<8x128xf32>
    %cst_57 = arith.constant 1.000000e+00 : f32
    %207 = vector.broadcast %cst_57 : f32 to vector<8x128xf32>
    %208 = arith.addf %207, %206 : vector<8x128xf32>
    %209 = arith.divf %207, %208 : vector<8x128xf32>
    %210 = vector.extract_strided_slice %203 {offsets = [0, 128], sizes = [8, 128], strides = [1, 1]} : vector<8x512xf32> to vector<8x128xf32>
    %211 = arith.negf %210 : vector<8x128xf32>
    %212 = math.exp %211 : vector<8x128xf32>
    %cst_58 = arith.constant 1.000000e+00 : f32
    %213 = vector.broadcast %cst_58 : f32 to vector<8x128xf32>
    %214 = arith.addf %213, %212 : vector<8x128xf32>
    %215 = arith.divf %213, %214 : vector<8x128xf32>
    %216 = vector.extract_strided_slice %203 {offsets = [0, 256], sizes = [8, 128], strides = [1, 1]} : vector<8x512xf32> to vector<8x128xf32>
    %217 = math.tanh %216 : vector<8x128xf32>
    %218 = vector.extract_strided_slice %203 {offsets = [0, 384], sizes = [8, 128], strides = [1, 1]} : vector<8x512xf32> to vector<8x128xf32>
    %219 = arith.negf %218 : vector<8x128xf32>
    %220 = math.exp %219 : vector<8x128xf32>
    %cst_59 = arith.constant 1.000000e+00 : f32
    %221 = vector.broadcast %cst_59 : f32 to vector<8x128xf32>
    %222 = arith.addf %221, %220 : vector<8x128xf32>
    %223 = arith.divf %221, %222 : vector<8x128xf32>
    %224 = arith.mulf %215, %194 : vector<8x128xf32>
    %225 = arith.mulf %209, %217 : vector<8x128xf32>
    %226 = arith.addf %224, %225 : vector<8x128xf32>
    %227 = math.tanh %226 : vector<8x128xf32>
    %228 = arith.mulf %223, %227 : vector<8x128xf32>
    %c7_i32 = arith.constant 7 : i32
    %229 = arith.index_cast %c7_i32 : i32 to index
    %c0_60 = arith.constant 0 : index
    %c0_61 = arith.constant 0 : index
    %230 = vector.load %arg2[%229, %c0_60, %c0_61] : memref<8x8x512xbf16, #tpu.memory_space<vmem>>, vector<1x8x512xbf16>
    %231 = vector.shape_cast %230 : vector<1x8x512xbf16> to vector<8x512xbf16>
    %232 = arith.extf %231 : vector<8x512xbf16> to vector<8x512xf32>
    %c0_62 = arith.constant 0 : index
    %c0_63 = arith.constant 0 : index
    %233 = vector.load %arg3[%c0_62, %c0_63] : memref<128x512xf32, #tpu.memory_space<vmem>>, vector<128x512xf32>
    %cst_64 = arith.constant dense<0.000000e+00> : vector<8x512xf32>
    %234 = tpu.matmul %228, %233, %cst_64 {dimension_numbers = #tpu.dot_dimension_numbers<[1], [0], [0], [1], [0, 0, 1, 1], [], []>} : vector<8x128xf32>, vector<128x512xf32>, vector<8x512xf32> -> vector<8x512xf32>
    %235 = arith.addf %232, %234 : vector<8x512xf32>
    %236 = vector.extract_strided_slice %235 {offsets = [0, 0], sizes = [8, 128], strides = [1, 1]} : vector<8x512xf32> to vector<8x128xf32>
    %237 = arith.negf %236 : vector<8x128xf32>
    %238 = math.exp %237 : vector<8x128xf32>
    %cst_65 = arith.constant 1.000000e+00 : f32
    %239 = vector.broadcast %cst_65 : f32 to vector<8x128xf32>
    %240 = arith.addf %239, %238 : vector<8x128xf32>
    %241 = arith.divf %239, %240 : vector<8x128xf32>
    %242 = vector.extract_strided_slice %235 {offsets = [0, 128], sizes = [8, 128], strides = [1, 1]} : vector<8x512xf32> to vector<8x128xf32>
    %243 = arith.negf %242 : vector<8x128xf32>
    %244 = math.exp %243 : vector<8x128xf32>
    %cst_66 = arith.constant 1.000000e+00 : f32
    %245 = vector.broadcast %cst_66 : f32 to vector<8x128xf32>
    %246 = arith.addf %245, %244 : vector<8x128xf32>
    %247 = arith.divf %245, %246 : vector<8x128xf32>
    %248 = vector.extract_strided_slice %235 {offsets = [0, 256], sizes = [8, 128], strides = [1, 1]} : vector<8x512xf32> to vector<8x128xf32>
    %249 = math.tanh %248 : vector<8x128xf32>
    %250 = vector.extract_strided_slice %235 {offsets = [0, 384], sizes = [8, 128], strides = [1, 1]} : vector<8x512xf32> to vector<8x128xf32>
    %251 = arith.negf %250 : vector<8x128xf32>
    %252 = math.exp %251 : vector<8x128xf32>
    %cst_67 = arith.constant 1.000000e+00 : f32
    %253 = vector.broadcast %cst_67 : f32 to vector<8x128xf32>
    %254 = arith.addf %253, %252 : vector<8x128xf32>
    %255 = arith.divf %253, %254 : vector<8x128xf32>
    %256 = arith.mulf %247, %226 : vector<8x128xf32>
    %257 = arith.mulf %241, %249 : vector<8x128xf32>
    %258 = arith.addf %256, %257 : vector<8x128xf32>
    %259 = math.tanh %258 : vector<8x128xf32>
    %260 = arith.mulf %255, %259 : vector<8x128xf32>
    %c8_i32 = arith.constant 8 : i32
    %c0_68 = arith.constant 0 : index
    %c0_69 = arith.constant 0 : index
    %261 = vector.load %arg9[%c0_68, %c0_69] : memref<8x128xf32, #tpu.memory_space<vmem>>, vector<8x128xf32>
    tpu.vector_store %arg9[%c0_68, %c0_69], %260 {strides = array<i32>} : memref<8x128xf32, #tpu.memory_space<vmem>>, vector<8x128xf32>,
    %c0_70 = arith.constant 0 : index
    %c0_71 = arith.constant 0 : index
    %262 = vector.load %arg10[%c0_70, %c0_71] : memref<8x128xf32, #tpu.memory_space<vmem>>, vector<8x128xf32>
    tpu.vector_store %arg10[%c0_70, %c0_71], %258 {strides = array<i32>} : memref<8x128xf32, #tpu.memory_space<vmem>>, vector<8x128xf32>,
    %c1_i32_72 = arith.constant 1 : i32
    %263 = arith.cmpi eq, %arg1, %c1_i32_72 : i32
    %264 = arith.extui %263 : i1 to i32
    %c0_i32_73 = arith.constant 0 : i32
    %265 = arith.cmpi ne, %264, %c0_i32_73 : i32
    scf.if %265 {
      %c0_74 = arith.constant 0 : index
      %c0_75 = arith.constant 0 : index
      %266 = vector.load %arg4[%c0_74, %c0_75] : memref<128x128xf32, #tpu.memory_space<vmem>>, vector<128x128xf32>
      %cst_76 = arith.constant dense<0.000000e+00> : vector<8x128xf32>
      %267 = tpu.matmul %260, %266, %cst_76 {dimension_numbers = #tpu.dot_dimension_numbers<[1], [0], [0], [1], [0, 0, 1, 1], [], []>} : vector<8x128xf32>, vector<128x128xf32>, vector<8x128xf32> -> vector<8x128xf32>
      %c0_77 = arith.constant 0 : index
      %c0_78 = arith.constant 0 : index
      %268 = vector.load %arg5[%c0_77, %c0_78] : memref<1x128xf32, #tpu.memory_space<vmem>>, vector<1x128xf32>
      %269 = vector.broadcast %268 : vector<1x128xf32> to vector<8x128xf32>
      %270 = arith.addf %267, %269 : vector<8x128xf32>
      %cst_79 = arith.constant 0.000000e+00 : f32
      %271 = vector.broadcast %cst_79 : f32 to vector<8x128xf32>
      %272 = arith.maximumf %270, %271 : vector<8x128xf32>
      %c0_80 = arith.constant 0 : index
      %c0_81 = arith.constant 0 : index
      %273 = vector.load %arg6[%c0_80, %c0_81] : memref<128x128xf32, #tpu.memory_space<vmem>>, vector<128x128xf32>
      %cst_82 = arith.constant dense<0.000000e+00> : vector<8x128xf32>
      %274 = tpu.matmul %272, %273, %cst_82 {dimension_numbers = #tpu.dot_dimension_numbers<[1], [0], [0], [1], [0, 0, 1, 1], [], []>} : vector<8x128xf32>, vector<128x128xf32>, vector<8x128xf32> -> vector<8x128xf32>
      %c0_83 = arith.constant 0 : index
      %c0_84 = arith.constant 0 : index
      %275 = vector.load %arg7[%c0_83, %c0_84] : memref<1x128xf32, #tpu.memory_space<vmem>>, vector<1x128xf32>
      %276 = vector.broadcast %275 : vector<1x128xf32> to vector<8x128xf32>
      %277 = arith.addf %274, %276 : vector<8x128xf32>
      %c0_85 = arith.constant 0 : index
      %c0_86 = arith.constant 0 : index
      %278 = vector.load %arg8[%c0_85, %c0_86] : memref<8x128xf32, #tpu.memory_space<vmem>>, vector<8x128xf32>
      tpu.vector_store %arg8[%c0_85, %c0_86], %277 {strides = array<i32>} : memref<8x128xf32, #tpu.memory_space<vmem>>, vector<8x128xf32>,
    } else {
    }
    return
  }
  func.func @transform_0(%arg0: i32, %arg1: i32) -> (i32, i32, i32) {
    %c0_i32 = arith.constant 0 : i32
    %c0_i32_0 = arith.constant 0 : i32
    return %arg1, %arg0, %c0_i32 : i32, i32, i32
  }
  func.func @transform_1(%arg0: i32, %arg1: i32) -> (i32, i32) {
    %c0_i32 = arith.constant 0 : i32
    %c0_i32_0 = arith.constant 0 : i32
    %c0_i32_1 = arith.constant 0 : i32
    return %c0_i32, %c0_i32_0 : i32, i32
  }
  func.func @transform_2(%arg0: i32, %arg1: i32) -> (i32, i32) {
    %c0_i32 = arith.constant 0 : i32
    %c0_i32_0 = arith.constant 0 : i32
    %c0_i32_1 = arith.constant 0 : i32
    return %c0_i32, %c0_i32_0 : i32, i32
  }
  func.func @transform_3(%arg0: i32, %arg1: i32) -> (i32, i32) {
    %c0_i32 = arith.constant 0 : i32
    %c0_i32_0 = arith.constant 0 : i32
    %c0_i32_1 = arith.constant 0 : i32
    return %c0_i32, %c0_i32_0 : i32, i32
  }
  func.func @transform_4(%arg0: i32, %arg1: i32) -> (i32, i32) {
    %c0_i32 = arith.constant 0 : i32
    %c0_i32_0 = arith.constant 0 : i32
    %c0_i32_1 = arith.constant 0 : i32
    return %c0_i32, %c0_i32_0 : i32, i32
  }
  func.func @transform_5(%arg0: i32, %arg1: i32) -> (i32, i32) {
    %c0_i32 = arith.constant 0 : i32
    %c0_i32_0 = arith.constant 0 : i32
    %c0_i32_1 = arith.constant 0 : i32
    return %c0_i32, %c0_i32_0 : i32, i32
  }
  func.func @transform_6(%arg0: i32, %arg1: i32) -> (i32, i32) {
    %c0_i32 = arith.constant 0 : i32
    %c0_i32_0 = arith.constant 0 : i32
    return %arg0, %c0_i32 : i32, i32
  }
}

</mosaic_0001>

<llo_original>
// kernel: cnn_rnn_forward.2
$region0: #{cnn_rnn_forward.2}
  #allocation0 [shape = 'u32[]', space=smem, size = 0x4, offset = 0x4, fixed_abs, tag = 'smem constant byte address 0x4 - core index']
  #allocation1 [shape = 'u32[144,128]{1,0:T(1,128)}', space=vmem, size = 0x12000, scoped, tag = 'internal scratch']
  %s0 = inlined_call_operand.vmem [shape: f32[256,64], index: 0, kind: input, shape index: {}]
  %s1 = inlined_call_operand.vmem [shape: bf16[64,512], index: 1, kind: input, shape index: {}]
  %s2 = inlined_call_operand.vmem [shape: f32[1,512], index: 2, kind: input, shape index: {}]
  %s3 = inlined_call_operand.vmem [shape: bf16[512,256], index: 3, kind: input, shape index: {}]
  %s4 = inlined_call_operand.vmem [shape: f32[1,256], index: 4, kind: input, shape index: {}]
  %s5 = inlined_call_operand.vmem [shape: bf16[256,512], index: 5, kind: input, shape index: {}]
  %s6 = inlined_call_operand.vmem [shape: f32[1,512], index: 6, kind: input, shape index: {}]
  %s7 = inlined_call_operand.vmem [shape: bf16[256,512], index: 7, kind: output, shape index: {}]
  %s8 = sld [smem:[#allocation0]]
  $region61: #{cnn_rnn_forward.2} parent=0
    _
  %s10 = ssub.s32 1, %s8
  %s11 = scalar_select 0, %s10, %s8
  loop: start=0, step=1, limit=6
  $region2: #{cnn_rnn_forward.2} parent=0 // loop_pre_header
    _
  $region3: #{cnn_rnn_forward.2} parent=0 // loop_header
    %s13 = sphi 0, %s17
    %p14 = scmp.ge.s32.totalorder %s13, 6
    %s23 = sphi 0, %s25
    %s26 = sphi 0, %s23
    %s27 = sphi 0, %s26
    %s43 = sphi 0, %s27
    %s47 = sphi 0, %s47
    %s49 = sphi 0, %s47
    %s50 = sphi 0, %s49
    %s64 = sphi 0, %s50
    %s68 = sphi 0, %s68
    %s70 = sphi 0, %s68
    %s71 = sphi 0, %s70
    %s85 = sphi 0, %s71
    %s89 = sphi 0, %s89
    %s91 = sphi 0, %s89
    %s92 = sphi 0, %s91
    %s106 = sphi 0, %s92
    %s110 = sphi 0, %s110
    %s112 = sphi 0, %s110
    %s113 = sphi 0, %s112
    %s127 = sphi 0, %s113
    %s131 = sphi 0, %s131
    %s133 = sphi 0, %s131
    %s134 = sphi 0, %s133
    %s148 = sphi 0, %s134
    %s152 = sphi 0, %s152
    %s154 = sphi 0, %s152
    %s155 = sphi 0, %s154
    %s169 = sphi 0, %s155
    %s175 = sphi 0, %s177
    %s178 = sphi 0, %s175
    %s179 = sphi 0, %s178
    %s195 = sphi 0, %s179
  $region4: #{cnn_rnn_forward.2} parent=0 // loop_header_branch
    %16 = sbr.rel (%p14) target = $region8
  $region5: #{cnn_rnn_forward.2} parent=0 // loop_body
    %s18 = ssub.s32 %s13, 1
    %s19 = ssub.s32 %s13, 2
    %s20 = sadd.s32 %s13, 1
    %s21 = ssub.s32 %s13, %s20
    %p22 = scmp.eq.s32.totalorder %s21, 0
    %s24 = sadd.s32 %s23, 1
    %s25 = scalar_select %p22, %s23, %s24
    %p28 = pneg %p22
    %p29 = scmp.eq.s32.totalorder %s13, 3
    %p30 = por %p28, %p29
    %p31 = scmp.ne.s32.totalorder %s23, %s26
    %p32 = scmp.eq.s32.totalorder %s13, 0
    %p33 = por %p31, %p32
    %p34 = scmp.ne.s32.totalorder %s23, %s26
    %p35 = scmp.eq.s32.totalorder %s18, 3
    %p36 = por %p34, %p35
    %p37 = scmp.ne.s32.totalorder %s26, %s27
    %p38 = scmp.eq.s32.totalorder %s18, 0
    %p39 = por %p37, %p38
    %p40 = scmp.ne.s32.totalorder %s26, %s27
    %p41 = scmp.eq.s32.totalorder %s19, 3
    %p42 = por %p40, %p41
    %p44 = scmp.ne.s32.totalorder %s27, %s43
    %p45 = scmp.eq.s32.totalorder %s19, 0
    %p46 = por %p44, %p45
    %s48 = sadd.s32 %s47, 1
    %p51 = scmp.eq.s32.totalorder %s13, 3
    %p52 = scmp.ne.s32.totalorder %s47, %s49
    %p53 = scmp.eq.s32.totalorder %s13, 0
    %p54 = por %p52, %p53
    %p55 = scmp.ne.s32.totalorder %s47, %s49
    %p56 = scmp.eq.s32.totalorder %s18, 3
    %p57 = por %p55, %p56
    %p58 = scmp.ne.s32.totalorder %s49, %s50
    %p59 = scmp.eq.s32.totalorder %s18, 0
    %p60 = por %p58, %p59
    %p61 = scmp.ne.s32.totalorder %s49, %s50
    %p62 = scmp.eq.s32.totalorder %s19, 3
    %p63 = por %p61, %p62
    %p65 = scmp.ne.s32.totalorder %s50, %s64
    %p66 = scmp.eq.s32.totalorder %s19, 0
    %p67 = por %p65, %p66
    %s69 = sadd.s32 %s68, 1
    %p72 = scmp.eq.s32.totalorder %s13, 3
    %p73 = scmp.ne.s32.totalorder %s68, %s70
    %p74 = scmp.eq.s32.totalorder %s13, 0
    %p75 = por %p73, %p74
    %p76 = scmp.ne.s32.totalorder %s68, %s70
    %p77 = scmp.eq.s32.totalorder %s18, 3
    %p78 = por %p76, %p77
    %p79 = scmp.ne.s32.totalorder %s70, %s71
    %p80 = scmp.eq.s32.totalorder %s18, 0
    %p81 = por %p79, %p80
    %p82 = scmp.ne.s32.totalorder %s70, %s71
    %p83 = scmp.eq.s32.totalorder %s19, 3
    %p84 = por %p82, %p83
    %p86 = scmp.ne.s32.totalorder %s71, %s85
    %p87 = scmp.eq.s32.totalorder %s19, 0
    %p88 = por %p86, %p87
    %s90 = sadd.s32 %s89, 1
    %p93 = scmp.eq.s32.totalorder %s13, 3
    %p94 = scmp.ne.s32.totalorder %s89, %s91
    %p95 = scmp.eq.s32.totalorder %s13, 0
    %p96 = por %p94, %p95
    %p97 = scmp.ne.s32.totalorder %s89, %s91
    %p98 = scmp.eq.s32.totalorder %s18, 3
    %p99 = por %p97, %p98
    %p100 = scmp.ne.s32.totalorder %s91, %s92
    %p101 = scmp.eq.s32.totalorder %s18, 0
    %p102 = por %p100, %p101
    %p103 = scmp.ne.s32.totalorder %s91, %s92
    %p104 = scmp.eq.s32.totalorder %s19, 3
    %p105 = por %p103, %p104
    %p107 = scmp.ne.s32.totalorder %s92, %s106
    %p108 = scmp.eq.s32.totalorder %s19, 0
    %p109 = por %p107, %p108
    %s111 = sadd.s32 %s110, 1
    %p114 = scmp.eq.s32.totalorder %s13, 3
    %p115 = scmp.ne.s32.totalorder %s110, %s112
    %p116 = scmp.eq.s32.totalorder %s13, 0
    %p117 = por %p115, %p116
    %p118 = scmp.ne.s32.totalorder %s110, %s112
    %p119 = scmp.eq.s32.totalorder %s18, 3
    %p120 = por %p118, %p119
    %p121 = scmp.ne.s32.totalorder %s112, %s113
    %p122 = scmp.eq.s32.totalorder %s18, 0
    %p123 = por %p121, %p122
    %p124 = scmp.ne.s32.totalorder %s112, %s113
    %p125 = scmp.eq.s32.totalorder %s19, 3
    %p126 = por %p124, %p125
    %p128 = scmp.ne.s32.totalorder %s113, %s127
    %p129 = scmp.eq.s32.totalorder %s19, 0
    %p130 = por %p128, %p129
    %s132 = sadd.s32 %s131, 1
    %p135 = scmp.eq.s32.totalorder %s13, 3
    %p136 = scmp.ne.s32.totalorder %s131, %s133
    %p137 = scmp.eq.s32.totalorder %s13, 0
    %p138 = por %p136, %p137
    %p139 = scmp.ne.s32.totalorder %s131, %s133
    %p140 = scmp.eq.s32.totalorder %s18, 3
    %p141 = por %p139, %p140
    %p142 = scmp.ne.s32.totalorder %s133, %s134
    %p143 = scmp.eq.s32.totalorder %s18, 0
    %p144 = por %p142, %p143
    %p145 = scmp.ne.s32.totalorder %s133, %s134
    %p146 = scmp.eq.s32.totalorder %s19, 3
    %p147 = por %p145, %p146
    %p149 = scmp.ne.s32.totalorder %s134, %s148
    %p150 = scmp.eq.s32.totalorder %s19, 0
    %p151 = por %p149, %p150
    %s153 = sadd.s32 %s152, 1
    %p156 = scmp.eq.s32.totalorder %s13, 3
    %p157 = scmp.ne.s32.totalorder %s152, %s154
    %p158 = scmp.eq.s32.totalorder %s13, 0
    %p159 = por %p157, %p158
    %p160 = scmp.ne.s32.totalorder %s152, %s154
    %p161 = scmp.eq.s32.totalorder %s18, 3
    %p162 = por %p160, %p161
    %p163 = scmp.ne.s32.totalorder %s154, %s155
    %p164 = scmp.eq.s32.totalorder %s18, 0
    %p165 = por %p163, %p164
    %p166 = scmp.ne.s32.totalorder %s154, %s155
    %p167 = scmp.eq.s32.totalorder %s19, 3
    %p168 = por %p166, %p167
    %p170 = scmp.ne.s32.totalorder %s155, %s169
    %p171 = scmp.eq.s32.totalorder %s19, 0
    %p172 = por %p170, %p171
    %s173 = ssub.s32 %s13, %s20
    %p174 = scmp.eq.s32.totalorder %s173, 0
    %s176 = sadd.s32 %s175, 1
    %s177 = scalar_select %p174, %s175, %s176
    %p180 = pneg %p174
    %p181 = scmp.eq.s32.totalorder %s13, 3
    %p182 = por %p180, %p181
    %p183 = scmp.ne.s32.totalorder %s175, %s178
    %p184 = scmp.eq.s32.totalorder %s13, 0
    %p185 = por %p183, %p184
    %p186 = scmp.ne.s32.totalorder %s175, %s178
    %p187 = scmp.eq.s32.totalorder %s18, 3
    %p188 = por %p186, %p187
    %p189 = scmp.ne.s32.totalorder %s178, %s179
    %p190 = scmp.eq.s32.totalorder %s18, 0
    %p191 = por %p189, %p190
    %p192 = scmp.ne.s32.totalorder %s178, %s179
    %p193 = scmp.eq.s32.totalorder %s19, 3
    %p194 = por %p192, %p193
    %p196 = scmp.ne.s32.totalorder %s179, %s195
    %p197 = scmp.eq.s32.totalorder %s19, 0
    %p198 = por %p196, %p197
    %p199 = scmp.le.s32.totalorder 1, %s13
    %p200 = scmp.lt.s32.totalorder %s13, 5
    %p201 = pnand %p199, %p200
    %p202 = pneg %p201
    // Predicated region
    $region9: #{cnn_rnn_forward.2} parent=5 // pred_check
      _
    $region10: #{cnn_rnn_forward.2} parent=5 // pred_check_branch
      %204 = sbr.rel (%p201) target = $region12
    $region11: #{cnn_rnn_forward.2} parent=5 // pred_region
      %s205 = ssub.s32 %s13, 1
      // Predicated region
      $region13: #{cnn_rnn_forward.2} parent=11 // pred_check
        %p206 = pneg %p60
      $region14: #{cnn_rnn_forward.2} parent=11 // pred_check_branch
        %208 = sbr.rel (%p206) target = $region16
      $region15: #{cnn_rnn_forward.2} parent=11 // pred_region
        _
      $region16: #{cnn_rnn_forward.2} parent=11 // pred_fallthru
        _
      // Predicated region
      $region17: #{cnn_rnn_forward.2} parent=11 // pred_check
        %p209 = pneg %p81
      $region18: #{cnn_rnn_forward.2} parent=11 // pred_check_branch
        %211 = sbr.rel (%p209) target = $region20
      $region19: #{cnn_rnn_forward.2} parent=11 // pred_region
        _
      $region20: #{cnn_rnn_forward.2} parent=11 // pred_fallthru
        _
      // Predicated region
      $region21: #{cnn_rnn_forward.2} parent=11 // pred_check
        %p212 = pneg %p102
      $region22: #{cnn_rnn_forward.2} parent=11 // pred_check_branch
        %214 = sbr.rel (%p212) target = $region24
      $region23: #{cnn_rnn_forward.2} parent=11 // pred_region
        _
      $region24: #{cnn_rnn_forward.2} parent=11 // pred_fallthru
        _
      // Predicated region
      $region25: #{cnn_rnn_forward.2} parent=11 // pred_check
        %p215 = pneg %p123
      $region26: #{cnn_rnn_forward.2} parent=11 // pred_check_branch
        %217 = sbr.rel (%p215) target = $region28
      $region27: #{cnn_rnn_forward.2} parent=11 // pred_region
        _
      $region28: #{cnn_rnn_forward.2} parent=11 // pred_fallthru
        _
      // Predicated region
      $region29: #{cnn_rnn_forward.2} parent=11 // pred_check
        %p218 = pneg %p144
      $region30: #{cnn_rnn_forward.2} parent=11 // pred_check_branch
        %220 = sbr.rel (%p218) target = $region32
      $region31: #{cnn_rnn_forward.2} parent=11 // pred_region
        _
      $region32: #{cnn_rnn_forward.2} parent=11 // pred_fallthru
        _
      // Predicated region
      $region33: #{cnn_rnn_forward.2} parent=11 // pred_check
        %p221 = pneg %p165
      $region34: #{cnn_rnn_forward.2} parent=11 // pred_check_branch
        %223 = sbr.rel (%p221) target = $region36
      $region35: #{cnn_rnn_forward.2} parent=11 // pred_region
        _
      $region36: #{cnn_rnn_forward.2} parent=11 // pred_fallthru
        _
    $region12: #{cnn_rnn_forward.2} parent=5 // pred_fallthru
      _
    %p224 = scmp.lt.s32.totalorder %s13, 4
    // Predicated region
    $region37: #{cnn_rnn_forward.2} parent=5 // pred_check
      %p225 = pneg %p224
    $region38: #{cnn_rnn_forward.2} parent=5 // pred_check_branch
      %227 = sbr.rel (%p225) target = $region40
    $region39: #{cnn_rnn_forward.2} parent=5 // pred_region
      // Predicated region
      $region41: #{cnn_rnn_forward.2} parent=39 // pred_check
        %p228 = pneg %p33
      $region42: #{cnn_rnn_forward.2} parent=39 // pred_check_branch
        %230 = sbr.rel (%p228) target = $region44
      $region43: #{cnn_rnn_forward.2} parent=39 // pred_region
        %s231 = smul.u32 8, %s13
        %p232 = scmp.lt.s32.totalorder %s231, 31
        %s233 = scalar_select %p232, %s231, 31
        %s234 = smul.addr %s233, 8
        %s235 = scalar_lea.vmem %s0, %s234
        %s236 = smul.u32 8, %s13
      $region44: #{cnn_rnn_forward.2} parent=39 // pred_fallthru
        _
    $region40: #{cnn_rnn_forward.2} parent=5 // pred_fallthru
      _
    %p237 = scmp.le.s32.totalorder 1, %s13
    %p238 = scmp.lt.s32.totalorder %s13, 5
    %p239 = pnand %p237, %p238
    %p240 = pneg %p239
    // Predicated region
    $region45: #{cnn_rnn_forward.2} parent=5 // pred_check
      _
    $region46: #{cnn_rnn_forward.2} parent=5 // pred_check_branch
      %242 = sbr.rel (%p239) target = $region48
    $region47: #{cnn_rnn_forward.2} parent=5 // pred_region
      %s243 = ssub.s32 %s13, 1
      %s244 = smul.u32 8, %s18
      %p245 = scmp.lt.s32.totalorder %s244, 31
      %s246 = scalar_select %p245, %s244, 31
      %s247 = smul.addr %s246, 8
      %s248 = scalar_lea.vmem %s0, %s247
      %p249 = pneg %p39
      %p250 = pneg %p36
      %p251 = pneg %p60
      %p252 = pneg %p57
      %p253 = pneg %p81
      %p254 = pneg %p78
      %p255 = pneg %p102
      %p256 = pneg %p99
      %p257 = pneg %p123
      %p258 = pneg %p120
      %p259 = pneg %p144
      %p260 = pneg %p141
      %p261 = pneg %p165
      %p262 = pneg %p162
      %p263 = pneg %p191
      %p264 = pneg %p188
      %s265 = smul.u32 8, %s18
      %p266 = scmp.lt.s32.totalorder %s265, 31
      %s267 = scalar_select %p266, %s265, 31
      %s268 = smul.addr %s267, 4
      %s269 = smul.addr %s268, 4
      %s270 = scalar_lea.vmem %s7, %s269
      %s271 = smul.u32 8, %s18
      %p272 = scmp.lt.s32.totalorder %s271, 31
      %s273 = scalar_select %p272, %s271, 31
      %s274 = smul.addr %s273, 8
      %s275 = scalar_lea.vmem %s0, %s274
      %s276 = smul.u32 8, %s18
      %s277 = smul.u32 8, %s18
      %p278 = scmp.lt.s32.totalorder %s277, 31
      %s279 = scalar_select %p278, %s277, 31
      %s280 = smul.addr %s279, 4
      %s281 = smul.addr %s280, 4
      %s282 = scalar_lea.vmem %s7, %s281
      %s283 = smul.u32 8, %s18
      %v285 = vld [vmem:[%s275] sm:$0xff]
      %v286 = vld [vmem:[%s275 + $0x8] sm:$0xff]
      %v287 = vld [vmem:[%s275 + $0x10] sm:$0xff]
      %v288 = vld [vmem:[%s275 + $0x18] sm:$0xff]
      %v289 = vld [vmem:[%s275 + $0x20] sm:$0xff]
      %v290 = vld [vmem:[%s275 + $0x28] sm:$0xff]
      %v291 = vld [vmem:[%s275 + $0x30] sm:$0xff]
      %v292 = vld [vmem:[%s275 + $0x38] sm:$0xff]
      %v293 = vpack.c.bf16 %v286, %v285
      %v294 = vpack.c.bf16 %v288, %v287
      %v295 = vpack.c.bf16 %v290, %v289
      %v296 = vpack.c.bf16 %v292, %v291
      %v297 = vld [vmem:[%s1] sm:$0xff]
      %v298 = vld [vmem:[%s1 + $0x8] sm:$0xff]
      %v299 = vld [vmem:[%s1 + $0x10] sm:$0xff]
      %v300 = vld [vmem:[%s1 + $0x18] sm:$0xff]
      %v301 = vld [vmem:[%s1 + $0x20] sm:$0xff]
      %v302 = vld [vmem:[%s1 + $0x28] sm:$0xff]
      %v303 = vld [vmem:[%s1 + $0x30] sm:$0xff]
      %v304 = vld [vmem:[%s1 + $0x38] sm:$0xff]
      %v305 = vld [vmem:[%s1 + $0x40] sm:$0xff]
      %v306 = vld [vmem:[%s1 + $0x48] sm:$0xff]
      %v307 = vld [vmem:[%s1 + $0x50] sm:$0xff]
      %v308 = vld [vmem:[%s1 + $0x58] sm:$0xff]
      %v309 = vld [vmem:[%s1 + $0x60] sm:$0xff]
      %v310 = vld [vmem:[%s1 + $0x68] sm:$0xff]
      %v311 = vld [vmem:[%s1 + $0x70] sm:$0xff]
      %v312 = vld [vmem:[%s1 + $0x78] sm:$0xff]
      %v313 = vld [vmem:[%s2] sm:$0xf]
      %v315 = vlaneseq
      %v316 = vshrl.u32 %v315, 7
      %v317 = vsub.s32 0, %v316
      %v318 = vrot.slane %v313, %v317
      %v319 = vlaneseq
      %v320 = vshrl.u32 %v319, 7
      %v321 = vsub.s32 1, %v320
      %v322 = vrot.slane %v313, %v321
      %v323 = vlaneseq
      %v324 = vshrl.u32 %v323, 7
      %v325 = vsub.s32 2, %v324
      %v326 = vrot.slane %v313, %v325
      %v327 = vlaneseq
      %v328 = vshrl.u32 %v327, 7
      %v329 = vsub.s32 3, %v328
      %v330 = vrot.slane %v313, %v329
      %v351 = vunpack.c.l.b16 %v297
      %v352 = vunpack.c.h.b16 %v297
      %v353 = vunpack.c.l.b16 %v298
      %v354 = vunpack.c.h.b16 %v298
      %v355 = vunpack.c.l.b16 %v299
      %v356 = vunpack.c.h.b16 %v299
      %v357 = vunpack.c.l.b16 %v300
      %v358 = vunpack.c.h.b16 %v300
      %v359 = vunpack.c.l.b16 %v301
      %v360 = vunpack.c.h.b16 %v301
      %v361 = vunpack.c.l.b16 %v302
      %v362 = vunpack.c.h.b16 %v302
      %v363 = vunpack.c.l.b16 %v303
      %v364 = vunpack.c.h.b16 %v303
      %v365 = vunpack.c.l.b16 %v304
      %v366 = vunpack.c.h.b16 %v304
      %v367 = vunpack.c.l.b16 %v305
      %v368 = vunpack.c.h.b16 %v305
      %v369 = vunpack.c.l.b16 %v306
      %v370 = vunpack.c.h.b16 %v306
      %v371 = vunpack.c.l.b16 %v307
      %v372 = vunpack.c.h.b16 %v307
      %v373 = vunpack.c.l.b16 %v308
      %v374 = vunpack.c.h.b16 %v308
      %v375 = vunpack.c.l.b16 %v309
      %v376 = vunpack.c.h.b16 %v309
      %v377 = vunpack.c.l.b16 %v310
      %v378 = vunpack.c.h.b16 %v310
      %v379 = vunpack.c.l.b16 %v311
      %v380 = vunpack.c.h.b16 %v311
      %v381 = vunpack.c.l.b16 %v312
      %v382 = vunpack.c.h.b16 %v312
      %v383 = vpack.c.b16 %v355, %v351
      %v384 = vpack.c.b16 %v356, %v352
      %v385 = vpack.c.b16 %v357, %v353
      %v386 = vpack.c.b16 %v358, %v354
      %v387 = vpack.c.b16 %v363, %v359
      %v388 = vpack.c.b16 %v364, %v360
      %v389 = vpack.c.b16 %v365, %v361
      %v390 = vpack.c.b16 %v366, %v362
      %v391 = vpack.c.b16 %v371, %v367
      %v392 = vpack.c.b16 %v372, %v368
      %v393 = vpack.c.b16 %v373, %v369
      %v394 = vpack.c.b16 %v374, %v370
      %v395 = vpack.c.b16 %v379, %v375
      %v396 = vpack.c.b16 %v380, %v376
      %v397 = vpack.c.b16 %v381, %v377
      %v398 = vpack.c.b16 %v382, %v378
      %vm415 = vcmask 523264
      %v417 = vsel %vm415, %v293, 0
      %v420 = vsel %vm415, %v294, 0
      %v423 = vsel %vm415, %v295, 0
      %v426 = vsel %vm415, %v296, 0
      %428 = vmatprep.subr.bf16.mxu0 %v384
      %429 = vmatpush1.bf16.msra.mxu0 %v383
      %430 = vmatprep.subr.bf16.mxu0 %v388
      %431 = vmatpush1.bf16.msra.mxu0 %v387
      %432 = vmatprep.subr.bf16.mxu0 %v392
      %433 = vmatpush1.bf16.msra.mxu0 %v391
      %434 = vmatprep.subr.bf16.mxu0 %v396
      %435 = vmatpush1.bf16.msra.mxu0 %v395
      %436 = vmatprep.subr.bf16.mxu0 0
      %437 = vmatpush1.bf16.msra.mxu0 0
      %438 = vmatprep.subr.bf16.mxu0 0
      %439 = vmatpush1.bf16.msra.mxu0 0
      %440 = vmatprep.subr.bf16.mxu0 0
      %441 = vmatpush1.bf16.msra.mxu0 0
      %442 = vmatprep.subr.bf16.mxu0 0
      %443 = vmatpush1.bf16.msra.mxu0 0
      %444 = vmatprep.subr.bf16.mxu0 0
      %445 = vmatpush1.bf16.msra.mxu0 0
      %446 = vmatprep.subr.bf16.mxu0 0
      %447 = vmatpush1.bf16.msra.mxu0 0
      %448 = vmatprep.subr.bf16.mxu0 0
      %449 = vmatpush1.bf16.msra.mxu0 0
      %450 = vmatprep.subr.bf16.mxu0 0
      %451 = vmatpush1.bf16.msra.mxu0 0
      %452 = vmatprep.subr.bf16.mxu0 0
      %453 = vmatpush1.bf16.msra.mxu0 0
      %454 = vmatprep.subr.bf16.mxu0 0
      %455 = vmatpush1.bf16.msra.mxu0 0
      %456 = vmatprep.subr.bf16.mxu0 0
      %457 = vmatpush1.bf16.msra.mxu0 0
      %458 = vmatprep.subr.bf16.mxu0 0
      %459 = vmatpush1.bf16.msra.mxu0 0
      %460 = vmatprep.mubr.bf16.mxu0 0
      %461 = vmatmul.mubr.bf16.gmra.mrb[0].mxu0 %v417
      %v462 = vpop.f32.mrb[0].mxu0
      %v463 = vadd.f32 %v318, %v462
      %v464 = vpop.f32.mrb[0].mxu0
      %v465 = vadd.f32 %v322, %v464
      %v466 = vpop.f32.mrb[0].mxu0
      %v467 = vadd.f32 %v318, %v466
      %v468 = vpop.f32.mrb[0].mxu0
      %v469 = vadd.f32 %v322, %v468
      %470 = vmatprep.mubr.bf16.mxu0 0
      %471 = vmatmul.mubr.bf16.gmra.mrb[0].mxu0 %v420
      %v472 = vpop.f32.mrb[0].mxu0
      %v473 = vadd.f32 %v318, %v472
      %v474 = vpop.f32.mrb[0].mxu0
      %v475 = vadd.f32 %v322, %v474
      %v476 = vpop.f32.mrb[0].mxu0
      %v477 = vadd.f32 %v318, %v476
      %v478 = vpop.f32.mrb[0].mxu0
      %v479 = vadd.f32 %v322, %v478
      %480 = vmatprep.mubr.bf16.mxu0 0
      %481 = vmatmul.mubr.bf16.gmra.mrb[0].mxu0 %v423
      %v482 = vpop.f32.mrb[0].mxu0
      %v483 = vadd.f32 %v318, %v482
      %v484 = vpop.f32.mrb[0].mxu0
      %v485 = vadd.f32 %v322, %v484
      %v486 = vpop.f32.mrb[0].mxu0
      %v487 = vadd.f32 %v318, %v486
      %v488 = vpop.f32.mrb[0].mxu0
      %v489 = vadd.f32 %v322, %v488
      %490 = vmatprep.mubr.bf16.mxu0 0
      %491 = vmatmul.mubr.bf16.gmra.mrb[0].mxu0 %v426
      %v492 = vpop.f32.mrb[0].mxu0
      %v493 = vadd.f32 %v318, %v492
      %v494 = vpop.f32.mrb[0].mxu0
      %v495 = vadd.f32 %v322, %v494
      %v496 = vpop.f32.mrb[0].mxu0
      %v497 = vadd.f32 %v318, %v496
      %v498 = vpop.f32.mrb[0].mxu0
      %v499 = vadd.f32 %v322, %v498
      %500 = vdwg.mxu0
      %501 = vmatprep.subr.bf16.mxu0 %v386
      %502 = vmatpush1.bf16.msra.mxu0 %v385
      %503 = vmatprep.subr.bf16.mxu0 %v390
      %504 = vmatpush1.bf16.msra.mxu0 %v389
      %505 = vmatprep.subr.bf16.mxu0 %v394
      %506 = vmatpush1.bf16.msra.mxu0 %v393
      %507 = vmatprep.subr.bf16.mxu0 %v398
      %508 = vmatpush1.bf16.msra.mxu0 %v397
      %509 = vmatprep.subr.bf16.mxu0 0
      %510 = vmatpush1.bf16.msra.mxu0 0
      %511 = vmatprep.subr.bf16.mxu0 0
      %512 = vmatpush1.bf16.msra.mxu0 0
      %513 = vmatprep.subr.bf16.mxu0 0
      %514 = vmatpush1.bf16.msra.mxu0 0
      %515 = vmatprep.subr.bf16.mxu0 0
      %516 = vmatpush1.bf16.msra.mxu0 0
      %517 = vmatprep.subr.bf16.mxu0 0
      %518 = vmatpush1.bf16.msra.mxu0 0
      %519 = vmatprep.subr.bf16.mxu0 0
      %520 = vmatpush1.bf16.msra.mxu0 0
      %521 = vmatprep.subr.bf16.mxu0 0
      %522 = vmatpush1.bf16.msra.mxu0 0
      %523 = vmatprep.subr.bf16.mxu0 0
      %524 = vmatpush1.bf16.msra.mxu0 0
      %525 = vmatprep.subr.bf16.mxu0 0
      %526 = vmatpush1.bf16.msra.mxu0 0
      %527 = vmatprep.subr.bf16.mxu0 0
      %528 = vmatpush1.bf16.msra.mxu0 0
      %529 = vmatprep.subr.bf16.mxu0 0
      %530 = vmatpush1.bf16.msra.mxu0 0
      %531 = vmatprep.subr.bf16.mxu0 0
      %532 = vmatpush1.bf16.msra.mxu0 0
      %533 = vmatprep.mubr.bf16.mxu0 0
      %534 = vmatmul.mubr.bf16.gmra.mrb[0].mxu0 %v417
      %v535 = vpop.f32.mrb[0].mxu0
      %v536 = vadd.f32 %v326, %v535
      %v537 = vpop.f32.mrb[0].mxu0
      %v538 = vadd.f32 %v330, %v537
      %v539 = vpop.f32.mrb[0].mxu0
      %v540 = vadd.f32 %v326, %v539
      %v541 = vpop.f32.mrb[0].mxu0
      %v542 = vadd.f32 %v330, %v541
      %543 = vmatprep.mubr.bf16.mxu0 0
      %544 = vmatmul.mubr.bf16.gmra.mrb[0].mxu0 %v420
      %v545 = vpop.f32.mrb[0].mxu0
      %v546 = vadd.f32 %v326, %v545
      %v547 = vpop.f32.mrb[0].mxu0
      %v548 = vadd.f32 %v330, %v547
      %v549 = vpop.f32.mrb[0].mxu0
      %v550 = vadd.f32 %v326, %v549
      %v551 = vpop.f32.mrb[0].mxu0
      %v552 = vadd.f32 %v330, %v551
      %553 = vmatprep.mubr.bf16.mxu0 0
      %554 = vmatmul.mubr.bf16.gmra.mrb[0].mxu0 %v423
      %v555 = vpop.f32.mrb[0].mxu0
      %v556 = vadd.f32 %v326, %v555
      %v557 = vpop.f32.mrb[0].mxu0
      %v558 = vadd.f32 %v330, %v557
      %v559 = vpop.f32.mrb[0].mxu0
      %v560 = vadd.f32 %v326, %v559
      %v561 = vpop.f32.mrb[0].mxu0
      %v562 = vadd.f32 %v330, %v561
      %563 = vmatprep.mubr.bf16.mxu0 0
      %564 = vmatmul.mubr.bf16.gmra.mrb[0].mxu0 %v426
      %v565 = vpop.f32.mrb[0].mxu0
      %v566 = vadd.f32 %v326, %v565
      %v567 = vpop.f32.mrb[0].mxu0
      %v568 = vadd.f32 %v330, %v567
      %v569 = vpop.f32.mrb[0].mxu0
      %v570 = vadd.f32 %v326, %v569
      %v571 = vpop.f32.mrb[0].mxu0
      %v572 = vadd.f32 %v330, %v571
      %573 = vdwg.mxu0
      %v574 = vmax.f32 %v463, 0.0
      %v575 = vmax.f32 %v465, 0.0
      %v576 = vmax.f32 %v536, 0.0
      %v577 = vmax.f32 %v538, 0.0
      %v578 = vmax.f32 %v467, 0.0
      %v579 = vmax.f32 %v469, 0.0
      %v580 = vmax.f32 %v540, 0.0
      %v581 = vmax.f32 %v542, 0.0
      %v582 = vmax.f32 %v473, 0.0
      %v583 = vmax.f32 %v475, 0.0
      %v584 = vmax.f32 %v546, 0.0
      %v585 = vmax.f32 %v548, 0.0
      %v586 = vmax.f32 %v477, 0.0
      %v587 = vmax.f32 %v479, 0.0
      %v588 = vmax.f32 %v550, 0.0
      %v589 = vmax.f32 %v552, 0.0
      %v590 = vmax.f32 %v483, 0.0
      %v591 = vmax.f32 %v485, 0.0
      %v592 = vmax.f32 %v556, 0.0
      %v593 = vmax.f32 %v558, 0.0
      %v594 = vmax.f32 %v487, 0.0
      %v595 = vmax.f32 %v489, 0.0
      %v596 = vmax.f32 %v560, 0.0
      %v597 = vmax.f32 %v562, 0.0
      %v598 = vmax.f32 %v493, 0.0
      %v599 = vmax.f32 %v495, 0.0
      %v600 = vmax.f32 %v566, 0.0
      %v601 = vmax.f32 %v568, 0.0
      %v602 = vmax.f32 %v497, 0.0
      %v603 = vmax.f32 %v499, 0.0
      %v604 = vmax.f32 %v570, 0.0
      %v605 = vmax.f32 %v572, 0.0
      %v606 = vpack.c.bf16 %v578, %v574
      %v607 = vpack.c.bf16 %v579, %v575
      %v608 = vpack.c.bf16 %v580, %v576
      %v609 = vpack.c.bf16 %v581, %v577
      %v610 = vpack.c.bf16 %v586, %v582
      %v611 = vpack.c.bf16 %v587, %v583
      %v612 = vpack.c.bf16 %v588, %v584
      %v613 = vpack.c.bf16 %v589, %v585
      %v614 = vpack.c.bf16 %v594, %v590
      %v615 = vpack.c.bf16 %v595, %v591
      %v616 = vpack.c.bf16 %v596, %v592
      %v617 = vpack.c.bf16 %v597, %v593
      %v618 = vpack.c.bf16 %v602, %v598
      %v619 = vpack.c.bf16 %v603, %v599
      %v620 = vpack.c.bf16 %v604, %v600
      %v621 = vpack.c.bf16 %v605, %v601
      %v622 = vld [vmem:[%s3] sm:$0xff]
      %v623 = vld [vmem:[%s3 + $0x8] sm:$0xff]
      %v624 = vld [vmem:[%s3 + $0x10] sm:$0xff]
      %v625 = vld [vmem:[%s3 + $0x18] sm:$0xff]
      %v626 = vld [vmem:[%s3 + $0x20] sm:$0xff]
      %v627 = vld [vmem:[%s3 + $0x28] sm:$0xff]
      %v628 = vld [vmem:[%s3 + $0x30] sm:$0xff]
      %v629 = vld [vmem:[%s3 + $0x38] sm:$0xff]
      %v630 = vld [vmem:[%s3 + $0x40] sm:$0xff]
      %v631 = vld [vmem:[%s3 + $0x48] sm:$0xff]
      %v632 = vld [vmem:[%s3 + $0x50] sm:$0xff]
      %v633 = vld [vmem:[%s3 + $0x58] sm:$0xff]
      %v634 = vld [vmem:[%s3 + $0x60] sm:$0xff]
      %v635 = vld [vmem:[%s3 + $0x68] sm:$0xff]
      %v636 = vld [vmem:[%s3 + $0x70] sm:$0xff]
      %v637 = vld [vmem:[%s3 + $0x78] sm:$0xff]
      %v638 = vld [vmem:[%s3 + $0x80] sm:$0xff]
      %v639 = vld [vmem:[%s3 + $0x88] sm:$0xff]
      %v640 = vld [vmem:[%s3 + $0x90] sm:$0xff]
      %v641 = vld [vmem:[%s3 + $0x98] sm:$0xff]
      %v642 = vld [vmem:[%s3 + $0xa0] sm:$0xff]
      %v643 = vld [vmem:[%s3 + $0xa8] sm:$0xff]
      %v644 = vld [vmem:[%s3 + $0xb0] sm:$0xff]
      %v645 = vld [vmem:[%s3 + $0xb8] sm:$0xff]
      %v646 = vld [vmem:[%s3 + $0xc0] sm:$0xff]
      %v647 = vld [vmem:[%s3 + $0xc8] sm:$0xff]
      %v648 = vld [vmem:[%s3 + $0xd0] sm:$0xff]
      %v649 = vld [vmem:[%s3 + $0xd8] sm:$0xff]
      %v650 = vld [vmem:[%s3 + $0xe0] sm:$0xff]
      %v651 = vld [vmem:[%s3 + $0xe8] sm:$0xff]
      %v652 = vld [vmem:[%s3 + $0xf0] sm:$0xff]
      %v653 = vld [vmem:[%s3 + $0xf8] sm:$0xff]
      %v654 = vld [vmem:[%s3 + $0x100] sm:$0xff]
      %v655 = vld [vmem:[%s3 + $0x108] sm:$0xff]
      %v656 = vld [vmem:[%s3 + $0x110] sm:$0xff]
      %v657 = vld [vmem:[%s3 + $0x118] sm:$0xff]
      %v658 = vld [vmem:[%s3 + $0x120] sm:$0xff]
      %v659 = vld [vmem:[%s3 + $0x128] sm:$0xff]
      %v660 = vld [vmem:[%s3 + $0x130] sm:$0xff]
      %v661 = vld [vmem:[%s3 + $0x138] sm:$0xff]
      %v662 = vld [vmem:[%s3 + $0x140] sm:$0xff]
      %v663 = vld [vmem:[%s3 + $0x148] sm:$0xff]
      %v664 = vld [vmem:[%s3 + $0x150] sm:$0xff]
      %v665 = vld [vmem:[%s3 + $0x158] sm:$0xff]
      %v666 = vld [vmem:[%s3 + $0x160] sm:$0xff]
      %v667 = vld [vmem:[%s3 + $0x168] sm:$0xff]
      %v668 = vld [vmem:[%s3 + $0x170] sm:$0xff]
      %v669 = vld [vmem:[%s3 + $0x178] sm:$0xff]
      %v670 = vld [vmem:[%s3 + $0x180] sm:$0xff]
      %v671 = vld [vmem:[%s3 + $0x188] sm:$0xff]
      %v672 = vld [vmem:[%s3 + $0x190] sm:$0xff]
      %v673 = vld [vmem:[%s3 + $0x198] sm:$0xff]
      %v674 = vld [vmem:[%s3 + $0x1a0] sm:$0xff]
      %v675 = vld [vmem:[%s3 + $0x1a8] sm:$0xff]
      %v676 = vld [vmem:[%s3 + $0x1b0] sm:$0xff]
      %v677 = vld [vmem:[%s3 + $0x1b8] sm:$0xff]
      %v678 = vld [vmem:[%s3 + $0x1c0] sm:$0xff]
      %v679 = vld [vmem:[%s3 + $0x1c8] sm:$0xff]
      %v680 = vld [vmem:[%s3 + $0x1d0] sm:$0xff]
      %v681 = vld [vmem:[%s3 + $0x1d8] sm:$0xff]
      %v682 = vld [vmem:[%s3 + $0x1e0] sm:$0xff]
      %v683 = vld [vmem:[%s3 + $0x1e8] sm:$0xff]
      %v684 = vld [vmem:[%s3 + $0x1f0] sm:$0xff]
      %v685 = vld [vmem:[%s3 + $0x1f8] sm:$0xff]
      %v686 = vld [vmem:[%s4] sm:$0x3]
      %v688 = vlaneseq
      %v689 = vshrl.u32 %v688, 7
      %v690 = vsub.s32 0, %v689
      %v691 = vrot.slane %v686, %v690
      %v692 = vlaneseq
      %v693 = vshrl.u32 %v692, 7
      %v694 = vsub.s32 1, %v693
      %v695 = vrot.slane %v686, %v694
      %v762 = vunpack.c.l.b16 %v622
      %v763 = vunpack.c.h.b16 %v622
      %v764 = vunpack.c.l.b16 %v623
      %v765 = vunpack.c.h.b16 %v623
      %v766 = vunpack.c.l.b16 %v624
      %v767 = vunpack.c.h.b16 %v624
      %v768 = vunpack.c.l.b16 %v625
      %v769 = vunpack.c.h.b16 %v625
      %v770 = vunpack.c.l.b16 %v626
      %v771 = vunpack.c.h.b16 %v626
      %v772 = vunpack.c.l.b16 %v627
      %v773 = vunpack.c.h.b16 %v627
      %v774 = vunpack.c.l.b16 %v628
      %v775 = vunpack.c.h.b16 %v628
      %v776 = vunpack.c.l.b16 %v629
      %v777 = vunpack.c.h.b16 %v629
      %v778 = vunpack.c.l.b16 %v630
      %v779 = vunpack.c.h.b16 %v630
      %v780 = vunpack.c.l.b16 %v631
      %v781 = vunpack.c.h.b16 %v631
      %v782 = vunpack.c.l.b16 %v632
      %v783 = vunpack.c.h.b16 %v632
      %v784 = vunpack.c.l.b16 %v633
      %v785 = vunpack.c.h.b16 %v633
      %v786 = vunpack.c.l.b16 %v634
      %v787 = vunpack.c.h.b16 %v634
      %v788 = vunpack.c.l.b16 %v635
      %v789 = vunpack.c.h.b16 %v635
      %v790 = vunpack.c.l.b16 %v636
      %v791 = vunpack.c.h.b16 %v636
      %v792 = vunpack.c.l.b16 %v637
      %v793 = vunpack.c.h.b16 %v637
      %v794 = vunpack.c.l.b16 %v638
      %v795 = vunpack.c.h.b16 %v638
      %v796 = vunpack.c.l.b16 %v639
      %v797 = vunpack.c.h.b16 %v639
      %v798 = vunpack.c.l.b16 %v640
      %v799 = vunpack.c.h.b16 %v640
      %v800 = vunpack.c.l.b16 %v641
      %v801 = vunpack.c.h.b16 %v641
      %v802 = vunpack.c.l.b16 %v642
      %v803 = vunpack.c.h.b16 %v642
      %v804 = vunpack.c.l.b16 %v643
      %v805 = vunpack.c.h.b16 %v643
      %v806 = vunpack.c.l.b16 %v644
      %v807 = vunpack.c.h.b16 %v644
      %v808 = vunpack.c.l.b16 %v645
      %v809 = vunpack.c.h.b16 %v645
      %v810 = vunpack.c.l.b16 %v646
      %v811 = vunpack.c.h.b16 %v646
      %v812 = vunpack.c.l.b16 %v647
      %v813 = vunpack.c.h.b16 %v647
      %v814 = vunpack.c.l.b16 %v648
      %v815 = vunpack.c.h.b16 %v648
      %v816 = vunpack.c.l.b16 %v649
      %v817 = vunpack.c.h.b16 %v649
      %v818 = vunpack.c.l.b16 %v650
      %v819 = vunpack.c.h.b16 %v650
      %v820 = vunpack.c.l.b16 %v651
      %v821 = vunpack.c.h.b16 %v651
      %v822 = vunpack.c.l.b16 %v652
      %v823 = vunpack.c.h.b16 %v652
      %v824 = vunpack.c.l.b16 %v653
      %v825 = vunpack.c.h.b16 %v653
      %v826 = vunpack.c.l.b16 %v654
      %v827 = vunpack.c.h.b16 %v654
      %v828 = vunpack.c.l.b16 %v655
      %v829 = vunpack.c.h.b16 %v655
      %v830 = vunpack.c.l.b16 %v656
      %v831 = vunpack.c.h.b16 %v656
      %v832 = vunpack.c.l.b16 %v657
      %v833 = vunpack.c.h.b16 %v657
      %v834 = vunpack.c.l.b16 %v658
      %v835 = vunpack.c.h.b16 %v658
      %v836 = vunpack.c.l.b16 %v659
      %v837 = vunpack.c.h.b16 %v659
      %v838 = vunpack.c.l.b16 %v660
      %v839 = vunpack.c.h.b16 %v660
      %v840 = vunpack.c.l.b16 %v661
      %v841 = vunpack.c.h.b16 %v661
      %v842 = vunpack.c.l.b16 %v662
      %v843 = vunpack.c.h.b16 %v662
      %v844 = vunpack.c.l.b16 %v663
      %v845 = vunpack.c.h.b16 %v663
      %v846 = vunpack.c.l.b16 %v664
      %v847 = vunpack.c.h.b16 %v664
      %v848 = vunpack.c.l.b16 %v665
      %v849 = vunpack.c.h.b16 %v665
      %v850 = vunpack.c.l.b16 %v666
      %v851 = vunpack.c.h.b16 %v666
      %v852 = vunpack.c.l.b16 %v667
      %v853 = vunpack.c.h.b16 %v667
      %v854 = vunpack.c.l.b16 %v668
      %v855 = vunpack.c.h.b16 %v668
      %v856 = vunpack.c.l.b16 %v669
      %v857 = vunpack.c.h.b16 %v669
      %v858 = vunpack.c.l.b16 %v670
      %v859 = vunpack.c.h.b16 %v670
      %v860 = vunpack.c.l.b16 %v671
      %v861 = vunpack.c.h.b16 %v671
      %v862 = vunpack.c.l.b16 %v672
      %v863 = vunpack.c.h.b16 %v672
      %v864 = vunpack.c.l.b16 %v673
      %v865 = vunpack.c.h.b16 %v673
      %v866 = vunpack.c.l.b16 %v674
      %v867 = vunpack.c.h.b16 %v674
      %v868 = vunpack.c.l.b16 %v675
      %v869 = vunpack.c.h.b16 %v675
      %v870 = vunpack.c.l.b16 %v676
      %v871 = vunpack.c.h.b16 %v676
      %v872 = vunpack.c.l.b16 %v677
      %v873 = vunpack.c.h.b16 %v677
      %v874 = vunpack.c.l.b16 %v678
      %v875 = vunpack.c.h.b16 %v678
      %v876 = vunpack.c.l.b16 %v679
      %v877 = vunpack.c.h.b16 %v679
      %v878 = vunpack.c.l.b16 %v680
      %v879 = vunpack.c.h.b16 %v680
      %v880 = vunpack.c.l.b16 %v681
      %v881 = vunpack.c.h.b16 %v681
      %v882 = vunpack.c.l.b16 %v682
      %v883 = vunpack.c.h.b16 %v682
      %v884 = vunpack.c.l.b16 %v683
      %v885 = vunpack.c.h.b16 %v683
      %v886 = vunpack.c.l.b16 %v684
      %v887 = vunpack.c.h.b16 %v684
      %v888 = vunpack.c.l.b16 %v685
      %v889 = vunpack.c.h.b16 %v685
      %v890 = vpack.c.b16 %v764, %v762
      %v891 = vpack.c.b16 %v765, %v763
      %v892 = vpack.c.b16 %v768, %v766
      %v893 = vpack.c.b16 %v769, %v767
      %v894 = vpack.c.b16 %v772, %v770
      %v895 = vpack.c.b16 %v773, %v771
      %v896 = vpack.c.b16 %v776, %v774
      %v897 = vpack.c.b16 %v777, %v775
      %v898 = vpack.c.b16 %v780, %v778
      %v899 = vpack.c.b16 %v781, %v779
      %v900 = vpack.c.b16 %v784, %v782
      %v901 = vpack.c.b16 %v785, %v783
      %v902 = vpack.c.b16 %v788, %v786
      %v903 = vpack.c.b16 %v789, %v787
      %v904 = vpack.c.b16 %v792, %v790
      %v905 = vpack.c.b16 %v793, %v791
      %v906 = vpack.c.b16 %v796, %v794
      %v907 = vpack.c.b16 %v797, %v795
      %v908 = vpack.c.b16 %v800, %v798
      %v909 = vpack.c.b16 %v801, %v799
      %v910 = vpack.c.b16 %v804, %v802
      %v911 = vpack.c.b16 %v805, %v803
      %v912 = vpack.c.b16 %v808, %v806
      %v913 = vpack.c.b16 %v809, %v807
      %v914 = vpack.c.b16 %v812, %v810
      %v915 = vpack.c.b16 %v813, %v811
      %v916 = vpack.c.b16 %v816, %v814
      %v917 = vpack.c.b16 %v817, %v815
      %v918 = vpack.c.b16 %v820, %v818
      %v919 = vpack.c.b16 %v821, %v819
      %v920 = vpack.c.b16 %v824, %v822
      %v921 = vpack.c.b16 %v825, %v823
      %v922 = vpack.c.b16 %v828, %v826
      %v923 = vpack.c.b16 %v829, %v827
      %v924 = vpack.c.b16 %v832, %v830
      %v925 = vpack.c.b16 %v833, %v831
      %v926 = vpack.c.b16 %v836, %v834
      %v927 = vpack.c.b16 %v837, %v835
      %v928 = vpack.c.b16 %v840, %v838
      %v929 = vpack.c.b16 %v841, %v839
      %v930 = vpack.c.b16 %v844, %v842
      %v931 = vpack.c.b16 %v845, %v843
      %v932 = vpack.c.b16 %v848, %v846
      %v933 = vpack.c.b16 %v849, %v847
      %v934 = vpack.c.b16 %v852, %v850
      %v935 = vpack.c.b16 %v853, %v851
      %v936 = vpack.c.b16 %v856, %v854
      %v937 = vpack.c.b16 %v857, %v855
      %v938 = vpack.c.b16 %v860, %v858
      %v939 = vpack.c.b16 %v861, %v859
      %v940 = vpack.c.b16 %v864, %v862
      %v941 = vpack.c.b16 %v865, %v863
      %v942 = vpack.c.b16 %v868, %v866
      %v943 = vpack.c.b16 %v869, %v867
      %v944 = vpack.c.b16 %v872, %v870
      %v945 = vpack.c.b16 %v873, %v871
      %v946 = vpack.c.b16 %v876, %v874
      %v947 = vpack.c.b16 %v877, %v875
      %v948 = vpack.c.b16 %v880, %v878
      %v949 = vpack.c.b16 %v881, %v879
      %v950 = vpack.c.b16 %v884, %v882
      %v951 = vpack.c.b16 %v885, %v883
      %v952 = vpack.c.b16 %v888, %v886
      %v953 = vpack.c.b16 %v889, %v887
      %1018 = vmatprep.subr.bf16.mxu0 %v891
      %1019 = vmatpush1.bf16.msra.mxu0 %v890
      %1020 = vmatprep.subr.bf16.mxu0 %v893
      %1021 = vmatpush1.bf16.msra.mxu0 %v892
      %1022 = vmatprep.subr.bf16.mxu0 %v895
      %1023 = vmatpush1.bf16.msra.mxu0 %v894
      %1024 = vmatprep.subr.bf16.mxu0 %v897
      %1025 = vmatpush1.bf16.msra.mxu0 %v896
      %1026 = vmatprep.subr.bf16.mxu0 %v899
      %1027 = vmatpush1.bf16.msra.mxu0 %v898
      %1028 = vmatprep.subr.bf16.mxu0 %v901
      %1029 = vmatpush1.bf16.msra.mxu0 %v900
      %1030 = vmatprep.subr.bf16.mxu0 %v903
      %1031 = vmatpush1.bf16.msra.mxu0 %v902
      %1032 = vmatprep.subr.bf16.mxu0 %v905
      %1033 = vmatpush1.bf16.msra.mxu0 %v904
      %1034 = vmatprep.subr.bf16.mxu0 %v907
      %1035 = vmatpush1.bf16.msra.mxu0 %v906
      %1036 = vmatprep.subr.bf16.mxu0 %v909
      %1037 = vmatpush1.bf16.msra.mxu0 %v908
      %1038 = vmatprep.subr.bf16.mxu0 %v911
      %1039 = vmatpush1.bf16.msra.mxu0 %v910
      %1040 = vmatprep.subr.bf16.mxu0 %v913
      %1041 = vmatpush1.bf16.msra.mxu0 %v912
      %1042 = vmatprep.subr.bf16.mxu0 %v915
      %1043 = vmatpush1.bf16.msra.mxu0 %v914
      %1044 = vmatprep.subr.bf16.mxu0 %v917
      %1045 = vmatpush1.bf16.msra.mxu0 %v916
      %1046 = vmatprep.subr.bf16.mxu0 %v919
      %1047 = vmatpush1.bf16.msra.mxu0 %v918
      %1048 = vmatprep.subr.bf16.mxu0 %v921
      %1049 = vmatpush1.bf16.msra.mxu0 %v920
      %1050 = vmatprep.mubr.bf16.mxu0 %v607
      %1051 = vmatmul.mubr.bf16.gmra.mrb[0].mxu0 %v606
      %v1052 = vpop.f32.mrb[0].mxu0
      %v1053 = vadd.f32 %v691, %v1052
      %v1054 = vpop.f32.mrb[0].mxu0
      %v1055 = vadd.f32 %v695, %v1054
      %v1056 = vpop.f32.mrb[0].mxu0
      %v1057 = vadd.f32 %v691, %v1056
      %v1058 = vpop.f32.mrb[0].mxu0
      %v1059 = vadd.f32 %v695, %v1058
      %1060 = vmatprep.mubr.bf16.mxu0 %v611
      %1061 = vmatmul.mubr.bf16.gmra.mrb[0].mxu0 %v610
      %v1062 = vpop.f32.mrb[0].mxu0
      %v1063 = vadd.f32 %v691, %v1062
      %v1064 = vpop.f32.mrb[0].mxu0
      %v1065 = vadd.f32 %v695, %v1064
      %v1066 = vpop.f32.mrb[0].mxu0
      %v1067 = vadd.f32 %v691, %v1066
      %v1068 = vpop.f32.mrb[0].mxu0
      %v1069 = vadd.f32 %v695, %v1068
      %1070 = vmatprep.mubr.bf16.mxu0 %v615
      %1071 = vmatmul.mubr.bf16.gmra.mrb[0].mxu0 %v614
      %v1072 = vpop.f32.mrb[0].mxu0
      %v1073 = vadd.f32 %v691, %v1072
      %v1074 = vpop.f32.mrb[0].mxu0
      %v1075 = vadd.f32 %v695, %v1074
      %v1076 = vpop.f32.mrb[0].mxu0
      %v1077 = vadd.f32 %v691, %v1076
      %v1078 = vpop.f32.mrb[0].mxu0
      %v1079 = vadd.f32 %v695, %v1078
      %1080 = vmatprep.mubr.bf16.mxu0 %v619
      %1081 = vmatmul.mubr.bf16.gmra.mrb[0].mxu0 %v618
      %v1082 = vpop.f32.mrb[0].mxu0
      %v1083 = vadd.f32 %v691, %v1082
      %v1084 = vpop.f32.mrb[0].mxu0
      %v1085 = vadd.f32 %v695, %v1084
      %v1086 = vpop.f32.mrb[0].mxu0
      %v1087 = vadd.f32 %v691, %v1086
      %v1088 = vpop.f32.mrb[0].mxu0
      %v1089 = vadd.f32 %v695, %v1088
      %1090 = vdwg.mxu0
      %1091 = vmatprep.subr.bf16.mxu0 %v923
      %1092 = vmatpush1.bf16.msra.mxu0 %v922
      %1093 = vmatprep.subr.bf16.mxu0 %v925
      %1094 = vmatpush1.bf16.msra.mxu0 %v924
      %1095 = vmatprep.subr.bf16.mxu0 %v927
      %1096 = vmatpush1.bf16.msra.mxu0 %v926
      %1097 = vmatprep.subr.bf16.mxu0 %v929
      %1098 = vmatpush1.bf16.msra.mxu0 %v928
      %1099 = vmatprep.subr.bf16.mxu0 %v931
      %1100 = vmatpush1.bf16.msra.mxu0 %v930
      %1101 = vmatprep.subr.bf16.mxu0 %v933
      %1102 = vmatpush1.bf16.msra.mxu0 %v932
      %1103 = vmatprep.subr.bf16.mxu0 %v935
      %1104 = vmatpush1.bf16.msra.mxu0 %v934
      %1105 = vmatprep.subr.bf16.mxu0 %v937
      %1106 = vmatpush1.bf16.msra.mxu0 %v936
      %1107 = vmatprep.subr.bf16.mxu0 %v939
      %1108 = vmatpush1.bf16.msra.mxu0 %v938
      %1109 = vmatprep.subr.bf16.mxu0 %v941
      %1110 = vmatpush1.bf16.msra.mxu0 %v940
      %1111 = vmatprep.subr.bf16.mxu0 %v943
      %1112 = vmatpush1.bf16.msra.mxu0 %v942
      %1113 = vmatprep.subr.bf16.mxu0 %v945
      %1114 = vmatpush1.bf16.msra.mxu0 %v944
      %1115 = vmatprep.subr.bf16.mxu0 %v947
      %1116 = vmatpush1.bf16.msra.mxu0 %v946
      %1117 = vmatprep.subr.bf16.mxu0 %v949
      %1118 = vmatpush1.bf16.msra.mxu0 %v948
      %1119 = vmatprep.subr.bf16.mxu0 %v951
      %1120 = vmatpush1.bf16.msra.mxu0 %v950
      %1121 = vmatprep.subr.bf16.mxu0 %v953
      %1122 = vmatpush1.bf16.msra.mxu0 %v952
      %1123 = vmatprep.mubr.bf16.mxu0 %v609
      %1124 = vmatmul.mubr.bf16.gmra.mrb[0].mxu0 %v608
      %v1125 = vpop.f32.mrb[0].mxu0
      %v1126 = vadd.f32 %v1053, %v1125
      %v1127 = vpop.f32.mrb[0].mxu0
      %v1128 = vadd.f32 %v1055, %v1127
      %v1129 = vpop.f32.mrb[0].mxu0
      %v1130 = vadd.f32 %v1057, %v1129
      %v1131 = vpop.f32.mrb[0].mxu0
      %v1132 = vadd.f32 %v1059, %v1131
      %1133 = vmatprep.mubr.bf16.mxu0 %v613
      %1134 = vmatmul.mubr.bf16.gmra.mrb[0].mxu0 %v612
      %v1135 = vpop.f32.mrb[0].mxu0
      %v1136 = vadd.f32 %v1063, %v1135
      %v1137 = vpop.f32.mrb[0].mxu0
      %v1138 = vadd.f32 %v1065, %v1137
      %v1139 = vpop.f32.mrb[0].mxu0
      %v1140 = vadd.f32 %v1067, %v1139
      %v1141 = vpop.f32.mrb[0].mxu0
      %v1142 = vadd.f32 %v1069, %v1141
      %1143 = vmatprep.mubr.bf16.mxu0 %v617
      %1144 = vmatmul.mubr.bf16.gmra.mrb[0].mxu0 %v616
      %v1145 = vpop.f32.mrb[0].mxu0
      %v1146 = vadd.f32 %v1073, %v1145
      %v1147 = vpop.f32.mrb[0].mxu0
      %v1148 = vadd.f32 %v1075, %v1147
      %v1149 = vpop.f32.mrb[0].mxu0
      %v1150 = vadd.f32 %v1077, %v1149
      %v1151 = vpop.f32.mrb[0].mxu0
      %v1152 = vadd.f32 %v1079, %v1151
      %1153 = vmatprep.mubr.bf16.mxu0 %v621
      %1154 = vmatmul.mubr.bf16.gmra.mrb[0].mxu0 %v620
      %v1155 = vpop.f32.mrb[0].mxu0
      %v1156 = vadd.f32 %v1083, %v1155
      %v1157 = vpop.f32.mrb[0].mxu0
      %v1158 = vadd.f32 %v1085, %v1157
      %v1159 = vpop.f32.mrb[0].mxu0
      %v1160 = vadd.f32 %v1087, %v1159
      %v1161 = vpop.f32.mrb[0].mxu0
      %v1162 = vadd.f32 %v1089, %v1161
      %1163 = vdwg.mxu0
      %v1164 = vmax.f32 %v1126, 0.0
      %v1165 = vmax.f32 %v1128, 0.0
      %v1166 = vmax.f32 %v1130, 0.0
      %v1167 = vmax.f32 %v1132, 0.0
      %v1168 = vmax.f32 %v1136, 0.0
      %v1169 = vmax.f32 %v1138, 0.0
      %v1170 = vmax.f32 %v1140, 0.0
      %v1171 = vmax.f32 %v1142, 0.0
      %v1172 = vmax.f32 %v1146, 0.0
      %v1173 = vmax.f32 %v1148, 0.0
      %v1174 = vmax.f32 %v1150, 0.0
      %v1175 = vmax.f32 %v1152, 0.0
      %v1176 = vmax.f32 %v1156, 0.0
      %v1177 = vmax.f32 %v1158, 0.0
      %v1178 = vmax.f32 %v1160, 0.0
      %v1179 = vmax.f32 %v1162, 0.0
      %v1180 = vpack.c.bf16 %v1166, %v1164
      %v1181 = vpack.c.bf16 %v1167, %v1165
      %v1182 = vpack.c.bf16 %v1170, %v1168
      %v1183 = vpack.c.bf16 %v1171, %v1169
      %v1184 = vpack.c.bf16 %v1174, %v1172
      %v1185 = vpack.c.bf16 %v1175, %v1173
      %v1186 = vpack.c.bf16 %v1178, %v1176
      %v1187 = vpack.c.bf16 %v1179, %v1177
      %v1188 = vld [vmem:[%s5] sm:$0xff]
      %v1189 = vld [vmem:[%s5 + $0x8] sm:$0xff]
      %v1190 = vld [vmem:[%s5 + $0x10] sm:$0xff]
      %v1191 = vld [vmem:[%s5 + $0x18] sm:$0xff]
      %v1192 = vld [vmem:[%s5 + $0x20] sm:$0xff]
      %v1193 = vld [vmem:[%s5 + $0x28] sm:$0xff]
      %v1194 = vld [vmem:[%s5 + $0x30] sm:$0xff]
      %v1195 = vld [vmem:[%s5 + $0x38] sm:$0xff]
      %v1196 = vld [vmem:[%s5 + $0x40] sm:$0xff]
      %v1197 = vld [vmem:[%s5 + $0x48] sm:$0xff]
      %v1198 = vld [vmem:[%s5 + $0x50] sm:$0xff]
      %v1199 = vld [vmem:[%s5 + $0x58] sm:$0xff]
      %v1200 = vld [vmem:[%s5 + $0x60] sm:$0xff]
      %v1201 = vld [vmem:[%s5 + $0x68] sm:$0xff]
      %v1202 = vld [vmem:[%s5 + $0x70] sm:$0xff]
      %v1203 = vld [vmem:[%s5 + $0x78] sm:$0xff]
      %v1204 = vld [vmem:[%s5 + $0x80] sm:$0xff]
      %v1205 = vld [vmem:[%s5 + $0x88] sm:$0xff]
      %v1206 = vld [vmem:[%s5 + $0x90] sm:$0xff]
      %v1207 = vld [vmem:[%s5 + $0x98] sm:$0xff]
      %v1208 = vld [vmem:[%s5 + $0xa0] sm:$0xff]
      %v1209 = vld [vmem:[%s5 + $0xa8] sm:$0xff]
      %v1210 = vld [vmem:[%s5 + $0xb0] sm:$0xff]
      %v1211 = vld [vmem:[%s5 + $0xb8] sm:$0xff]
      %v1212 = vld [vmem:[%s5 + $0xc0] sm:$0xff]
      %v1213 = vld [vmem:[%s5 + $0xc8] sm:$0xff]
      %v1214 = vld [vmem:[%s5 + $0xd0] sm:$0xff]
      %v1215 = vld [vmem:[%s5 + $0xd8] sm:$0xff]
      %v1216 = vld [vmem:[%s5 + $0xe0] sm:$0xff]
      %v1217 = vld [vmem:[%s5 + $0xe8] sm:$0xff]
      %v1218 = vld [vmem:[%s5 + $0xf0] sm:$0xff]
      %v1219 = vld [vmem:[%s5 + $0xf8] sm:$0xff]
      %v1220 = vld [vmem:[%s5 + $0x100] sm:$0xff]
      %v1221 = vld [vmem:[%s5 + $0x108] sm:$0xff]
      %v1222 = vld [vmem:[%s5 + $0x110] sm:$0xff]
      %v1223 = vld [vmem:[%s5 + $0x118] sm:$0xff]
      %v1224 = vld [vmem:[%s5 + $0x120] sm:$0xff]
      %v1225 = vld [vmem:[%s5 + $0x128] sm:$0xff]
      %v1226 = vld [vmem:[%s5 + $0x130] sm:$0xff]
      %v1227 = vld [vmem:[%s5 + $0x138] sm:$0xff]
      %v1228 = vld [vmem:[%s5 + $0x140] sm:$0xff]
      %v1229 = vld [vmem:[%s5 + $0x148] sm:$0xff]
      %v1230 = vld [vmem:[%s5 + $0x150] sm:$0xff]
      %v1231 = vld [vmem:[%s5 + $0x158] sm:$0xff]
      %v1232 = vld [vmem:[%s5 + $0x160] sm:$0xff]
      %v1233 = vld [vmem:[%s5 + $0x168] sm:$0xff]
      %v1234 = vld [vmem:[%s5 + $0x170] sm:$0xff]
      %v1235 = vld [vmem:[%s5 + $0x178] sm:$0xff]
      %v1236 = vld [vmem:[%s5 + $0x180] sm:$0xff]
      %v1237 = vld [vmem:[%s5 + $0x188] sm:$0xff]
      %v1238 = vld [vmem:[%s5 + $0x190] sm:$0xff]
      %v1239 = vld [vmem:[%s5 + $0x198] sm:$0xff]
      %v1240 = vld [vmem:[%s5 + $0x1a0] sm:$0xff]
      %v1241 = vld [vmem:[%s5 + $0x1a8] sm:$0xff]
      %v1242 = vld [vmem:[%s5 + $0x1b0] sm:$0xff]
      %v1243 = vld [vmem:[%s5 + $0x1b8] sm:$0xff]
      %v1244 = vld [vmem:[%s5 + $0x1c0] sm:$0xff]
      %v1245 = vld [vmem:[%s5 + $0x1c8] sm:$0xff]
      %v1246 = vld [vmem:[%s5 + $0x1d0] sm:$0xff]
      %v1247 = vld [vmem:[%s5 + $0x1d8] sm:$0xff]
      %v1248 = vld [vmem:[%s5 + $0x1e0] sm:$0xff]
      %v1249 = vld [vmem:[%s5 + $0x1e8] sm:$0xff]
      %v1250 = vld [vmem:[%s5 + $0x1f0] sm:$0xff]
      %v1251 = vld [vmem:[%s5 + $0x1f8] sm:$0xff]
      %v1252 = vld [vmem:[%s6] sm:$0xf]
      %v1254 = vlaneseq
      %v1255 = vshrl.u32 %v1254, 7
      %v1256 = vsub.s32 0, %v1255
      %v1257 = vrot.slane %v1252, %v1256
      %v1258 = vlaneseq
      %v1259 = vshrl.u32 %v1258, 7
      %v1260 = vsub.s32 1, %v1259
      %v1261 = vrot.slane %v1252, %v1260
      %v1262 = vlaneseq
      %v1263 = vshrl.u32 %v1262, 7
      %v1264 = vsub.s32 2, %v1263
      %v1265 = vrot.slane %v1252, %v1264
      %v1266 = vlaneseq
      %v1267 = vshrl.u32 %v1266, 7
      %v1268 = vsub.s32 3, %v1267
      %v1269 = vrot.slane %v1252, %v1268
      %v1338 = vunpack.c.l.b16 %v1188
      %v1339 = vunpack.c.h.b16 %v1188
      %v1340 = vunpack.c.l.b16 %v1189
      %v1341 = vunpack.c.h.b16 %v1189
      %v1342 = vunpack.c.l.b16 %v1190
      %v1343 = vunpack.c.h.b16 %v1190
      %v1344 = vunpack.c.l.b16 %v1191
      %v1345 = vunpack.c.h.b16 %v1191
      %v1346 = vunpack.c.l.b16 %v1192
      %v1347 = vunpack.c.h.b16 %v1192
      %v1348 = vunpack.c.l.b16 %v1193
      %v1349 = vunpack.c.h.b16 %v1193
      %v1350 = vunpack.c.l.b16 %v1194
      %v1351 = vunpack.c.h.b16 %v1194
      %v1352 = vunpack.c.l.b16 %v1195
      %v1353 = vunpack.c.h.b16 %v1195
      %v1354 = vunpack.c.l.b16 %v1196
      %v1355 = vunpack.c.h.b16 %v1196
      %v1356 = vunpack.c.l.b16 %v1197
      %v1357 = vunpack.c.h.b16 %v1197
      %v1358 = vunpack.c.l.b16 %v1198
      %v1359 = vunpack.c.h.b16 %v1198
      %v1360 = vunpack.c.l.b16 %v1199
      %v1361 = vunpack.c.h.b16 %v1199
      %v1362 = vunpack.c.l.b16 %v1200
      %v1363 = vunpack.c.h.b16 %v1200
      %v1364 = vunpack.c.l.b16 %v1201
      %v1365 = vunpack.c.h.b16 %v1201
      %v1366 = vunpack.c.l.b16 %v1202
      %v1367 = vunpack.c.h.b16 %v1202
      %v1368 = vunpack.c.l.b16 %v1203
      %v1369 = vunpack.c.h.b16 %v1203
      %v1370 = vunpack.c.l.b16 %v1204
      %v1371 = vunpack.c.h.b16 %v1204
      %v1372 = vunpack.c.l.b16 %v1205
      %v1373 = vunpack.c.h.b16 %v1205
      %v1374 = vunpack.c.l.b16 %v1206
      %v1375 = vunpack.c.h.b16 %v1206
      %v1376 = vunpack.c.l.b16 %v1207
      %v1377 = vunpack.c.h.b16 %v1207
      %v1378 = vunpack.c.l.b16 %v1208
      %v1379 = vunpack.c.h.b16 %v1208
      %v1380 = vunpack.c.l.b16 %v1209
      %v1381 = vunpack.c.h.b16 %v1209
      %v1382 = vunpack.c.l.b16 %v1210
      %v1383 = vunpack.c.h.b16 %v1210
      %v1384 = vunpack.c.l.b16 %v1211
      %v1385 = vunpack.c.h.b16 %v1211
      %v1386 = vunpack.c.l.b16 %v1212
      %v1387 = vunpack.c.h.b16 %v1212
      %v1388 = vunpack.c.l.b16 %v1213
      %v1389 = vunpack.c.h.b16 %v1213
      %v1390 = vunpack.c.l.b16 %v1214
      %v1391 = vunpack.c.h.b16 %v1214
      %v1392 = vunpack.c.l.b16 %v1215
      %v1393 = vunpack.c.h.b16 %v1215
      %v1394 = vunpack.c.l.b16 %v1216
      %v1395 = vunpack.c.h.b16 %v1216
      %v1396 = vunpack.c.l.b16 %v1217
      %v1397 = vunpack.c.h.b16 %v1217
      %v1398 = vunpack.c.l.b16 %v1218
      %v1399 = vunpack.c.h.b16 %v1218
      %v1400 = vunpack.c.l.b16 %v1219
      %v1401 = vunpack.c.h.b16 %v1219
      %v1402 = vunpack.c.l.b16 %v1220
      %v1403 = vunpack.c.h.b16 %v1220
      %v1404 = vunpack.c.l.b16 %v1221
      %v1405 = vunpack.c.h.b16 %v1221
      %v1406 = vunpack.c.l.b16 %v1222
      %v1407 = vunpack.c.h.b16 %v1222
      %v1408 = vunpack.c.l.b16 %v1223
      %v1409 = vunpack.c.h.b16 %v1223
      %v1410 = vunpack.c.l.b16 %v1224
      %v1411 = vunpack.c.h.b16 %v1224
      %v1412 = vunpack.c.l.b16 %v1225
      %v1413 = vunpack.c.h.b16 %v1225
      %v1414 = vunpack.c.l.b16 %v1226
      %v1415 = vunpack.c.h.b16 %v1226
      %v1416 = vunpack.c.l.b16 %v1227
      %v1417 = vunpack.c.h.b16 %v1227
      %v1418 = vunpack.c.l.b16 %v1228
      %v1419 = vunpack.c.h.b16 %v1228
      %v1420 = vunpack.c.l.b16 %v1229
      %v1421 = vunpack.c.h.b16 %v1229
      %v1422 = vunpack.c.l.b16 %v1230
      %v1423 = vunpack.c.h.b16 %v1230
      %v1424 = vunpack.c.l.b16 %v1231
      %v1425 = vunpack.c.h.b16 %v1231
      %v1426 = vunpack.c.l.b16 %v1232
      %v1427 = vunpack.c.h.b16 %v1232
      %v1428 = vunpack.c.l.b16 %v1233
      %v1429 = vunpack.c.h.b16 %v1233
      %v1430 = vunpack.c.l.b16 %v1234
      %v1431 = vunpack.c.h.b16 %v1234
      %v1432 = vunpack.c.l.b16 %v1235
      %v1433 = vunpack.c.h.b16 %v1235
      %v1434 = vunpack.c.l.b16 %v1236
      %v1435 = vunpack.c.h.b16 %v1236
      %v1436 = vunpack.c.l.b16 %v1237
      %v1437 = vunpack.c.h.b16 %v1237
      %v1438 = vunpack.c.l.b16 %v1238
      %v1439 = vunpack.c.h.b16 %v1238
      %v1440 = vunpack.c.l.b16 %v1239
      %v1441 = vunpack.c.h.b16 %v1239
      %v1442 = vunpack.c.l.b16 %v1240
      %v1443 = vunpack.c.h.b16 %v1240
      %v1444 = vunpack.c.l.b16 %v1241
      %v1445 = vunpack.c.h.b16 %v1241
      %v1446 = vunpack.c.l.b16 %v1242
      %v1447 = vunpack.c.h.b16 %v1242
      %v1448 = vunpack.c.l.b16 %v1243
      %v1449 = vunpack.c.h.b16 %v1243
      %v1450 = vunpack.c.l.b16 %v1244
      %v1451 = vunpack.c.h.b16 %v1244
      %v1452 = vunpack.c.l.b16 %v1245
      %v1453 = vunpack.c.h.b16 %v1245
      %v1454 = vunpack.c.l.b16 %v1246
      %v1455 = vunpack.c.h.b16 %v1246
      %v1456 = vunpack.c.l.b16 %v1247
      %v1457 = vunpack.c.h.b16 %v1247
      %v1458 = vunpack.c.l.b16 %v1248
      %v1459 = vunpack.c.h.b16 %v1248
      %v1460 = vunpack.c.l.b16 %v1249
      %v1461 = vunpack.c.h.b16 %v1249
      %v1462 = vunpack.c.l.b16 %v1250
      %v1463 = vunpack.c.h.b16 %v1250
      %v1464 = vunpack.c.l.b16 %v1251
      %v1465 = vunpack.c.h.b16 %v1251
      %v1466 = vpack.c.b16 %v1342, %v1338
      %v1467 = vpack.c.b16 %v1343, %v1339
      %v1468 = vpack.c.b16 %v1344, %v1340
      %v1469 = vpack.c.b16 %v1345, %v1341
      %v1470 = vpack.c.b16 %v1350, %v1346
      %v1471 = vpack.c.b16 %v1351, %v1347
      %v1472 = vpack.c.b16 %v1352, %v1348
      %v1473 = vpack.c.b16 %v1353, %v1349
      %v1474 = vpack.c.b16 %v1358, %v1354
      %v1475 = vpack.c.b16 %v1359, %v1355
      %v1476 = vpack.c.b16 %v1360, %v1356
      %v1477 = vpack.c.b16 %v1361, %v1357
      %v1478 = vpack.c.b16 %v1366, %v1362
      %v1479 = vpack.c.b16 %v1367, %v1363
      %v1480 = vpack.c.b16 %v1368, %v1364
      %v1481 = vpack.c.b16 %v1369, %v1365
      %v1482 = vpack.c.b16 %v1374, %v1370
      %v1483 = vpack.c.b16 %v1375, %v1371
      %v1484 = vpack.c.b16 %v1376, %v1372
      %v1485 = vpack.c.b16 %v1377, %v1373
      %v1486 = vpack.c.b16 %v1382, %v1378
      %v1487 = vpack.c.b16 %v1383, %v1379
      %v1488 = vpack.c.b16 %v1384, %v1380
      %v1489 = vpack.c.b16 %v1385, %v1381
      %v1490 = vpack.c.b16 %v1390, %v1386
      %v1491 = vpack.c.b16 %v1391, %v1387
      %v1492 = vpack.c.b16 %v1392, %v1388
      %v1493 = vpack.c.b16 %v1393, %v1389
      %v1494 = vpack.c.b16 %v1398, %v1394
      %v1495 = vpack.c.b16 %v1399, %v1395
      %v1496 = vpack.c.b16 %v1400, %v1396
      %v1497 = vpack.c.b16 %v1401, %v1397
      %v1498 = vpack.c.b16 %v1406, %v1402
      %v1499 = vpack.c.b16 %v1407, %v1403
      %v1500 = vpack.c.b16 %v1408, %v1404
      %v1501 = vpack.c.b16 %v1409, %v1405
      %v1502 = vpack.c.b16 %v1414, %v1410
      %v1503 = vpack.c.b16 %v1415, %v1411
      %v1504 = vpack.c.b16 %v1416, %v1412
      %v1505 = vpack.c.b16 %v1417, %v1413
      %v1506 = vpack.c.b16 %v1422, %v1418
      %v1507 = vpack.c.b16 %v1423, %v1419
      %v1508 = vpack.c.b16 %v1424, %v1420
      %v1509 = vpack.c.b16 %v1425, %v1421
      %v1510 = vpack.c.b16 %v1430, %v1426
      %v1511 = vpack.c.b16 %v1431, %v1427
      %v1512 = vpack.c.b16 %v1432, %v1428
      %v1513 = vpack.c.b16 %v1433, %v1429
      %v1514 = vpack.c.b16 %v1438, %v1434
      %v1515 = vpack.c.b16 %v1439, %v1435
      %v1516 = vpack.c.b16 %v1440, %v1436
      %v1517 = vpack.c.b16 %v1441, %v1437
      %v1518 = vpack.c.b16 %v1446, %v1442
      %v1519 = vpack.c.b16 %v1447, %v1443
      %v1520 = vpack.c.b16 %v1448, %v1444
      %v1521 = vpack.c.b16 %v1449, %v1445
      %v1522 = vpack.c.b16 %v1454, %v1450
      %v1523 = vpack.c.b16 %v1455, %v1451
      %v1524 = vpack.c.b16 %v1456, %v1452
      %v1525 = vpack.c.b16 %v1457, %v1453
      %v1526 = vpack.c.b16 %v1462, %v1458
      %v1527 = vpack.c.b16 %v1463, %v1459
      %v1528 = vpack.c.b16 %v1464, %v1460
      %v1529 = vpack.c.b16 %v1465, %v1461
      %1594 = vmatprep.subr.bf16.mxu0 %v1467
      %1595 = vmatpush1.bf16.msra.mxu0 %v1466
      %1596 = vmatprep.subr.bf16.mxu0 %v1471
      %1597 = vmatpush1.bf16.msra.mxu0 %v1470
      %1598 = vmatprep.subr.bf16.mxu0 %v1475
      %1599 = vmatpush1.bf16.msra.mxu0 %v1474
      %1600 = vmatprep.subr.bf16.mxu0 %v1479
      %1601 = vmatpush1.bf16.msra.mxu0 %v1478
      %1602 = vmatprep.subr.bf16.mxu0 %v1483
      %1603 = vmatpush1.bf16.msra.mxu0 %v1482
      %1604 = vmatprep.subr.bf16.mxu0 %v1487
      %1605 = vmatpush1.bf16.msra.mxu0 %v1486
      %1606 = vmatprep.subr.bf16.mxu0 %v1491
      %1607 = vmatpush1.bf16.msra.mxu0 %v1490
      %1608 = vmatprep.subr.bf16.mxu0 %v1495
      %1609 = vmatpush1.bf16.msra.mxu0 %v1494
      %1610 = vmatprep.subr.bf16.mxu0 %v1499
      %1611 = vmatpush1.bf16.msra.mxu0 %v1498
      %1612 = vmatprep.subr.bf16.mxu0 %v1503
      %1613 = vmatpush1.bf16.msra.mxu0 %v1502
      %1614 = vmatprep.subr.bf16.mxu0 %v1507
      %1615 = vmatpush1.bf16.msra.mxu0 %v1506
      %1616 = vmatprep.subr.bf16.mxu0 %v1511
      %1617 = vmatpush1.bf16.msra.mxu0 %v1510
      %1618 = vmatprep.subr.bf16.mxu0 %v1515
      %1619 = vmatpush1.bf16.msra.mxu0 %v1514
      %1620 = vmatprep.subr.bf16.mxu0 %v1519
      %1621 = vmatpush1.bf16.msra.mxu0 %v1518
      %1622 = vmatprep.subr.bf16.mxu0 %v1523
      %1623 = vmatpush1.bf16.msra.mxu0 %v1522
      %1624 = vmatprep.subr.bf16.mxu0 %v1527
      %1625 = vmatpush1.bf16.msra.mxu0 %v1526
      %1626 = vmatprep.mubr.bf16.mxu0 %v1181
      %1627 = vmatmul.mubr.bf16.gmra.mrb[0].mxu0 %v1180
      %v1628 = vpop.f32.mrb[0].mxu0
      %v1629 = vadd.f32 %v1257, %v1628
      %v1630 = vpop.f32.mrb[0].mxu0
      %v1631 = vadd.f32 %v1261, %v1630
      %v1632 = vpop.f32.mrb[0].mxu0
      %v1633 = vadd.f32 %v1257, %v1632
      %v1634 = vpop.f32.mrb[0].mxu0
      %v1635 = vadd.f32 %v1261, %v1634
      %1636 = vmatprep.mubr.bf16.mxu0 %v1183
      %1637 = vmatmul.mubr.bf16.gmra.mrb[0].mxu0 %v1182
      %v1638 = vpop.f32.mrb[0].mxu0
      %v1639 = vadd.f32 %v1257, %v1638
      %v1640 = vpop.f32.mrb[0].mxu0
      %v1641 = vadd.f32 %v1261, %v1640
      %v1642 = vpop.f32.mrb[0].mxu0
      %v1643 = vadd.f32 %v1257, %v1642
      %v1644 = vpop.f32.mrb[0].mxu0
      %v1645 = vadd.f32 %v1261, %v1644
      %1646 = vmatprep.mubr.bf16.mxu0 %v1185
      %1647 = vmatmul.mubr.bf16.gmra.mrb[0].mxu0 %v1184
      %v1648 = vpop.f32.mrb[0].mxu0
      %v1649 = vadd.f32 %v1257, %v1648
      %v1650 = vpop.f32.mrb[0].mxu0
      %v1651 = vadd.f32 %v1261, %v1650
      %v1652 = vpop.f32.mrb[0].mxu0
      %v1653 = vadd.f32 %v1257, %v1652
      %v1654 = vpop.f32.mrb[0].mxu0
      %v1655 = vadd.f32 %v1261, %v1654
      %1656 = vmatprep.mubr.bf16.mxu0 %v1187
      %1657 = vmatmul.mubr.bf16.gmra.mrb[0].mxu0 %v1186
      %v1658 = vpop.f32.mrb[0].mxu0
      %v1659 = vadd.f32 %v1257, %v1658
      %v1660 = vpop.f32.mrb[0].mxu0
      %v1661 = vadd.f32 %v1261, %v1660
      %v1662 = vpop.f32.mrb[0].mxu0
      %v1663 = vadd.f32 %v1257, %v1662
      %v1664 = vpop.f32.mrb[0].mxu0
      %v1665 = vadd.f32 %v1261, %v1664
      %1666 = vdwg.mxu0
      %1667 = vmatprep.subr.bf16.mxu0 %v1469
      %1668 = vmatpush1.bf16.msra.mxu0 %v1468
      %1669 = vmatprep.subr.bf16.mxu0 %v1473
      %1670 = vmatpush1.bf16.msra.mxu0 %v1472
      %1671 = vmatprep.subr.bf16.mxu0 %v1477
      %1672 = vmatpush1.bf16.msra.mxu0 %v1476
      %1673 = vmatprep.subr.bf16.mxu0 %v1481
      %1674 = vmatpush1.bf16.msra.mxu0 %v1480
      %1675 = vmatprep.subr.bf16.mxu0 %v1485
      %1676 = vmatpush1.bf16.msra.mxu0 %v1484
      %1677 = vmatprep.subr.bf16.mxu0 %v1489
      %1678 = vmatpush1.bf16.msra.mxu0 %v1488
      %1679 = vmatprep.subr.bf16.mxu0 %v1493
      %1680 = vmatpush1.bf16.msra.mxu0 %v1492
      %1681 = vmatprep.subr.bf16.mxu0 %v1497
      %1682 = vmatpush1.bf16.msra.mxu0 %v1496
      %1683 = vmatprep.subr.bf16.mxu0 %v1501
      %1684 = vmatpush1.bf16.msra.mxu0 %v1500
      %1685 = vmatprep.subr.bf16.mxu0 %v1505
      %1686 = vmatpush1.bf16.msra.mxu0 %v1504
      %1687 = vmatprep.subr.bf16.mxu0 %v1509
      %1688 = vmatpush1.bf16.msra.mxu0 %v1508
      %1689 = vmatprep.subr.bf16.mxu0 %v1513
      %1690 = vmatpush1.bf16.msra.mxu0 %v1512
      %1691 = vmatprep.subr.bf16.mxu0 %v1517
      %1692 = vmatpush1.bf16.msra.mxu0 %v1516
      %1693 = vmatprep.subr.bf16.mxu0 %v1521
      %1694 = vmatpush1.bf16.msra.mxu0 %v1520
      %1695 = vmatprep.subr.bf16.mxu0 %v1525
      %1696 = vmatpush1.bf16.msra.mxu0 %v1524
      %1697 = vmatprep.subr.bf16.mxu0 %v1529
      %1698 = vmatpush1.bf16.msra.mxu0 %v1528
      %1699 = vmatprep.mubr.bf16.mxu0 %v1181
      %1700 = vmatmul.mubr.bf16.gmra.mrb[0].mxu0 %v1180
      %v1701 = vpop.f32.mrb[0].mxu0
      %v1702 = vadd.f32 %v1265, %v1701
      %v1703 = vpop.f32.mrb[0].mxu0
      %v1704 = vadd.f32 %v1269, %v1703
      %v1705 = vpop.f32.mrb[0].mxu0
      %v1706 = vadd.f32 %v1265, %v1705
      %v1707 = vpop.f32.mrb[0].mxu0
      %v1708 = vadd.f32 %v1269, %v1707
      %1709 = vmatprep.mubr.bf16.mxu0 %v1183
      %1710 = vmatmul.mubr.bf16.gmra.mrb[0].mxu0 %v1182
      %v1711 = vpop.f32.mrb[0].mxu0
      %v1712 = vadd.f32 %v1265, %v1711
      %v1713 = vpop.f32.mrb[0].mxu0
      %v1714 = vadd.f32 %v1269, %v1713
      %v1715 = vpop.f32.mrb[0].mxu0
      %v1716 = vadd.f32 %v1265, %v1715
      %v1717 = vpop.f32.mrb[0].mxu0
      %v1718 = vadd.f32 %v1269, %v1717
      %1719 = vmatprep.mubr.bf16.mxu0 %v1185
      %1720 = vmatmul.mubr.bf16.gmra.mrb[0].mxu0 %v1184
      %v1721 = vpop.f32.mrb[0].mxu0
      %v1722 = vadd.f32 %v1265, %v1721
      %v1723 = vpop.f32.mrb[0].mxu0
      %v1724 = vadd.f32 %v1269, %v1723
      %v1725 = vpop.f32.mrb[0].mxu0
      %v1726 = vadd.f32 %v1265, %v1725
      %v1727 = vpop.f32.mrb[0].mxu0
      %v1728 = vadd.f32 %v1269, %v1727
      %1729 = vmatprep.mubr.bf16.mxu0 %v1187
      %1730 = vmatmul.mubr.bf16.gmra.mrb[0].mxu0 %v1186
      %v1731 = vpop.f32.mrb[0].mxu0
      %v1732 = vadd.f32 %v1265, %v1731
      %v1733 = vpop.f32.mrb[0].mxu0
      %v1734 = vadd.f32 %v1269, %v1733
      %v1735 = vpop.f32.mrb[0].mxu0
      %v1736 = vadd.f32 %v1265, %v1735
      %v1737 = vpop.f32.mrb[0].mxu0
      %v1738 = vadd.f32 %v1269, %v1737
      %1739 = vdwg.mxu0
      %v1740 = vpack.c.bf16 %v1633, %v1629
      %v1741 = vpack.c.bf16 %v1635, %v1631
      %v1742 = vpack.c.bf16 %v1706, %v1702
      %v1743 = vpack.c.bf16 %v1708, %v1704
      %v1744 = vpack.c.bf16 %v1643, %v1639
      %v1745 = vpack.c.bf16 %v1645, %v1641
      %v1746 = vpack.c.bf16 %v1716, %v1712
      %v1747 = vpack.c.bf16 %v1718, %v1714
      %v1748 = vpack.c.bf16 %v1653, %v1649
      %v1749 = vpack.c.bf16 %v1655, %v1651
      %v1750 = vpack.c.bf16 %v1726, %v1722
      %v1751 = vpack.c.bf16 %v1728, %v1724
      %v1752 = vpack.c.bf16 %v1663, %v1659
      %v1753 = vpack.c.bf16 %v1665, %v1661
      %v1754 = vpack.c.bf16 %v1736, %v1732
      %v1755 = vpack.c.bf16 %v1738, %v1734
      %v1772 = vunpack.c.l.b16 %v1740
      %v1773 = vunpack.c.l.b16 %v1741
      %v1774 = vunpack.c.l.b16 %v1742
      %v1775 = vunpack.c.l.b16 %v1743
      %v1776 = vunpack.c.h.b16 %v1740
      %v1777 = vunpack.c.h.b16 %v1741
      %v1778 = vunpack.c.h.b16 %v1742
      %v1779 = vunpack.c.h.b16 %v1743
      %v1780 = vunpack.c.l.b16 %v1744
      %v1781 = vunpack.c.l.b16 %v1745
      %v1782 = vunpack.c.l.b16 %v1746
      %v1783 = vunpack.c.l.b16 %v1747
      %v1784 = vunpack.c.h.b16 %v1744
      %v1785 = vunpack.c.h.b16 %v1745
      %v1786 = vunpack.c.h.b16 %v1746
      %v1787 = vunpack.c.h.b16 %v1747
      %v1788 = vunpack.c.l.b16 %v1748
      %v1789 = vunpack.c.l.b16 %v1749
      %v1790 = vunpack.c.l.b16 %v1750
      %v1791 = vunpack.c.l.b16 %v1751
      %v1792 = vunpack.c.h.b16 %v1748
      %v1793 = vunpack.c.h.b16 %v1749
      %v1794 = vunpack.c.h.b16 %v1750
      %v1795 = vunpack.c.h.b16 %v1751
      %v1796 = vunpack.c.l.b16 %v1752
      %v1797 = vunpack.c.l.b16 %v1753
      %v1798 = vunpack.c.l.b16 %v1754
      %v1799 = vunpack.c.l.b16 %v1755
      %v1800 = vunpack.c.h.b16 %v1752
      %v1801 = vunpack.c.h.b16 %v1753
      %v1802 = vunpack.c.h.b16 %v1754
      %v1803 = vunpack.c.h.b16 %v1755
      %v1804 = vpack.c.b16 %v1773, %v1772
      %v1805 = vpack.c.b16 %v1775, %v1774
      %v1806 = vpack.c.b16 %v1777, %v1776
      %v1807 = vpack.c.b16 %v1779, %v1778
      %v1808 = vpack.c.b16 %v1781, %v1780
      %v1809 = vpack.c.b16 %v1783, %v1782
      %v1810 = vpack.c.b16 %v1785, %v1784
      %v1811 = vpack.c.b16 %v1787, %v1786
      %v1812 = vpack.c.b16 %v1789, %v1788
      %v1813 = vpack.c.b16 %v1791, %v1790
      %v1814 = vpack.c.b16 %v1793, %v1792
      %v1815 = vpack.c.b16 %v1795, %v1794
      %v1816 = vpack.c.b16 %v1797, %v1796
      %v1817 = vpack.c.b16 %v1799, %v1798
      %v1818 = vpack.c.b16 %v1801, %v1800
      %v1819 = vpack.c.b16 %v1803, %v1802
      %1836 = vst [vmem:[%s282] sm:$0xff] %v1804
      %1837 = vst [vmem:[%s282 + $0x8] sm:$0xff] %v1805
      %1838 = vst [vmem:[%s282 + $0x10] sm:$0xff] %v1806
      %1839 = vst [vmem:[%s282 + $0x18] sm:$0xff] %v1807
      %1840 = vst [vmem:[%s282 + $0x20] sm:$0xff] %v1808
      %1841 = vst [vmem:[%s282 + $0x28] sm:$0xff] %v1809
      %1842 = vst [vmem:[%s282 + $0x30] sm:$0xff] %v1810
      %1843 = vst [vmem:[%s282 + $0x38] sm:$0xff] %v1811
      %1844 = vst [vmem:[%s282 + $0x40] sm:$0xff] %v1812
      %1845 = vst [vmem:[%s282 + $0x48] sm:$0xff] %v1813
      %1846 = vst [vmem:[%s282 + $0x50] sm:$0xff] %v1814
      %1847 = vst [vmem:[%s282 + $0x58] sm:$0xff] %v1815
      %1848 = vst [vmem:[%s282 + $0x60] sm:$0xff] %v1816
      %1849 = vst [vmem:[%s282 + $0x68] sm:$0xff] %v1817
      %1850 = vst [vmem:[%s282 + $0x70] sm:$0xff] %v1818
      %1851 = vst [vmem:[%s282 + $0x78] sm:$0xff] %v1819
      %s1852 = smul.u32 8, %s18
      %p1853 = scmp.lt.s32.totalorder %s1852, 31
      %s1854 = scalar_select %p1853, %s1852, 31
      %s1855 = smul.addr %s1854, 4
      %s1856 = smul.addr %s1855, 4
      %s1857 = scalar_lea.vmem %s7, %s1856
      // Predicated region
      $region49: #{cnn_rnn_forward.2} parent=47 // pred_check
        %p1858 = pneg %p188
      $region50: #{cnn_rnn_forward.2} parent=47 // pred_check_branch
        %1860 = sbr.rel (%p1858) target = $region52
      $region51: #{cnn_rnn_forward.2} parent=47 // pred_region
        %s1861 = smul.u32 8, %s18
      $region52: #{cnn_rnn_forward.2} parent=47 // pred_fallthru
        _
    $region48: #{cnn_rnn_forward.2} parent=5 // pred_fallthru
      _
    %p1862 = scmp.le.s32.totalorder 2, %s13
    // Predicated region
    $region53: #{cnn_rnn_forward.2} parent=5 // pred_check
      %p1863 = pneg %p1862
    $region54: #{cnn_rnn_forward.2} parent=5 // pred_check_branch
      %1865 = sbr.rel (%p1863) target = $region56
    $region55: #{cnn_rnn_forward.2} parent=5 // pred_region
      %s1866 = ssub.s32 %s13, 2
      // Predicated region
      $region57: #{cnn_rnn_forward.2} parent=55 // pred_check
        %p1867 = pneg %p194
      $region58: #{cnn_rnn_forward.2} parent=55 // pred_check_branch
        %1869 = sbr.rel (%p1867) target = $region60
      $region59: #{cnn_rnn_forward.2} parent=55 // pred_region
        %s1870 = smul.u32 8, %s19
        %p1871 = scmp.lt.s32.totalorder %s1870, 31
        %s1872 = scalar_select %p1871, %s1870, 31
        %s1873 = smul.addr %s1872, 4
        %s1874 = smul.addr %s1873, 4
        %s1875 = scalar_lea.vmem %s7, %s1874
      $region60: #{cnn_rnn_forward.2} parent=55 // pred_fallthru
        _
    $region56: #{cnn_rnn_forward.2} parent=5 // pred_fallthru
      _
  $region6: #{cnn_rnn_forward.2} parent=0 // loop_footer
    %s17 = sadd.s32 1, %s13
  $region7: #{cnn_rnn_forward.2} parent=0 // loop_footer_branch
    %12 = sbr.rel target = $region3
  $region8: #{cnn_rnn_forward.2} parent=0 // loop_exit
    _

// kernel: cnn_rnn_forward.3
$region0: #{cnn_rnn_forward.3}
  #allocation0 [shape = 'u32[]', space=smem, size = 0x4, offset = 0x4, fixed_abs, tag = 'smem constant byte address 0x4 - core index']
  #allocation1 [shape = 'u32[144,128]{1,0:T(1,128)}', space=vmem, size = 0x12000, scoped, tag = 'internal scratch']
  #allocation2 [shape = 'f32[8,128]{1,0:T(8,128)}', space=vmem, size = 0x1000, scoped, tag = 'scratch operand']
  #allocation3 [shape = 'f32[8,128]{1,0:T(8,128)}', space=vmem, size = 0x1000, scoped, tag = 'scratch operand']
  %s0 = inlined_call_operand.vmem [shape: bf16[16,16,512], index: 0, kind: input, shape index: {}]
  %s1 = inlined_call_operand.vmem [shape: f32[128,512], index: 1, kind: input, shape index: {}]
  %s2 = inlined_call_operand.vmem [shape: f32[128,128], index: 2, kind: input, shape index: {}]
  %s3 = inlined_call_operand.vmem [shape: f32[1,128], index: 3, kind: input, shape index: {}]
  %s4 = inlined_call_operand.vmem [shape: f32[128,128], index: 4, kind: input, shape index: {}]
  %s5 = inlined_call_operand.vmem [shape: f32[1,128], index: 5, kind: input, shape index: {}]
  %s6 = inlined_call_operand.hbm [shape: f32[16,128], index: 6, kind: output, shape index: {}]
  %s7 = sld [smem:[#allocation0]]
  $region88: #{cnn_rnn_forward.3} parent=0
    _
  %s9 = ssub.s32 1, %s7
  %s10 = scalar_select 0, %s9, %s7
  $region1: #{cnn_rnn_forward.3} parent=0
    #allocation4 [shape = 'u8[131072]{0}', space=vmem, size = 0x20000, scoped, tag = 'input window, operand 0']
    #allocation5 [shape = 'u8[8192]{0}', space=vmem, size = 0x2000, scoped, tag = 'output window, operand 0']
    #allocation6 [shape = 's32[2]{0}', space=sflag, size = 0x8, scoped, tag = 'scoped memory for cnn_rnn_forward.3']
    %11 = vsyncpa [#allocation6], 0
    %s12 = scalar_lea.sflag [#allocation6], 1
    %13 = vsyncpa %s12, 0
    loop: start=0, step=1, limit=6
    $region2: #{cnn_rnn_forward.3} parent=1 // loop_pre_header
      _
    $region3: #{cnn_rnn_forward.3} parent=1 // loop_header
      %s15 = sphi 0, %s19
      %p16 = scmp.ge.s32.totalorder %s15, 6
      %s22 = sphi 0, %s34
      %s23 = sphi 0, %s30
      %s24 = sphi 0, %s22
      %s25 = sphi 0, %s23
      %s26 = sphi 0, %s24
      %s27 = sphi 0, %s25
      %s39 = sphi 0, %s41
      %s42 = sphi 0, %s39
      %s43 = sphi 0, %s42
      %s59 = sphi 0, %s43
      %s63 = sphi 0, %s63
      %s65 = sphi 0, %s63
      %s66 = sphi 0, %s65
      %s80 = sphi 0, %s66
      %s84 = sphi 0, %s84
      %s86 = sphi 0, %s84
      %s87 = sphi 0, %s86
      %s101 = sphi 0, %s87
      %s105 = sphi 0, %s105
      %s107 = sphi 0, %s105
      %s108 = sphi 0, %s107
      %s122 = sphi 0, %s108
      %s126 = sphi 0, %s126
      %s128 = sphi 0, %s126
      %s129 = sphi 0, %s128
      %s143 = sphi 0, %s129
      %s147 = sphi 0, %s147
      %s149 = sphi 0, %s147
      %s150 = sphi 0, %s149
      %s164 = sphi 0, %s150
      %s170 = sphi 0, %s172
      %s173 = sphi 0, %s170
      %s174 = sphi 0, %s173
      %s190 = sphi 0, %s174
    $region4: #{cnn_rnn_forward.3} parent=1 // loop_header_branch
      %18 = sbr.rel (%p16) target = $region8
    $region5: #{cnn_rnn_forward.3} parent=1 // loop_body
      %s20 = ssub.s32 %s15, 1
      %s21 = ssub.s32 %s15, 2
      %s28 = sadd.s32 1, %s23
      %p29 = scmp.ge.s32.totalorder %s28, 2
      %s30 = scalar_select %p29, 0, %s28
      %s31 = sadd.s32 1, %s22
      %s32 = scalar_select %p29, %s31, %s22
      %p33 = scmp.ge.s32.totalorder %s32, 2
      %s34 = scalar_select %p33, 0, %s32
      %s35 = ssub.s32 %s23, %s30
      %s36 = ssub.s32 %s22, %s34
      %s37 = sor.u32 %s35, %s36
      %p38 = scmp.eq.s32.totalorder %s37, 0
      %s40 = sadd.s32 %s39, 1
      %s41 = scalar_select %p38, %s39, %s40
      %p44 = pneg %p38
      %p45 = scmp.eq.s32.totalorder %s15, 3
      %p46 = por %p44, %p45
      %p47 = scmp.ne.s32.totalorder %s39, %s42
      %p48 = scmp.eq.s32.totalorder %s15, 0
      %p49 = por %p47, %p48
      %p50 = scmp.ne.s32.totalorder %s39, %s42
      %p51 = scmp.eq.s32.totalorder %s20, 3
      %p52 = por %p50, %p51
      %p53 = scmp.ne.s32.totalorder %s42, %s43
      %p54 = scmp.eq.s32.totalorder %s20, 0
      %p55 = por %p53, %p54
      %p56 = scmp.ne.s32.totalorder %s42, %s43
      %p57 = scmp.eq.s32.totalorder %s21, 3
      %p58 = por %p56, %p57
      %p60 = scmp.ne.s32.totalorder %s43, %s59
      %p61 = scmp.eq.s32.totalorder %s21, 0
      %p62 = por %p60, %p61
      %s64 = sadd.s32 %s63, 1
      %p67 = scmp.eq.s32.totalorder %s15, 3
      %p68 = scmp.ne.s32.totalorder %s63, %s65
      %p69 = scmp.eq.s32.totalorder %s15, 0
      %p70 = por %p68, %p69
      %p71 = scmp.ne.s32.totalorder %s63, %s65
      %p72 = scmp.eq.s32.totalorder %s20, 3
      %p73 = por %p71, %p72
      %p74 = scmp.ne.s32.totalorder %s65, %s66
      %p75 = scmp.eq.s32.totalorder %s20, 0
      %p76 = por %p74, %p75
      %p77 = scmp.ne.s32.totalorder %s65, %s66
      %p78 = scmp.eq.s32.totalorder %s21, 3
      %p79 = por %p77, %p78
      %p81 = scmp.ne.s32.totalorder %s66, %s80
      %p82 = scmp.eq.s32.totalorder %s21, 0
      %p83 = por %p81, %p82
      %s85 = sadd.s32 %s84, 1
      %p88 = scmp.eq.s32.totalorder %s15, 3
      %p89 = scmp.ne.s32.totalorder %s84, %s86
      %p90 = scmp.eq.s32.totalorder %s15, 0
      %p91 = por %p89, %p90
      %p92 = scmp.ne.s32.totalorder %s84, %s86
      %p93 = scmp.eq.s32.totalorder %s20, 3
      %p94 = por %p92, %p93
      %p95 = scmp.ne.s32.totalorder %s86, %s87
      %p96 = scmp.eq.s32.totalorder %s20, 0
      %p97 = por %p95, %p96
      %p98 = scmp.ne.s32.totalorder %s86, %s87
      %p99 = scmp.eq.s32.totalorder %s21, 3
      %p100 = por %p98, %p99
      %p102 = scmp.ne.s32.totalorder %s87, %s101
      %p103 = scmp.eq.s32.totalorder %s21, 0
      %p104 = por %p102, %p103
      %s106 = sadd.s32 %s105, 1
      %p109 = scmp.eq.s32.totalorder %s15, 3
      %p110 = scmp.ne.s32.totalorder %s105, %s107
      %p111 = scmp.eq.s32.totalorder %s15, 0
      %p112 = por %p110, %p111
      %p113 = scmp.ne.s32.totalorder %s105, %s107
      %p114 = scmp.eq.s32.totalorder %s20, 3
      %p115 = por %p113, %p114
      %p116 = scmp.ne.s32.totalorder %s107, %s108
      %p117 = scmp.eq.s32.totalorder %s20, 0
      %p118 = por %p116, %p117
      %p119 = scmp.ne.s32.totalorder %s107, %s108
      %p120 = scmp.eq.s32.totalorder %s21, 3
      %p121 = por %p119, %p120
      %p123 = scmp.ne.s32.totalorder %s108, %s122
      %p124 = scmp.eq.s32.totalorder %s21, 0
      %p125 = por %p123, %p124
      %s127 = sadd.s32 %s126, 1
      %p130 = scmp.eq.s32.totalorder %s15, 3
      %p131 = scmp.ne.s32.totalorder %s126, %s128
      %p132 = scmp.eq.s32.totalorder %s15, 0
      %p133 = por %p131, %p132
      %p134 = scmp.ne.s32.totalorder %s126, %s128
      %p135 = scmp.eq.s32.totalorder %s20, 3
      %p136 = por %p134, %p135
      %p137 = scmp.ne.s32.totalorder %s128, %s129
      %p138 = scmp.eq.s32.totalorder %s20, 0
      %p139 = por %p137, %p138
      %p140 = scmp.ne.s32.totalorder %s128, %s129
      %p141 = scmp.eq.s32.totalorder %s21, 3
      %p142 = por %p140, %p141
      %p144 = scmp.ne.s32.totalorder %s129, %s143
      %p145 = scmp.eq.s32.totalorder %s21, 0
      %p146 = por %p144, %p145
      %s148 = sadd.s32 %s147, 1
      %p151 = scmp.eq.s32.totalorder %s15, 3
      %p152 = scmp.ne.s32.totalorder %s147, %s149
      %p153 = scmp.eq.s32.totalorder %s15, 0
      %p154 = por %p152, %p153
      %p155 = scmp.ne.s32.totalorder %s147, %s149
      %p156 = scmp.eq.s32.totalorder %s20, 3
      %p157 = por %p155, %p156
      %p158 = scmp.ne.s32.totalorder %s149, %s150
      %p159 = scmp.eq.s32.totalorder %s20, 0
      %p160 = por %p158, %p159
      %p161 = scmp.ne.s32.totalorder %s149, %s150
      %p162 = scmp.eq.s32.totalorder %s21, 3
      %p163 = por %p161, %p162
      %p165 = scmp.ne.s32.totalorder %s150, %s164
      %p166 = scmp.eq.s32.totalorder %s21, 0
      %p167 = por %p165, %p166
      %s168 = ssub.s32 %s22, %s34
      %p169 = scmp.eq.s32.totalorder %s168, 0
      %s171 = sadd.s32 %s170, 1
      %s172 = scalar_select %p169, %s170, %s171
      %p175 = pneg %p169
      %p176 = scmp.eq.s32.totalorder %s15, 3
      %p177 = por %p175, %p176
      %p178 = scmp.ne.s32.totalorder %s170, %s173
      %p179 = scmp.eq.s32.totalorder %s15, 0
      %p180 = por %p178, %p179
      %p181 = scmp.ne.s32.totalorder %s170, %s173
      %p182 = scmp.eq.s32.totalorder %s20, 3
      %p183 = por %p181, %p182
      %p184 = scmp.ne.s32.totalorder %s173, %s174
      %p185 = scmp.eq.s32.totalorder %s20, 0
      %p186 = por %p184, %p185
      %p187 = scmp.ne.s32.totalorder %s173, %s174
      %p188 = scmp.eq.s32.totalorder %s21, 3
      %p189 = por %p187, %p188
      %p191 = scmp.ne.s32.totalorder %s174, %s190
      %p192 = scmp.eq.s32.totalorder %s21, 0
      %p193 = por %p191, %p192
      %p194 = scmp.le.s32.totalorder 1, %s15
      %p195 = scmp.lt.s32.totalorder %s15, 5
      %p196 = pnand %p194, %p195
      %p197 = pneg %p196
      // Predicated region
      $region9: #{cnn_rnn_forward.3} parent=5 // pred_check
        _
      $region10: #{cnn_rnn_forward.3} parent=5 // pred_check_branch
        %199 = sbr.rel (%p196) target = $region12
      $region11: #{cnn_rnn_forward.3} parent=5 // pred_region
        %s200 = ssub.s32 %s15, 1
        // Predicated region
        $region13: #{cnn_rnn_forward.3} parent=11 // pred_check
          %p201 = pneg %p76
        $region14: #{cnn_rnn_forward.3} parent=11 // pred_check_branch
          %203 = sbr.rel (%p201) target = $region16
        $region15: #{cnn_rnn_forward.3} parent=11 // pred_region
          _
        $region16: #{cnn_rnn_forward.3} parent=11 // pred_fallthru
          _
        // Predicated region
        $region17: #{cnn_rnn_forward.3} parent=11 // pred_check
          %p204 = pneg %p97
        $region18: #{cnn_rnn_forward.3} parent=11 // pred_check_branch
          %206 = sbr.rel (%p204) target = $region20
        $region19: #{cnn_rnn_forward.3} parent=11 // pred_region
          _
        $region20: #{cnn_rnn_forward.3} parent=11 // pred_fallthru
          _
        // Predicated region
        $region21: #{cnn_rnn_forward.3} parent=11 // pred_check
          %p207 = pneg %p118
        $region22: #{cnn_rnn_forward.3} parent=11 // pred_check_branch
          %209 = sbr.rel (%p207) target = $region24
        $region23: #{cnn_rnn_forward.3} parent=11 // pred_region
          _
        $region24: #{cnn_rnn_forward.3} parent=11 // pred_fallthru
          _
        // Predicated region
        $region25: #{cnn_rnn_forward.3} parent=11 // pred_check
          %p210 = pneg %p139
        $region26: #{cnn_rnn_forward.3} parent=11 // pred_check_branch
          %212 = sbr.rel (%p210) target = $region28
        $region27: #{cnn_rnn_forward.3} parent=11 // pred_region
          _
        $region28: #{cnn_rnn_forward.3} parent=11 // pred_fallthru
          _
        // Predicated region
        $region29: #{cnn_rnn_forward.3} parent=11 // pred_check
          %p213 = pneg %p160
        $region30: #{cnn_rnn_forward.3} parent=11 // pred_check_branch
          %215 = sbr.rel (%p213) target = $region32
        $region31: #{cnn_rnn_forward.3} parent=11 // pred_region
          _
        $region32: #{cnn_rnn_forward.3} parent=11 // pred_fallthru
          _
      $region12: #{cnn_rnn_forward.3} parent=5 // pred_fallthru
        _
      %p216 = scmp.lt.s32.totalorder %s15, 4
      // Predicated region
      $region33: #{cnn_rnn_forward.3} parent=5 // pred_check
        %p217 = pneg %p216
      $region34: #{cnn_rnn_forward.3} parent=5 // pred_check_branch
        %219 = sbr.rel (%p217) target = $region36
      $region35: #{cnn_rnn_forward.3} parent=5 // pred_region
        // Predicated region
        $region37: #{cnn_rnn_forward.3} parent=35 // pred_check
          %p220 = pneg %p49
        $region38: #{cnn_rnn_forward.3} parent=35 // pred_check_branch
          %222 = sbr.rel (%p220) target = $region40
        $region39: #{cnn_rnn_forward.3} parent=35 // pred_region
          %s223 = sand.u32 %s39, 1
          %s224 = sand.u32 %s39, 1
          %s225 = smul.addr %s224, 128
          %s226 = scalar_lea.vmem [#allocation4], %s225
          %s227 = smul.u32 8, %s23
          %s228 = smul.addr %s22, 4
          %s229 = smul.addr %s227, 8
          %s230 = sadd.s32 %s228, %s229
          %s231 = smul.addr %s230, 4
          %s232 = scalar_lea.vmem %s0, %s231
          // Predicated region
          $region41: #{cnn_rnn_forward.3} parent=39 // pred_check
            _
          $region42: #{cnn_rnn_forward.3} parent=39 // pred_check_branch
            %234 = sbr.rel (0) target = $region44
          $region43: #{cnn_rnn_forward.3} parent=39 // pred_region
            // Predicated region
            $region45: #{cnn_rnn_forward.3} parent=43 // pred_check
              _
            $region46: #{cnn_rnn_forward.3} parent=43 // pred_check_branch
              %236 = sbr.rel (0) target = $region48
            $region47: #{cnn_rnn_forward.3} parent=43 // pred_region
              loop: start=0, step=1, limit=1
              $region49: #{cnn_rnn_forward.3} parent=47 // loop_pre_header
                _
              $region50: #{cnn_rnn_forward.3} parent=47 // loop_header
                %s238 = sphi 0, %s242
                %p239 = scmp.ge.s32.totalorder %s238, 1
                %s243 = sphi %s232, %s232
                %s244 = sphi %s226, %s226
              $region51: #{cnn_rnn_forward.3} parent=47 // loop_header_branch
                %241 = sbr.rel (%p239) target = $region55
              $region52: #{cnn_rnn_forward.3} parent=47 // loop_body
                %v245 = vld [vmem:[%s243] sm:$0xff]
                %246 = vst [vmem:[%s244] sm:$0xff] %v245
                %v247 = vld [vmem:[%s243 + $0x8] sm:$0xff]
                %248 = vst [vmem:[%s244 + $0x8] sm:$0xff] %v247
                %v249 = vld [vmem:[%s243 + $0x20] sm:$0xff]
                %250 = vst [vmem:[%s244 + $0x10] sm:$0xff] %v249
                %v251 = vld [vmem:[%s243 + $0x28] sm:$0xff]
                %252 = vst [vmem:[%s244 + $0x18] sm:$0xff] %v251
                %v253 = vld [vmem:[%s243 + $0x40] sm:$0xff]
                %254 = vst [vmem:[%s244 + $0x20] sm:$0xff] %v253
                %v255 = vld [vmem:[%s243 + $0x48] sm:$0xff]
                %256 = vst [vmem:[%s244 + $0x28] sm:$0xff] %v255
                %v257 = vld [vmem:[%s243 + $0x60] sm:$0xff]
                %258 = vst [vmem:[%s244 + $0x30] sm:$0xff] %v257
                %v259 = vld [vmem:[%s243 + $0x68] sm:$0xff]
                %260 = vst [vmem:[%s244 + $0x38] sm:$0xff] %v259
                %v261 = vld [vmem:[%s243 + $0x80] sm:$0xff]
                %262 = vst [vmem:[%s244 + $0x40] sm:$0xff] %v261
                %v263 = vld [vmem:[%s243 + $0x88] sm:$0xff]
                %264 = vst [vmem:[%s244 + $0x48] sm:$0xff] %v263
                %v265 = vld [vmem:[%s243 + $0xa0] sm:$0xff]
                %266 = vst [vmem:[%s244 + $0x50] sm:$0xff] %v265
                %v267 = vld [vmem:[%s243 + $0xa8] sm:$0xff]
                %268 = vst [vmem:[%s244 + $0x58] sm:$0xff] %v267
                %v269 = vld [vmem:[%s243 + $0xc0] sm:$0xff]
                %270 = vst [vmem:[%s244 + $0x60] sm:$0xff] %v269
                %v271 = vld [vmem:[%s243 + $0xc8] sm:$0xff]
                %272 = vst [vmem:[%s244 + $0x68] sm:$0xff] %v271
                %v273 = vld [vmem:[%s243 + $0xe0] sm:$0xff]
                %274 = vst [vmem:[%s244 + $0x70] sm:$0xff] %v273
                %v275 = vld [vmem:[%s243 + $0xe8] sm:$0xff]
                %276 = vst [vmem:[%s244 + $0x78] sm:$0xff] %v275
              $region53: #{cnn_rnn_forward.3} parent=47 // loop_footer
                %s242 = sadd.s32 1, %s238
              $region54: #{cnn_rnn_forward.3} parent=47 // loop_footer_branch
                %237 = sbr.rel target = $region50
              $region55: #{cnn_rnn_forward.3} parent=47 // loop_exit
                _
            $region48: #{cnn_rnn_forward.3} parent=43 // pred_fallthru
              _
            // Predicated region
            $region56: #{cnn_rnn_forward.3} parent=43 // pred_check
              _
            $region57: #{cnn_rnn_forward.3} parent=43 // pred_check_branch
              %278 = sbr.rel target = $region59
            $region58: #{cnn_rnn_forward.3} parent=43 // pred_region
              _
            $region59: #{cnn_rnn_forward.3} parent=43 // pred_fallthru
              _
          $region44: #{cnn_rnn_forward.3} parent=39 // pred_fallthru
            _
          %279 = vnop
        $region40: #{cnn_rnn_forward.3} parent=35 // pred_fallthru
          _
      $region36: #{cnn_rnn_forward.3} parent=5 // pred_fallthru
        _
      %p280 = scmp.le.s32.totalorder 1, %s15
      %p281 = scmp.lt.s32.totalorder %s15, 5
      %p282 = pnand %p280, %p281
      %p283 = pneg %p282
      // Predicated region
      $region60: #{cnn_rnn_forward.3} parent=5 // pred_check
        _
      $region61: #{cnn_rnn_forward.3} parent=5 // pred_check_branch
        %285 = sbr.rel (%p282) target = $region63
      $region62: #{cnn_rnn_forward.3} parent=5 // pred_region
        %s286 = ssub.s32 %s15, 1
        %s287 = sand.u32 %s42, 1
        %s288 = sand.u32 %s42, 1
        %s289 = smul.addr %s288, 128
        %s290 = scalar_lea.vmem [#allocation4], %s289
        // Predicated region
        $region64: #{cnn_rnn_forward.3} parent=62 // pred_check
          %p291 = pneg %p55
        $region65: #{cnn_rnn_forward.3} parent=62 // pred_check_branch
          %293 = sbr.rel (%p291) target = $region67
        $region66: #{cnn_rnn_forward.3} parent=62 // pred_region
          _
        $region67: #{cnn_rnn_forward.3} parent=62 // pred_fallthru
          _
        %s294 = sand.u32 %s42, 1
        %s295 = sand.u32 %s42, 1
        %s296 = smul.addr %s295, 128
        %s297 = scalar_lea.vmem [#allocation4], %s296
        %p298 = pneg %p55
        %p299 = pneg %p52
        %p300 = pneg %p76
        %p301 = pneg %p73
        %p302 = pneg %p97
        %p303 = pneg %p94
        %p304 = pneg %p118
        %p305 = pneg %p115
        %p306 = pneg %p139
        %p307 = pneg %p136
        %p308 = pneg %p160
        %p309 = pneg %p157
        %p310 = pneg %p186
        %p311 = pneg %p183
        %s312 = sand.u32 %s173, 1
        %s313 = scalar_lea.sflag [#allocation6], %s312
        %s314 = sand.u32 %s173, 1
        %s315 = smul.addr %s314, 8
        %s316 = scalar_lea.vmem [#allocation5], %s315
        %s317 = smul.u32 8, %s25
        %p318 = scmp.eq.s32.totalorder %s25, 0
        // Predicated region
        $region68: #{cnn_rnn_forward.3} parent=62 // pred_check
          %p319 = pneg %p318
        $region69: #{cnn_rnn_forward.3} parent=62 // pred_check_branch
          %321 = sbr.rel (%p319) target = $region71
        $region70: #{cnn_rnn_forward.3} parent=62 // pred_region
          %322 = vst [vmem:[#allocation2] sm:$0xff] 0.0
          %323 = vst [vmem:[#allocation3] sm:$0xff] 0.0
        $region71: #{cnn_rnn_forward.3} parent=62 // pred_fallthru
          _
        %v324 = vld [vmem:[#allocation2] sm:$0xff]
        %v325 = vld [vmem:[#allocation3] sm:$0xff]
        %v326 = vld [vmem:[%s290] sm:$0xff]
        %v327 = vld [vmem:[%s290 + $0x8] sm:$0xff]
        %v328 = vunpack.c.l.bf16 %v326
        %v329 = vunpack.c.h.bf16 %v326
        %v330 = vunpack.c.l.bf16 %v327
        %v331 = vunpack.c.h.bf16 %v327
        %v332 = vld [vmem:[%s1] sm:$0xff]
        %v333 = vld [vmem:[%s1 + $0x8] sm:$0xff]
        %v334 = vld [vmem:[%s1 + $0x10] sm:$0xff]
        %v335 = vld [vmem:[%s1 + $0x18] sm:$0xff]
        %v336 = vld [vmem:[%s1 + $0x20] sm:$0xff]
        %v337 = vld [vmem:[%s1 + $0x28] sm:$0xff]
        %v338 = vld [vmem:[%s1 + $0x30] sm:$0xff]
        %v339 = vld [vmem:[%s1 + $0x38] sm:$0xff]
        %v340 = vld [vmem:[%s1 + $0x40] sm:$0xff]
        %v341 = vld [vmem:[%s1 + $0x48] sm:$0xff]
        %v342 = vld [vmem:[%s1 + $0x50] sm:$0xff]
        %v343 = vld [vmem:[%s1 + $0x58] sm:$0xff]
        %v344 = vld [vmem:[%s1 + $0x60] sm:$0xff]
        %v345 = vld [vmem:[%s1 + $0x68] sm:$0xff]
        %v346 = vld [vmem:[%s1 + $0x70] sm:$0xff]
        %v347 = vld [vmem:[%s1 + $0x78] sm:$0xff]
        %v348 = vld [vmem:[%s1 + $0x80] sm:$0xff]
        %v349 = vld [vmem:[%s1 + $0x88] sm:$0xff]
        %v350 = vld [vmem:[%s1 + $0x90] sm:$0xff]
        %v351 = vld [vmem:[%s1 + $0x98] sm:$0xff]
        %v352 = vld [vmem:[%s1 + $0xa0] sm:$0xff]
        %v353 = vld [vmem:[%s1 + $0xa8] sm:$0xff]
        %v354 = vld [vmem:[%s1 + $0xb0] sm:$0xff]
        %v355 = vld [vmem:[%s1 + $0xb8] sm:$0xff]
        %v356 = vld [vmem:[%s1 + $0xc0] sm:$0xff]
        %v357 = vld [vmem:[%s1 + $0xc8] sm:$0xff]
        %v358 = vld [vmem:[%s1 + $0xd0] sm:$0xff]
        %v359 = vld [vmem:[%s1 + $0xd8] sm:$0xff]
        %v360 = vld [vmem:[%s1 + $0xe0] sm:$0xff]
        %v361 = vld [vmem:[%s1 + $0xe8] sm:$0xff]
        %v362 = vld [vmem:[%s1 + $0xf0] sm:$0xff]
        %v363 = vld [vmem:[%s1 + $0xf8] sm:$0xff]
        %v364 = vld [vmem:[%s1 + $0x100] sm:$0xff]
        %v365 = vld [vmem:[%s1 + $0x108] sm:$0xff]
        %v366 = vld [vmem:[%s1 + $0x110] sm:$0xff]
        %v367 = vld [vmem:[%s1 + $0x118] sm:$0xff]
        %v368 = vld [vmem:[%s1 + $0x120] sm:$0xff]
        %v369 = vld [vmem:[%s1 + $0x128] sm:$0xff]
        %v370 = vld [vmem:[%s1 + $0x130] sm:$0xff]
        %v371 = vld [vmem:[%s1 + $0x138] sm:$0xff]
        %v372 = vld [vmem:[%s1 + $0x140] sm:$0xff]
        %v373 = vld [vmem:[%s1 + $0x148] sm:$0xff]
        %v374 = vld [vmem:[%s1 + $0x150] sm:$0xff]
        %v375 = vld [vmem:[%s1 + $0x158] sm:$0xff]
        %v376 = vld [vmem:[%s1 + $0x160] sm:$0xff]
        %v377 = vld [vmem:[%s1 + $0x168] sm:$0xff]
        %v378 = vld [vmem:[%s1 + $0x170] sm:$0xff]
        %v379 = vld [vmem:[%s1 + $0x178] sm:$0xff]
        %v380 = vld [vmem:[%s1 + $0x180] sm:$0xff]
        %v381 = vld [vmem:[%s1 + $0x188] sm:$0xff]
        %v382 = vld [vmem:[%s1 + $0x190] sm:$0xff]
        %v383 = vld [vmem:[%s1 + $0x198] sm:$0xff]
        %v384 = vld [vmem:[%s1 + $0x1a0] sm:$0xff]
        %v385 = vld [vmem:[%s1 + $0x1a8] sm:$0xff]
        %v386 = vld [vmem:[%s1 + $0x1b0] sm:$0xff]
        %v387 = vld [vmem:[%s1 + $0x1b8] sm:$0xff]
        %v388 = vld [vmem:[%s1 + $0x1c0] sm:$0xff]
        %v389 = vld [vmem:[%s1 + $0x1c8] sm:$0xff]
        %v390 = vld [vmem:[%s1 + $0x1d0] sm:$0xff]
        %v391 = vld [vmem:[%s1 + $0x1d8] sm:$0xff]
        %v392 = vld [vmem:[%s1 + $0x1e0] sm:$0xff]
        %v393 = vld [vmem:[%s1 + $0x1e8] sm:$0xff]
        %v394 = vld [vmem:[%s1 + $0x1f0] sm:$0xff]
        %v395 = vld [vmem:[%s1 + $0x1f8] sm:$0xff]
        %396 = vmatprep.subr.mxu0 %v333
        %397 = vmatpush1.msra.mxu0 %v332
        %398 = vmatprep.subr.mxu0 %v337
        %399 = vmatpush1.msra.mxu0 %v336
        %400 = vmatprep.subr.mxu0 %v341
        %401 = vmatpush1.msra.mxu0 %v340
        %402 = vmatprep.subr.mxu0 %v345
        %403 = vmatpush1.msra.mxu0 %v344
        %404 = vmatprep.subr.mxu0 %v349
        %405 = vmatpush1.msra.mxu0 %v348
        %406 = vmatprep.subr.mxu0 %v353
        %407 = vmatpush1.msra.mxu0 %v352
        %408 = vmatprep.subr.mxu0 %v357
        %409 = vmatpush1.msra.mxu0 %v356
        %410 = vmatprep.subr.mxu0 %v361
        %411 = vmatpush1.msra.mxu0 %v360
        %412 = vmatprep.subr.mxu0 %v365
        %413 = vmatpush1.msra.mxu0 %v364
        %414 = vmatprep.subr.mxu0 %v369
        %415 = vmatpush1.msra.mxu0 %v368
        %416 = vmatprep.subr.mxu0 %v373
        %417 = vmatpush1.msra.mxu0 %v372
        %418 = vmatprep.subr.mxu0 %v377
        %419 = vmatpush1.msra.mxu0 %v376
        %420 = vmatprep.subr.mxu0 %v381
        %421 = vmatpush1.msra.mxu0 %v380
        %422 = vmatprep.subr.mxu0 %v385
        %423 = vmatpush1.msra.mxu0 %v384
        %424 = vmatprep.subr.mxu0 %v389
        %425 = vmatpush1.msra.mxu0 %v388
        %426 = vmatprep.subr.mxu0 %v393
        %427 = vmatpush1.msra.mxu0 %v392
        %428 = vmatprep.subr.mxu0 0.0
        %429 = vmatpush1.msra.mxu0 0.0
        %430 = vmatprep.subr.mxu0 0.0
        %431 = vmatpush1.msra.mxu0 0.0
        %432 = vmatprep.subr.mxu0 0.0
        %433 = vmatpush1.msra.mxu0 0.0
        %434 = vmatprep.subr.mxu0 0.0
        %435 = vmatpush1.msra.mxu0 0.0
        %436 = vmatprep.subr.mxu0 0.0
        %437 = vmatpush1.msra.mxu0 0.0
        %438 = vmatprep.subr.mxu0 0.0
        %439 = vmatpush1.msra.mxu0 0.0
        %440 = vmatprep.subr.mxu0 0.0
        %441 = vmatpush1.msra.mxu0 0.0
        %442 = vmatprep.subr.mxu0 0.0
        %443 = vmatpush1.msra.mxu0 0.0
        %444 = vmatprep.subr.mxu0 0.0
        %445 = vmatpush1.msra.mxu0 0.0
        %446 = vmatprep.subr.mxu0 0.0
        %447 = vmatpush1.msra.mxu0 0.0
        %448 = vmatprep.subr.mxu0 0.0
        %449 = vmatpush1.msra.mxu0 0.0
        %450 = vmatprep.subr.mxu0 0.0
        %451 = vmatpush1.msra.mxu0 0.0
        %452 = vmatprep.subr.mxu0 0.0
        %453 = vmatpush1.msra.mxu0 0.0
        %454 = vmatprep.subr.mxu0 0.0
        %455 = vmatpush1.msra.mxu0 0.0
        %456 = vmatprep.subr.mxu0 0.0
        %457 = vmatpush1.msra.mxu0 0.0
        %458 = vmatprep.subr.mxu0 0.0
        %459 = vmatpush1.msra.mxu0 0.0
        %460 = vmatprep.mubr.f32.mxu0 0.0
        %461 = vmatmul.mubr.f32.gmra.mrb[0].mxu0 %v324
        %v462 = vpop.f32.mrb[0].mxu0
        %v463 = vadd.f32 0.0, %v462
        %v464 = vpop.f32.mrb[0].mxu0
        %v465 = vadd.f32 0.0, %v464
        %466 = vdwg.mxu0
        %467 = vmatprep.subr.mxu0 %v335
        %468 = vmatpush1.msra.mxu0 %v334
        %469 = vmatprep.subr.mxu0 %v339
        %470 = vmatpush1.msra.mxu0 %v338
        %471 = vmatprep.subr.mxu0 %v343
        %472 = vmatpush1.msra.mxu0 %v342
        %473 = vmatprep.subr.mxu0 %v347
        %474 = vmatpush1.msra.mxu0 %v346
        %475 = vmatprep.subr.mxu0 %v351
        %476 = vmatpush1.msra.mxu0 %v350
        %477 = vmatprep.subr.mxu0 %v355
        %478 = vmatpush1.msra.mxu0 %v354
        %479 = vmatprep.subr.mxu0 %v359
        %480 = vmatpush1.msra.mxu0 %v358
        %481 = vmatprep.subr.mxu0 %v363
        %482 = vmatpush1.msra.mxu0 %v362
        %483 = vmatprep.subr.mxu0 %v367
        %484 = vmatpush1.msra.mxu0 %v366
        %485 = vmatprep.subr.mxu0 %v371
        %486 = vmatpush1.msra.mxu0 %v370
        %487 = vmatprep.subr.mxu0 %v375
        %488 = vmatpush1.msra.mxu0 %v374
        %489 = vmatprep.subr.mxu0 %v379
        %490 = vmatpush1.msra.mxu0 %v378
        %491 = vmatprep.subr.mxu0 %v383
        %492 = vmatpush1.msra.mxu0 %v382
        %493 = vmatprep.subr.mxu0 %v387
        %494 = vmatpush1.msra.mxu0 %v386
        %495 = vmatprep.subr.mxu0 %v391
        %496 = vmatpush1.msra.mxu0 %v390
        %497 = vmatprep.subr.mxu0 %v395
        %498 = vmatpush1.msra.mxu0 %v394
        %499 = vmatprep.subr.mxu0 0.0
        %500 = vmatpush1.msra.mxu0 0.0
        %501 = vmatprep.subr.mxu0 0.0
        %502 = vmatpush1.msra.mxu0 0.0
        %503 = vmatprep.subr.mxu0 0.0
        %504 = vmatpush1.msra.mxu0 0.0
        %505 = vmatprep.subr.mxu0 0.0
        %506 = vmatpush1.msra.mxu0 0.0
        %507 = vmatprep.subr.mxu0 0.0
        %508 = vmatpush1.msra.mxu0 0.0
        %509 = vmatprep.subr.mxu0 0.0
        %510 = vmatpush1.msra.mxu0 0.0
        %511 = vmatprep.subr.mxu0 0.0
        %512 = vmatpush1.msra.mxu0 0.0
        %513 = vmatprep.subr.mxu0 0.0
        %514 = vmatpush1.msra.mxu0 0.0
        %515 = vmatprep.subr.mxu0 0.0
        %516 = vmatpush1.msra.mxu0 0.0
        %517 = vmatprep.subr.mxu0 0.0
        %518 = vmatpush1.msra.mxu0 0.0
        %519 = vmatprep.subr.mxu0 0.0
        %520 = vmatpush1.msra.mxu0 0.0
        %521 = vmatprep.subr.mxu0 0.0
        %522 = vmatpush1.msra.mxu0 0.0
        %523 = vmatprep.subr.mxu0 0.0
        %524 = vmatpush1.msra.mxu0 0.0
        %525 = vmatprep.subr.mxu0 0.0
        %526 = vmatpush1.msra.mxu0 0.0
        %527 = vmatprep.subr.mxu0 0.0
        %528 = vmatpush1.msra.mxu0 0.0
        %529 = vmatprep.subr.mxu0 0.0
        %530 = vmatpush1.msra.mxu0 0.0
        %531 = vmatprep.mubr.f32.mxu0 0.0
        %532 = vmatmul.mubr.f32.gmra.mrb[0].mxu0 %v324
        %v533 = vpop.f32.mrb[0].mxu0
        %v534 = vadd.f32 0.0, %v533
        %v535 = vpop.f32.mrb[0].mxu0
        %v536 = vadd.f32 0.0, %v535
        %537 = vdwg.mxu0
        %v538 = vadd.f32 %v328, %v463
        %v539 = vadd.f32 %v329, %v465
        %v540 = vadd.f32 %v330, %v534
        %v541 = vadd.f32 %v331, %v536
        %v542 = vxor.u32 %v538, 2147483648
        %v543 = vmul.f32 %v542, 1.442695
        %v544 = vpow.pop %v543
        %v545 = vadd.f32 %v544, 1.0
        %v546 = vrcp.pop %v545
        %v547 = vmul.f32 1.0, %v546
        %v548 = vxor.u32 %v539, 2147483648
        %v549 = vmul.f32 %v548, 1.442695
        %v550 = vpow.pop %v549
        %v551 = vadd.f32 %v550, 1.0
        %v552 = vrcp.pop %v551
        %v553 = vmul.f32 1.0, %v552
        %v554 = vtanh.pop %v540
        %v555 = vxor.u32 %v541, 2147483648
        %v556 = vmul.f32 %v555, 1.442695
        %v557 = vpow.pop %v556
        %v558 = vadd.f32 %v557, 1.0
        %v559 = vrcp.pop %v558
        %v560 = vmul.f32 1.0, %v559
        %v561 = vmul.f32 %v553, %v325
        %v562 = vmul.f32 %v547, %v554
        %v563 = vadd.f32 %v561, %v562
        %v564 = vtanh.pop %v563
        %v565 = vmul.f32 %v560, %v564
        %s566 = scalar_lea.vmem %s290, 16 [#allocation4]
        %v567 = vld [vmem:[%s566] sm:$0xff]
        %v568 = vld [vmem:[%s566 + $0x8] sm:$0xff]
        %v569 = vunpack.c.l.bf16 %v567
        %v570 = vunpack.c.h.bf16 %v567
        %v571 = vunpack.c.l.bf16 %v568
        %v572 = vunpack.c.h.bf16 %v568
        %573 = vmatprep.subr.mxu0 %v333
        %574 = vmatpush1.msra.mxu0 %v332
        %575 = vmatprep.subr.mxu0 %v337
        %576 = vmatpush1.msra.mxu0 %v336
        %577 = vmatprep.subr.mxu0 %v341
        %578 = vmatpush1.msra.mxu0 %v340
        %579 = vmatprep.subr.mxu0 %v345
        %580 = vmatpush1.msra.mxu0 %v344
        %581 = vmatprep.subr.mxu0 %v349
        %582 = vmatpush1.msra.mxu0 %v348
        %583 = vmatprep.subr.mxu0 %v353
        %584 = vmatpush1.msra.mxu0 %v352
        %585 = vmatprep.subr.mxu0 %v357
        %586 = vmatpush1.msra.mxu0 %v356
        %587 = vmatprep.subr.mxu0 %v361
        %588 = vmatpush1.msra.mxu0 %v360
        %589 = vmatprep.subr.mxu0 %v365
        %590 = vmatpush1.msra.mxu0 %v364
        %591 = vmatprep.subr.mxu0 %v369
        %592 = vmatpush1.msra.mxu0 %v368
        %593 = vmatprep.subr.mxu0 %v373
        %594 = vmatpush1.msra.mxu0 %v372
        %595 = vmatprep.subr.mxu0 %v377
        %596 = vmatpush1.msra.mxu0 %v376
        %597 = vmatprep.subr.mxu0 %v381
        %598 = vmatpush1.msra.mxu0 %v380
        %599 = vmatprep.subr.mxu0 %v385
        %600 = vmatpush1.msra.mxu0 %v384
        %601 = vmatprep.subr.mxu0 %v389
        %602 = vmatpush1.msra.mxu0 %v388
        %603 = vmatprep.subr.mxu0 %v393
        %604 = vmatpush1.msra.mxu0 %v392
        %605 = vmatprep.subr.mxu0 0.0
        %606 = vmatpush1.msra.mxu0 0.0
        %607 = vmatprep.subr.mxu0 0.0
        %608 = vmatpush1.msra.mxu0 0.0
        %609 = vmatprep.subr.mxu0 0.0
        %610 = vmatpush1.msra.mxu0 0.0
        %611 = vmatprep.subr.mxu0 0.0
        %612 = vmatpush1.msra.mxu0 0.0
        %613 = vmatprep.subr.mxu0 0.0
        %614 = vmatpush1.msra.mxu0 0.0
        %615 = vmatprep.subr.mxu0 0.0
        %616 = vmatpush1.msra.mxu0 0.0
        %617 = vmatprep.subr.mxu0 0.0
        %618 = vmatpush1.msra.mxu0 0.0
        %619 = vmatprep.subr.mxu0 0.0
        %620 = vmatpush1.msra.mxu0 0.0
        %621 = vmatprep.subr.mxu0 0.0
        %622 = vmatpush1.msra.mxu0 0.0
        %623 = vmatprep.subr.mxu0 0.0
        %624 = vmatpush1.msra.mxu0 0.0
        %625 = vmatprep.subr.mxu0 0.0
        %626 = vmatpush1.msra.mxu0 0.0
        %627 = vmatprep.subr.mxu0 0.0
        %628 = vmatpush1.msra.mxu0 0.0
        %629 = vmatprep.subr.mxu0 0.0
        %630 = vmatpush1.msra.mxu0 0.0
        %631 = vmatprep.subr.mxu0 0.0
        %632 = vmatpush1.msra.mxu0 0.0
        %633 = vmatprep.subr.mxu0 0.0
        %634 = vmatpush1.msra.mxu0 0.0
        %635 = vmatprep.subr.mxu0 0.0
        %636 = vmatpush1.msra.mxu0 0.0
        %637 = vmatprep.mubr.f32.mxu0 0.0
        %638 = vmatmul.mubr.f32.gmra.mrb[0].mxu0 %v565
        %v639 = vpop.f32.mrb[0].mxu0
        %v640 = vadd.f32 0.0, %v639
        %v641 = vpop.f32.mrb[0].mxu0
        %v642 = vadd.f32 0.0, %v641
        %643 = vdwg.mxu0
        %644 = vmatprep.subr.mxu0 %v335
        %645 = vmatpush1.msra.mxu0 %v334
        %646 = vmatprep.subr.mxu0 %v339
        %647 = vmatpush1.msra.mxu0 %v338
        %648 = vmatprep.subr.mxu0 %v343
        %649 = vmatpush1.msra.mxu0 %v342
        %650 = vmatprep.subr.mxu0 %v347
        %651 = vmatpush1.msra.mxu0 %v346
        %652 = vmatprep.subr.mxu0 %v351
        %653 = vmatpush1.msra.mxu0 %v350
        %654 = vmatprep.subr.mxu0 %v355
        %655 = vmatpush1.msra.mxu0 %v354
        %656 = vmatprep.subr.mxu0 %v359
        %657 = vmatpush1.msra.mxu0 %v358
        %658 = vmatprep.subr.mxu0 %v363
        %659 = vmatpush1.msra.mxu0 %v362
        %660 = vmatprep.subr.mxu0 %v367
        %661 = vmatpush1.msra.mxu0 %v366
        %662 = vmatprep.subr.mxu0 %v371
        %663 = vmatpush1.msra.mxu0 %v370
        %664 = vmatprep.subr.mxu0 %v375
        %665 = vmatpush1.msra.mxu0 %v374
        %666 = vmatprep.subr.mxu0 %v379
        %667 = vmatpush1.msra.mxu0 %v378
        %668 = vmatprep.subr.mxu0 %v383
        %669 = vmatpush1.msra.mxu0 %v382
        %670 = vmatprep.subr.mxu0 %v387
        %671 = vmatpush1.msra.mxu0 %v386
        %672 = vmatprep.subr.mxu0 %v391
        %673 = vmatpush1.msra.mxu0 %v390
        %674 = vmatprep.subr.mxu0 %v395
        %675 = vmatpush1.msra.mxu0 %v394
        %676 = vmatprep.subr.mxu0 0.0
        %677 = vmatpush1.msra.mxu0 0.0
        %678 = vmatprep.subr.mxu0 0.0
        %679 = vmatpush1.msra.mxu0 0.0
        %680 = vmatprep.subr.mxu0 0.0
        %681 = vmatpush1.msra.mxu0 0.0
        %682 = vmatprep.subr.mxu0 0.0
        %683 = vmatpush1.msra.mxu0 0.0
        %684 = vmatprep.subr.mxu0 0.0
        %685 = vmatpush1.msra.mxu0 0.0
        %686 = vmatprep.subr.mxu0 0.0
        %687 = vmatpush1.msra.mxu0 0.0
        %688 = vmatprep.subr.mxu0 0.0
        %689 = vmatpush1.msra.mxu0 0.0
        %690 = vmatprep.subr.mxu0 0.0
        %691 = vmatpush1.msra.mxu0 0.0
        %692 = vmatprep.subr.mxu0 0.0
        %693 = vmatpush1.msra.mxu0 0.0
        %694 = vmatprep.subr.mxu0 0.0
        %695 = vmatpush1.msra.mxu0 0.0
        %696 = vmatprep.subr.mxu0 0.0
        %697 = vmatpush1.msra.mxu0 0.0
        %698 = vmatprep.subr.mxu0 0.0
        %699 = vmatpush1.msra.mxu0 0.0
        %700 = vmatprep.subr.mxu0 0.0
        %701 = vmatpush1.msra.mxu0 0.0
        %702 = vmatprep.subr.mxu0 0.0
        %703 = vmatpush1.msra.mxu0 0.0
        %704 = vmatprep.subr.mxu0 0.0
        %705 = vmatpush1.msra.mxu0 0.0
        %706 = vmatprep.subr.mxu0 0.0
        %707 = vmatpush1.msra.mxu0 0.0
        %708 = vmatprep.mubr.f32.mxu0 0.0
        %709 = vmatmul.mubr.f32.gmra.mrb[0].mxu0 %v565
        %v710 = vpop.f32.mrb[0].mxu0
        %v711 = vadd.f32 0.0, %v710
        %v712 = vpop.f32.mrb[0].mxu0
        %v713 = vadd.f32 0.0, %v712
        %714 = vdwg.mxu0
        %v715 = vadd.f32 %v569, %v640
        %v716 = vadd.f32 %v570, %v642
        %v717 = vadd.f32 %v571, %v711
        %v718 = vadd.f32 %v572, %v713
        %v719 = vxor.u32 %v715, 2147483648
        %v720 = vmul.f32 %v719, 1.442695
        %v721 = vpow.pop %v720
        %v722 = vadd.f32 %v721, 1.0
        %v723 = vrcp.pop %v722
        %v724 = vmul.f32 1.0, %v723
        %v725 = vxor.u32 %v716, 2147483648
        %v726 = vmul.f32 %v725, 1.442695
        %v727 = vpow.pop %v726
        %v728 = vadd.f32 %v727, 1.0
        %v729 = vrcp.pop %v728
        %v730 = vmul.f32 1.0, %v729
        %v731 = vtanh.pop %v717
        %v732 = vxor.u32 %v718, 2147483648
        %v733 = vmul.f32 %v732, 1.442695
        %v734 = vpow.pop %v733
        %v735 = vadd.f32 %v734, 1.0
        %v736 = vrcp.pop %v735
        %v737 = vmul.f32 1.0, %v736
        %v738 = vmul.f32 %v730, %v563
        %v739 = vmul.f32 %v724, %v731
        %v740 = vadd.f32 %v738, %v739
        %v741 = vtanh.pop %v740
        %v742 = vmul.f32 %v737, %v741
        %s743 = scalar_lea.vmem %s290, 32 [#allocation4]
        %v744 = vld [vmem:[%s743] sm:$0xff]
        %v745 = vld [vmem:[%s743 + $0x8] sm:$0xff]
        %v746 = vunpack.c.l.bf16 %v744
        %v747 = vunpack.c.h.bf16 %v744
        %v748 = vunpack.c.l.bf16 %v745
        %v749 = vunpack.c.h.bf16 %v745
        %750 = vmatprep.subr.mxu0 %v333
        %751 = vmatpush1.msra.mxu0 %v332
        %752 = vmatprep.subr.mxu0 %v337
        %753 = vmatpush1.msra.mxu0 %v336
        %754 = vmatprep.subr.mxu0 %v341
        %755 = vmatpush1.msra.mxu0 %v340
        %756 = vmatprep.subr.mxu0 %v345
        %757 = vmatpush1.msra.mxu0 %v344
        %758 = vmatprep.subr.mxu0 %v349
        %759 = vmatpush1.msra.mxu0 %v348
        %760 = vmatprep.subr.mxu0 %v353
        %761 = vmatpush1.msra.mxu0 %v352
        %762 = vmatprep.subr.mxu0 %v357
        %763 = vmatpush1.msra.mxu0 %v356
        %764 = vmatprep.subr.mxu0 %v361
        %765 = vmatpush1.msra.mxu0 %v360
        %766 = vmatprep.subr.mxu0 %v365
        %767 = vmatpush1.msra.mxu0 %v364
        %768 = vmatprep.subr.mxu0 %v369
        %769 = vmatpush1.msra.mxu0 %v368
        %770 = vmatprep.subr.mxu0 %v373
        %771 = vmatpush1.msra.mxu0 %v372
        %772 = vmatprep.subr.mxu0 %v377
        %773 = vmatpush1.msra.mxu0 %v376
        %774 = vmatprep.subr.mxu0 %v381
        %775 = vmatpush1.msra.mxu0 %v380
        %776 = vmatprep.subr.mxu0 %v385
        %777 = vmatpush1.msra.mxu0 %v384
        %778 = vmatprep.subr.mxu0 %v389
        %779 = vmatpush1.msra.mxu0 %v388
        %780 = vmatprep.subr.mxu0 %v393
        %781 = vmatpush1.msra.mxu0 %v392
        %782 = vmatprep.subr.mxu0 0.0
        %783 = vmatpush1.msra.mxu0 0.0
        %784 = vmatprep.subr.mxu0 0.0
        %785 = vmatpush1.msra.mxu0 0.0
        %786 = vmatprep.subr.mxu0 0.0
        %787 = vmatpush1.msra.mxu0 0.0
        %788 = vmatprep.subr.mxu0 0.0
        %789 = vmatpush1.msra.mxu0 0.0
        %790 = vmatprep.subr.mxu0 0.0
        %791 = vmatpush1.msra.mxu0 0.0
        %792 = vmatprep.subr.mxu0 0.0
        %793 = vmatpush1.msra.mxu0 0.0
        %794 = vmatprep.subr.mxu0 0.0
        %795 = vmatpush1.msra.mxu0 0.0
        %796 = vmatprep.subr.mxu0 0.0
        %797 = vmatpush1.msra.mxu0 0.0
        %798 = vmatprep.subr.mxu0 0.0
        %799 = vmatpush1.msra.mxu0 0.0
        %800 = vmatprep.subr.mxu0 0.0
        %801 = vmatpush1.msra.mxu0 0.0
        %802 = vmatprep.subr.mxu0 0.0
        %803 = vmatpush1.msra.mxu0 0.0
        %804 = vmatprep.subr.mxu0 0.0
        %805 = vmatpush1.msra.mxu0 0.0
        %806 = vmatprep.subr.mxu0 0.0
        %807 = vmatpush1.msra.mxu0 0.0
        %808 = vmatprep.subr.mxu0 0.0
        %809 = vmatpush1.msra.mxu0 0.0
        %810 = vmatprep.subr.mxu0 0.0
        %811 = vmatpush1.msra.mxu0 0.0
        %812 = vmatprep.subr.mxu0 0.0
        %813 = vmatpush1.msra.mxu0 0.0
        %814 = vmatprep.mubr.f32.mxu0 0.0
        %815 = vmatmul.mubr.f32.gmra.mrb[0].mxu0 %v742
        %v816 = vpop.f32.mrb[0].mxu0
        %v817 = vadd.f32 0.0, %v816
        %v818 = vpop.f32.mrb[0].mxu0
        %v819 = vadd.f32 0.0, %v818
        %820 = vdwg.mxu0
        %821 = vmatprep.subr.mxu0 %v335
        %822 = vmatpush1.msra.mxu0 %v334
        %823 = vmatprep.subr.mxu0 %v339
        %824 = vmatpush1.msra.mxu0 %v338
        %825 = vmatprep.subr.mxu0 %v343
        %826 = vmatpush1.msra.mxu0 %v342
        %827 = vmatprep.subr.mxu0 %v347
        %828 = vmatpush1.msra.mxu0 %v346
        %829 = vmatprep.subr.mxu0 %v351
        %830 = vmatpush1.msra.mxu0 %v350
        %831 = vmatprep.subr.mxu0 %v355
        %832 = vmatpush1.msra.mxu0 %v354
        %833 = vmatprep.subr.mxu0 %v359
        %834 = vmatpush1.msra.mxu0 %v358
        %835 = vmatprep.subr.mxu0 %v363
        %836 = vmatpush1.msra.mxu0 %v362
        %837 = vmatprep.subr.mxu0 %v367
        %838 = vmatpush1.msra.mxu0 %v366
        %839 = vmatprep.subr.mxu0 %v371
        %840 = vmatpush1.msra.mxu0 %v370
        %841 = vmatprep.subr.mxu0 %v375
        %842 = vmatpush1.msra.mxu0 %v374
        %843 = vmatprep.subr.mxu0 %v379
        %844 = vmatpush1.msra.mxu0 %v378
        %845 = vmatprep.subr.mxu0 %v383
        %846 = vmatpush1.msra.mxu0 %v382
        %847 = vmatprep.subr.mxu0 %v387
        %848 = vmatpush1.msra.mxu0 %v386
        %849 = vmatprep.subr.mxu0 %v391
        %850 = vmatpush1.msra.mxu0 %v390
        %851 = vmatprep.subr.mxu0 %v395
        %852 = vmatpush1.msra.mxu0 %v394
        %853 = vmatprep.subr.mxu0 0.0
        %854 = vmatpush1.msra.mxu0 0.0
        %855 = vmatprep.subr.mxu0 0.0
        %856 = vmatpush1.msra.mxu0 0.0
        %857 = vmatprep.subr.mxu0 0.0
        %858 = vmatpush1.msra.mxu0 0.0
        %859 = vmatprep.subr.mxu0 0.0
        %860 = vmatpush1.msra.mxu0 0.0
        %861 = vmatprep.subr.mxu0 0.0
        %862 = vmatpush1.msra.mxu0 0.0
        %863 = vmatprep.subr.mxu0 0.0
        %864 = vmatpush1.msra.mxu0 0.0
        %865 = vmatprep.subr.mxu0 0.0
        %866 = vmatpush1.msra.mxu0 0.0
        %867 = vmatprep.subr.mxu0 0.0
        %868 = vmatpush1.msra.mxu0 0.0
        %869 = vmatprep.subr.mxu0 0.0
        %870 = vmatpush1.msra.mxu0 0.0
        %871 = vmatprep.subr.mxu0 0.0
        %872 = vmatpush1.msra.mxu0 0.0
        %873 = vmatprep.subr.mxu0 0.0
        %874 = vmatpush1.msra.mxu0 0.0
        %875 = vmatprep.subr.mxu0 0.0
        %876 = vmatpush1.msra.mxu0 0.0
        %877 = vmatprep.subr.mxu0 0.0
        %878 = vmatpush1.msra.mxu0 0.0
        %879 = vmatprep.subr.mxu0 0.0
        %880 = vmatpush1.msra.mxu0 0.0
        %881 = vmatprep.subr.mxu0 0.0
        %882 = vmatpush1.msra.mxu0 0.0
        %883 = vmatprep.subr.mxu0 0.0
        %884 = vmatpush1.msra.mxu0 0.0
        %885 = vmatprep.mubr.f32.mxu0 0.0
        %886 = vmatmul.mubr.f32.gmra.mrb[0].mxu0 %v742
        %v887 = vpop.f32.mrb[0].mxu0
        %v888 = vadd.f32 0.0, %v887
        %v889 = vpop.f32.mrb[0].mxu0
        %v890 = vadd.f32 0.0, %v889
        %891 = vdwg.mxu0
        %v892 = vadd.f32 %v746, %v817
        %v893 = vadd.f32 %v747, %v819
        %v894 = vadd.f32 %v748, %v888
        %v895 = vadd.f32 %v749, %v890
        %v896 = vxor.u32 %v892, 2147483648
        %v897 = vmul.f32 %v896, 1.442695
        %v898 = vpow.pop %v897
        %v899 = vadd.f32 %v898, 1.0
        %v900 = vrcp.pop %v899
        %v901 = vmul.f32 1.0, %v900
        %v902 = vxor.u32 %v893, 2147483648
        %v903 = vmul.f32 %v902, 1.442695
        %v904 = vpow.pop %v903
        %v905 = vadd.f32 %v904, 1.0
        %v906 = vrcp.pop %v905
        %v907 = vmul.f32 1.0, %v906
        %v908 = vtanh.pop %v894
        %v909 = vxor.u32 %v895, 2147483648
        %v910 = vmul.f32 %v909, 1.442695
        %v911 = vpow.pop %v910
        %v912 = vadd.f32 %v911, 1.0
        %v913 = vrcp.pop %v912
        %v914 = vmul.f32 1.0, %v913
        %v915 = vmul.f32 %v907, %v740
        %v916 = vmul.f32 %v901, %v908
        %v917 = vadd.f32 %v915, %v916
        %v918 = vtanh.pop %v917
        %v919 = vmul.f32 %v914, %v918
        %s920 = scalar_lea.vmem %s290, 48 [#allocation4]
        %v921 = vld [vmem:[%s920] sm:$0xff]
        %v922 = vld [vmem:[%s920 + $0x8] sm:$0xff]
        %v923 = vunpack.c.l.bf16 %v921
        %v924 = vunpack.c.h.bf16 %v921
        %v925 = vunpack.c.l.bf16 %v922
        %v926 = vunpack.c.h.bf16 %v922
        %927 = vmatprep.subr.mxu0 %v333
        %928 = vmatpush1.msra.mxu0 %v332
        %929 = vmatprep.subr.mxu0 %v337
        %930 = vmatpush1.msra.mxu0 %v336
        %931 = vmatprep.subr.mxu0 %v341
        %932 = vmatpush1.msra.mxu0 %v340
        %933 = vmatprep.subr.mxu0 %v345
        %934 = vmatpush1.msra.mxu0 %v344
        %935 = vmatprep.subr.mxu0 %v349
        %936 = vmatpush1.msra.mxu0 %v348
        %937 = vmatprep.subr.mxu0 %v353
        %938 = vmatpush1.msra.mxu0 %v352
        %939 = vmatprep.subr.mxu0 %v357
        %940 = vmatpush1.msra.mxu0 %v356
        %941 = vmatprep.subr.mxu0 %v361
        %942 = vmatpush1.msra.mxu0 %v360
        %943 = vmatprep.subr.mxu0 %v365
        %944 = vmatpush1.msra.mxu0 %v364
        %945 = vmatprep.subr.mxu0 %v369
        %946 = vmatpush1.msra.mxu0 %v368
        %947 = vmatprep.subr.mxu0 %v373
        %948 = vmatpush1.msra.mxu0 %v372
        %949 = vmatprep.subr.mxu0 %v377
        %950 = vmatpush1.msra.mxu0 %v376
        %951 = vmatprep.subr.mxu0 %v381
        %952 = vmatpush1.msra.mxu0 %v380
        %953 = vmatprep.subr.mxu0 %v385
        %954 = vmatpush1.msra.mxu0 %v384
        %955 = vmatprep.subr.mxu0 %v389
        %956 = vmatpush1.msra.mxu0 %v388
        %957 = vmatprep.subr.mxu0 %v393
        %958 = vmatpush1.msra.mxu0 %v392
        %959 = vmatprep.subr.mxu0 0.0
        %960 = vmatpush1.msra.mxu0 0.0
        %961 = vmatprep.subr.mxu0 0.0
        %962 = vmatpush1.msra.mxu0 0.0
        %963 = vmatprep.subr.mxu0 0.0
        %964 = vmatpush1.msra.mxu0 0.0
        %965 = vmatprep.subr.mxu0 0.0
        %966 = vmatpush1.msra.mxu0 0.0
        %967 = vmatprep.subr.mxu0 0.0
        %968 = vmatpush1.msra.mxu0 0.0
        %969 = vmatprep.subr.mxu0 0.0
        %970 = vmatpush1.msra.mxu0 0.0
        %971 = vmatprep.subr.mxu0 0.0
        %972 = vmatpush1.msra.mxu0 0.0
        %973 = vmatprep.subr.mxu0 0.0
        %974 = vmatpush1.msra.mxu0 0.0
        %975 = vmatprep.subr.mxu0 0.0
        %976 = vmatpush1.msra.mxu0 0.0
        %977 = vmatprep.subr.mxu0 0.0
        %978 = vmatpush1.msra.mxu0 0.0
        %979 = vmatprep.subr.mxu0 0.0
        %980 = vmatpush1.msra.mxu0 0.0
        %981 = vmatprep.subr.mxu0 0.0
        %982 = vmatpush1.msra.mxu0 0.0
        %983 = vmatprep.subr.mxu0 0.0
        %984 = vmatpush1.msra.mxu0 0.0
        %985 = vmatprep.subr.mxu0 0.0
        %986 = vmatpush1.msra.mxu0 0.0
        %987 = vmatprep.subr.mxu0 0.0
        %988 = vmatpush1.msra.mxu0 0.0
        %989 = vmatprep.subr.mxu0 0.0
        %990 = vmatpush1.msra.mxu0 0.0
        %991 = vmatprep.mubr.f32.mxu0 0.0
        %992 = vmatmul.mubr.f32.gmra.mrb[0].mxu0 %v919
        %v993 = vpop.f32.mrb[0].mxu0
        %v994 = vadd.f32 0.0, %v993
        %v995 = vpop.f32.mrb[0].mxu0
        %v996 = vadd.f32 0.0, %v995
        %997 = vdwg.mxu0
        %998 = vmatprep.subr.mxu0 %v335
        %999 = vmatpush1.msra.mxu0 %v334
        %1000 = vmatprep.subr.mxu0 %v339
        %1001 = vmatpush1.msra.mxu0 %v338
        %1002 = vmatprep.subr.mxu0 %v343
        %1003 = vmatpush1.msra.mxu0 %v342
        %1004 = vmatprep.subr.mxu0 %v347
        %1005 = vmatpush1.msra.mxu0 %v346
        %1006 = vmatprep.subr.mxu0 %v351
        %1007 = vmatpush1.msra.mxu0 %v350
        %1008 = vmatprep.subr.mxu0 %v355
        %1009 = vmatpush1.msra.mxu0 %v354
        %1010 = vmatprep.subr.mxu0 %v359
        %1011 = vmatpush1.msra.mxu0 %v358
        %1012 = vmatprep.subr.mxu0 %v363
        %1013 = vmatpush1.msra.mxu0 %v362
        %1014 = vmatprep.subr.mxu0 %v367
        %1015 = vmatpush1.msra.mxu0 %v366
        %1016 = vmatprep.subr.mxu0 %v371
        %1017 = vmatpush1.msra.mxu0 %v370
        %1018 = vmatprep.subr.mxu0 %v375
        %1019 = vmatpush1.msra.mxu0 %v374
        %1020 = vmatprep.subr.mxu0 %v379
        %1021 = vmatpush1.msra.mxu0 %v378
        %1022 = vmatprep.subr.mxu0 %v383
        %1023 = vmatpush1.msra.mxu0 %v382
        %1024 = vmatprep.subr.mxu0 %v387
        %1025 = vmatpush1.msra.mxu0 %v386
        %1026 = vmatprep.subr.mxu0 %v391
        %1027 = vmatpush1.msra.mxu0 %v390
        %1028 = vmatprep.subr.mxu0 %v395
        %1029 = vmatpush1.msra.mxu0 %v394
        %1030 = vmatprep.subr.mxu0 0.0
        %1031 = vmatpush1.msra.mxu0 0.0
        %1032 = vmatprep.subr.mxu0 0.0
        %1033 = vmatpush1.msra.mxu0 0.0
        %1034 = vmatprep.subr.mxu0 0.0
        %1035 = vmatpush1.msra.mxu0 0.0
        %1036 = vmatprep.subr.mxu0 0.0
        %1037 = vmatpush1.msra.mxu0 0.0
        %1038 = vmatprep.subr.mxu0 0.0
        %1039 = vmatpush1.msra.mxu0 0.0
        %1040 = vmatprep.subr.mxu0 0.0
        %1041 = vmatpush1.msra.mxu0 0.0
        %1042 = vmatprep.subr.mxu0 0.0
        %1043 = vmatpush1.msra.mxu0 0.0
        %1044 = vmatprep.subr.mxu0 0.0
        %1045 = vmatpush1.msra.mxu0 0.0
        %1046 = vmatprep.subr.mxu0 0.0
        %1047 = vmatpush1.msra.mxu0 0.0
        %1048 = vmatprep.subr.mxu0 0.0
        %1049 = vmatpush1.msra.mxu0 0.0
        %1050 = vmatprep.subr.mxu0 0.0
        %1051 = vmatpush1.msra.mxu0 0.0
        %1052 = vmatprep.subr.mxu0 0.0
        %1053 = vmatpush1.msra.mxu0 0.0
        %1054 = vmatprep.subr.mxu0 0.0
        %1055 = vmatpush1.msra.mxu0 0.0
        %1056 = vmatprep.subr.mxu0 0.0
        %1057 = vmatpush1.msra.mxu0 0.0
        %1058 = vmatprep.subr.mxu0 0.0
        %1059 = vmatpush1.msra.mxu0 0.0
        %1060 = vmatprep.subr.mxu0 0.0
        %1061 = vmatpush1.msra.mxu0 0.0
        %1062 = vmatprep.mubr.f32.mxu0 0.0
        %1063 = vmatmul.mubr.f32.gmra.mrb[0].mxu0 %v919
        %v1064 = vpop.f32.mrb[0].mxu0
        %v1065 = vadd.f32 0.0, %v1064
        %v1066 = vpop.f32.mrb[0].mxu0
        %v1067 = vadd.f32 0.0, %v1066
        %1068 = vdwg.mxu0
        %v1069 = vadd.f32 %v923, %v994
        %v1070 = vadd.f32 %v924, %v996
        %v1071 = vadd.f32 %v925, %v1065
        %v1072 = vadd.f32 %v926, %v1067
        %v1073 = vxor.u32 %v1069, 2147483648
        %v1074 = vmul.f32 %v1073, 1.442695
        %v1075 = vpow.pop %v1074
        %v1076 = vadd.f32 %v1075, 1.0
        %v1077 = vrcp.pop %v1076
        %v1078 = vmul.f32 1.0, %v1077
        %v1079 = vxor.u32 %v1070, 2147483648
        %v1080 = vmul.f32 %v1079, 1.442695
        %v1081 = vpow.pop %v1080
        %v1082 = vadd.f32 %v1081, 1.0
        %v1083 = vrcp.pop %v1082
        %v1084 = vmul.f32 1.0, %v1083
        %v1085 = vtanh.pop %v1071
        %v1086 = vxor.u32 %v1072, 2147483648
        %v1087 = vmul.f32 %v1086, 1.442695
        %v1088 = vpow.pop %v1087
        %v1089 = vadd.f32 %v1088, 1.0
        %v1090 = vrcp.pop %v1089
        %v1091 = vmul.f32 1.0, %v1090
        %v1092 = vmul.f32 %v1084, %v917
        %v1093 = vmul.f32 %v1078, %v1085
        %v1094 = vadd.f32 %v1092, %v1093
        %v1095 = vtanh.pop %v1094
        %v1096 = vmul.f32 %v1091, %v1095
        %s1097 = scalar_lea.vmem %s290, 64 [#allocation4]
        %v1098 = vld [vmem:[%s1097] sm:$0xff]
        %v1099 = vld [vmem:[%s1097 + $0x8] sm:$0xff]
        %v1100 = vunpack.c.l.bf16 %v1098
        %v1101 = vunpack.c.h.bf16 %v1098
        %v1102 = vunpack.c.l.bf16 %v1099
        %v1103 = vunpack.c.h.bf16 %v1099
        %1104 = vmatprep.subr.mxu0 %v333
        %1105 = vmatpush1.msra.mxu0 %v332
        %1106 = vmatprep.subr.mxu0 %v337
        %1107 = vmatpush1.msra.mxu0 %v336
        %1108 = vmatprep.subr.mxu0 %v341
        %1109 = vmatpush1.msra.mxu0 %v340
        %1110 = vmatprep.subr.mxu0 %v345
        %1111 = vmatpush1.msra.mxu0 %v344
        %1112 = vmatprep.subr.mxu0 %v349
        %1113 = vmatpush1.msra.mxu0 %v348
        %1114 = vmatprep.subr.mxu0 %v353
        %1115 = vmatpush1.msra.mxu0 %v352
        %1116 = vmatprep.subr.mxu0 %v357
        %1117 = vmatpush1.msra.mxu0 %v356
        %1118 = vmatprep.subr.mxu0 %v361
        %1119 = vmatpush1.msra.mxu0 %v360
        %1120 = vmatprep.subr.mxu0 %v365
        %1121 = vmatpush1.msra.mxu0 %v364
        %1122 = vmatprep.subr.mxu0 %v369
        %1123 = vmatpush1.msra.mxu0 %v368
        %1124 = vmatprep.subr.mxu0 %v373
        %1125 = vmatpush1.msra.mxu0 %v372
        %1126 = vmatprep.subr.mxu0 %v377
        %1127 = vmatpush1.msra.mxu0 %v376
        %1128 = vmatprep.subr.mxu0 %v381
        %1129 = vmatpush1.msra.mxu0 %v380
        %1130 = vmatprep.subr.mxu0 %v385
        %1131 = vmatpush1.msra.mxu0 %v384
        %1132 = vmatprep.subr.mxu0 %v389
        %1133 = vmatpush1.msra.mxu0 %v388
        %1134 = vmatprep.subr.mxu0 %v393
        %1135 = vmatpush1.msra.mxu0 %v392
        %1136 = vmatprep.subr.mxu0 0.0
        %1137 = vmatpush1.msra.mxu0 0.0
        %1138 = vmatprep.subr.mxu0 0.0
        %1139 = vmatpush1.msra.mxu0 0.0
        %1140 = vmatprep.subr.mxu0 0.0
        %1141 = vmatpush1.msra.mxu0 0.0
        %1142 = vmatprep.subr.mxu0 0.0
        %1143 = vmatpush1.msra.mxu0 0.0
        %1144 = vmatprep.subr.mxu0 0.0
        %1145 = vmatpush1.msra.mxu0 0.0
        %1146 = vmatprep.subr.mxu0 0.0
        %1147 = vmatpush1.msra.mxu0 0.0
        %1148 = vmatprep.subr.mxu0 0.0
        %1149 = vmatpush1.msra.mxu0 0.0
        %1150 = vmatprep.subr.mxu0 0.0
        %1151 = vmatpush1.msra.mxu0 0.0
        %1152 = vmatprep.subr.mxu0 0.0
        %1153 = vmatpush1.msra.mxu0 0.0
        %1154 = vmatprep.subr.mxu0 0.0
        %1155 = vmatpush1.msra.mxu0 0.0
        %1156 = vmatprep.subr.mxu0 0.0
        %1157 = vmatpush1.msra.mxu0 0.0
        %1158 = vmatprep.subr.mxu0 0.0
        %1159 = vmatpush1.msra.mxu0 0.0
        %1160 = vmatprep.subr.mxu0 0.0
        %1161 = vmatpush1.msra.mxu0 0.0
        %1162 = vmatprep.subr.mxu0 0.0
        %1163 = vmatpush1.msra.mxu0 0.0
        %1164 = vmatprep.subr.mxu0 0.0
        %1165 = vmatpush1.msra.mxu0 0.0
        %1166 = vmatprep.subr.mxu0 0.0
        %1167 = vmatpush1.msra.mxu0 0.0
        %1168 = vmatprep.mubr.f32.mxu0 0.0
        %1169 = vmatmul.mubr.f32.gmra.mrb[0].mxu0 %v1096
        %v1170 = vpop.f32.mrb[0].mxu0
        %v1171 = vadd.f32 0.0, %v1170
        %v1172 = vpop.f32.mrb[0].mxu0
        %v1173 = vadd.f32 0.0, %v1172
        %1174 = vdwg.mxu0
        %1175 = vmatprep.subr.mxu0 %v335
        %1176 = vmatpush1.msra.mxu0 %v334
        %1177 = vmatprep.subr.mxu0 %v339
        %1178 = vmatpush1.msra.mxu0 %v338
        %1179 = vmatprep.subr.mxu0 %v343
        %1180 = vmatpush1.msra.mxu0 %v342
        %1181 = vmatprep.subr.mxu0 %v347
        %1182 = vmatpush1.msra.mxu0 %v346
        %1183 = vmatprep.subr.mxu0 %v351
        %1184 = vmatpush1.msra.mxu0 %v350
        %1185 = vmatprep.subr.mxu0 %v355
        %1186 = vmatpush1.msra.mxu0 %v354
        %1187 = vmatprep.subr.mxu0 %v359
        %1188 = vmatpush1.msra.mxu0 %v358
        %1189 = vmatprep.subr.mxu0 %v363
        %1190 = vmatpush1.msra.mxu0 %v362
        %1191 = vmatprep.subr.mxu0 %v367
        %1192 = vmatpush1.msra.mxu0 %v366
        %1193 = vmatprep.subr.mxu0 %v371
        %1194 = vmatpush1.msra.mxu0 %v370
        %1195 = vmatprep.subr.mxu0 %v375
        %1196 = vmatpush1.msra.mxu0 %v374
        %1197 = vmatprep.subr.mxu0 %v379
        %1198 = vmatpush1.msra.mxu0 %v378
        %1199 = vmatprep.subr.mxu0 %v383
        %1200 = vmatpush1.msra.mxu0 %v382
        %1201 = vmatprep.subr.mxu0 %v387
        %1202 = vmatpush1.msra.mxu0 %v386
        %1203 = vmatprep.subr.mxu0 %v391
        %1204 = vmatpush1.msra.mxu0 %v390
        %1205 = vmatprep.subr.mxu0 %v395
        %1206 = vmatpush1.msra.mxu0 %v394
        %1207 = vmatprep.subr.mxu0 0.0
        %1208 = vmatpush1.msra.mxu0 0.0
        %1209 = vmatprep.subr.mxu0 0.0
        %1210 = vmatpush1.msra.mxu0 0.0
        %1211 = vmatprep.subr.mxu0 0.0
        %1212 = vmatpush1.msra.mxu0 0.0
        %1213 = vmatprep.subr.mxu0 0.0
        %1214 = vmatpush1.msra.mxu0 0.0
        %1215 = vmatprep.subr.mxu0 0.0
        %1216 = vmatpush1.msra.mxu0 0.0
        %1217 = vmatprep.subr.mxu0 0.0
        %1218 = vmatpush1.msra.mxu0 0.0
        %1219 = vmatprep.subr.mxu0 0.0
        %1220 = vmatpush1.msra.mxu0 0.0
        %1221 = vmatprep.subr.mxu0 0.0
        %1222 = vmatpush1.msra.mxu0 0.0
        %1223 = vmatprep.subr.mxu0 0.0
        %1224 = vmatpush1.msra.mxu0 0.0
        %1225 = vmatprep.subr.mxu0 0.0
        %1226 = vmatpush1.msra.mxu0 0.0
        %1227 = vmatprep.subr.mxu0 0.0
        %1228 = vmatpush1.msra.mxu0 0.0
        %1229 = vmatprep.subr.mxu0 0.0
        %1230 = vmatpush1.msra.mxu0 0.0
        %1231 = vmatprep.subr.mxu0 0.0
        %1232 = vmatpush1.msra.mxu0 0.0
        %1233 = vmatprep.subr.mxu0 0.0
        %1234 = vmatpush1.msra.mxu0 0.0
        %1235 = vmatprep.subr.mxu0 0.0
        %1236 = vmatpush1.msra.mxu0 0.0
        %1237 = vmatprep.subr.mxu0 0.0
        %1238 = vmatpush1.msra.mxu0 0.0
        %1239 = vmatprep.mubr.f32.mxu0 0.0
        %1240 = vmatmul.mubr.f32.gmra.mrb[0].mxu0 %v1096
        %v1241 = vpop.f32.mrb[0].mxu0
        %v1242 = vadd.f32 0.0, %v1241
        %v1243 = vpop.f32.mrb[0].mxu0
        %v1244 = vadd.f32 0.0, %v1243
        %1245 = vdwg.mxu0
        %v1246 = vadd.f32 %v1100, %v1171
        %v1247 = vadd.f32 %v1101, %v1173
        %v1248 = vadd.f32 %v1102, %v1242
        %v1249 = vadd.f32 %v1103, %v1244
        %v1250 = vxor.u32 %v1246, 2147483648
        %v1251 = vmul.f32 %v1250, 1.442695
        %v1252 = vpow.pop %v1251
        %v1253 = vadd.f32 %v1252, 1.0
        %v1254 = vrcp.pop %v1253
        %v1255 = vmul.f32 1.0, %v1254
        %v1256 = vxor.u32 %v1247, 2147483648
        %v1257 = vmul.f32 %v1256, 1.442695
        %v1258 = vpow.pop %v1257
        %v1259 = vadd.f32 %v1258, 1.0
        %v1260 = vrcp.pop %v1259
        %v1261 = vmul.f32 1.0, %v1260
        %v1262 = vtanh.pop %v1248
        %v1263 = vxor.u32 %v1249, 2147483648
        %v1264 = vmul.f32 %v1263, 1.442695
        %v1265 = vpow.pop %v1264
        %v1266 = vadd.f32 %v1265, 1.0
        %v1267 = vrcp.pop %v1266
        %v1268 = vmul.f32 1.0, %v1267
        %v1269 = vmul.f32 %v1261, %v1094
        %v1270 = vmul.f32 %v1255, %v1262
        %v1271 = vadd.f32 %v1269, %v1270
        %v1272 = vtanh.pop %v1271
        %v1273 = vmul.f32 %v1268, %v1272
        %s1274 = scalar_lea.vmem %s290, 80 [#allocation4]
        %v1275 = vld [vmem:[%s1274] sm:$0xff]
        %v1276 = vld [vmem:[%s1274 + $0x8] sm:$0xff]
        %v1277 = vunpack.c.l.bf16 %v1275
        %v1278 = vunpack.c.h.bf16 %v1275
        %v1279 = vunpack.c.l.bf16 %v1276
        %v1280 = vunpack.c.h.bf16 %v1276
        %1281 = vmatprep.subr.mxu0 %v333
        %1282 = vmatpush1.msra.mxu0 %v332
        %1283 = vmatprep.subr.mxu0 %v337
        %1284 = vmatpush1.msra.mxu0 %v336
        %1285 = vmatprep.subr.mxu0 %v341
        %1286 = vmatpush1.msra.mxu0 %v340
        %1287 = vmatprep.subr.mxu0 %v345
        %1288 = vmatpush1.msra.mxu0 %v344
        %1289 = vmatprep.subr.mxu0 %v349
        %1290 = vmatpush1.msra.mxu0 %v348
        %1291 = vmatprep.subr.mxu0 %v353
        %1292 = vmatpush1.msra.mxu0 %v352
        %1293 = vmatprep.subr.mxu0 %v357
        %1294 = vmatpush1.msra.mxu0 %v356
        %1295 = vmatprep.subr.mxu0 %v361
        %1296 = vmatpush1.msra.mxu0 %v360
        %1297 = vmatprep.subr.mxu0 %v365
        %1298 = vmatpush1.msra.mxu0 %v364
        %1299 = vmatprep.subr.mxu0 %v369
        %1300 = vmatpush1.msra.mxu0 %v368
        %1301 = vmatprep.subr.mxu0 %v373
        %1302 = vmatpush1.msra.mxu0 %v372
        %1303 = vmatprep.subr.mxu0 %v377
        %1304 = vmatpush1.msra.mxu0 %v376
        %1305 = vmatprep.subr.mxu0 %v381
        %1306 = vmatpush1.msra.mxu0 %v380
        %1307 = vmatprep.subr.mxu0 %v385
        %1308 = vmatpush1.msra.mxu0 %v384
        %1309 = vmatprep.subr.mxu0 %v389
        %1310 = vmatpush1.msra.mxu0 %v388
        %1311 = vmatprep.subr.mxu0 %v393
        %1312 = vmatpush1.msra.mxu0 %v392
        %1313 = vmatprep.subr.mxu0 0.0
        %1314 = vmatpush1.msra.mxu0 0.0
        %1315 = vmatprep.subr.mxu0 0.0
        %1316 = vmatpush1.msra.mxu0 0.0
        %1317 = vmatprep.subr.mxu0 0.0
        %1318 = vmatpush1.msra.mxu0 0.0
        %1319 = vmatprep.subr.mxu0 0.0
        %1320 = vmatpush1.msra.mxu0 0.0
        %1321 = vmatprep.subr.mxu0 0.0
        %1322 = vmatpush1.msra.mxu0 0.0
        %1323 = vmatprep.subr.mxu0 0.0
        %1324 = vmatpush1.msra.mxu0 0.0
        %1325 = vmatprep.subr.mxu0 0.0
        %1326 = vmatpush1.msra.mxu0 0.0
        %1327 = vmatprep.subr.mxu0 0.0
        %1328 = vmatpush1.msra.mxu0 0.0
        %1329 = vmatprep.subr.mxu0 0.0
        %1330 = vmatpush1.msra.mxu0 0.0
        %1331 = vmatprep.subr.mxu0 0.0
        %1332 = vmatpush1.msra.mxu0 0.0
        %1333 = vmatprep.subr.mxu0 0.0
        %1334 = vmatpush1.msra.mxu0 0.0
        %1335 = vmatprep.subr.mxu0 0.0
        %1336 = vmatpush1.msra.mxu0 0.0
        %1337 = vmatprep.subr.mxu0 0.0
        %1338 = vmatpush1.msra.mxu0 0.0
        %1339 = vmatprep.subr.mxu0 0.0
        %1340 = vmatpush1.msra.mxu0 0.0
        %1341 = vmatprep.subr.mxu0 0.0
        %1342 = vmatpush1.msra.mxu0 0.0
        %1343 = vmatprep.subr.mxu0 0.0
        %1344 = vmatpush1.msra.mxu0 0.0
        %1345 = vmatprep.mubr.f32.mxu0 0.0
        %1346 = vmatmul.mubr.f32.gmra.mrb[0].mxu0 %v1273
        %v1347 = vpop.f32.mrb[0].mxu0
        %v1348 = vadd.f32 0.0, %v1347
        %v1349 = vpop.f32.mrb[0].mxu0
        %v1350 = vadd.f32 0.0, %v1349
        %1351 = vdwg.mxu0
        %1352 = vmatprep.subr.mxu0 %v335
        %1353 = vmatpush1.msra.mxu0 %v334
        %1354 = vmatprep.subr.mxu0 %v339
        %1355 = vmatpush1.msra.mxu0 %v338
        %1356 = vmatprep.subr.mxu0 %v343
        %1357 = vmatpush1.msra.mxu0 %v342
        %1358 = vmatprep.subr.mxu0 %v347
        %1359 = vmatpush1.msra.mxu0 %v346
        %1360 = vmatprep.subr.mxu0 %v351
        %1361 = vmatpush1.msra.mxu0 %v350
        %1362 = vmatprep.subr.mxu0 %v355
        %1363 = vmatpush1.msra.mxu0 %v354
        %1364 = vmatprep.subr.mxu0 %v359
        %1365 = vmatpush1.msra.mxu0 %v358
        %1366 = vmatprep.subr.mxu0 %v363
        %1367 = vmatpush1.msra.mxu0 %v362
        %1368 = vmatprep.subr.mxu0 %v367
        %1369 = vmatpush1.msra.mxu0 %v366
        %1370 = vmatprep.subr.mxu0 %v371
        %1371 = vmatpush1.msra.mxu0 %v370
        %1372 = vmatprep.subr.mxu0 %v375
        %1373 = vmatpush1.msra.mxu0 %v374
        %1374 = vmatprep.subr.mxu0 %v379
        %1375 = vmatpush1.msra.mxu0 %v378
        %1376 = vmatprep.subr.mxu0 %v383
        %1377 = vmatpush1.msra.mxu0 %v382
        %1378 = vmatprep.subr.mxu0 %v387
        %1379 = vmatpush1.msra.mxu0 %v386
        %1380 = vmatprep.subr.mxu0 %v391
        %1381 = vmatpush1.msra.mxu0 %v390
        %1382 = vmatprep.subr.mxu0 %v395
        %1383 = vmatpush1.msra.mxu0 %v394
        %1384 = vmatprep.subr.mxu0 0.0
        %1385 = vmatpush1.msra.mxu0 0.0
        %1386 = vmatprep.subr.mxu0 0.0
        %1387 = vmatpush1.msra.mxu0 0.0
        %1388 = vmatprep.subr.mxu0 0.0
        %1389 = vmatpush1.msra.mxu0 0.0
        %1390 = vmatprep.subr.mxu0 0.0
        %1391 = vmatpush1.msra.mxu0 0.0
        %1392 = vmatprep.subr.mxu0 0.0
        %1393 = vmatpush1.msra.mxu0 0.0
        %1394 = vmatprep.subr.mxu0 0.0
        %1395 = vmatpush1.msra.mxu0 0.0
        %1396 = vmatprep.subr.mxu0 0.0
        %1397 = vmatpush1.msra.mxu0 0.0
        %1398 = vmatprep.subr.mxu0 0.0
        %1399 = vmatpush1.msra.mxu0 0.0
        %1400 = vmatprep.subr.mxu0 0.0
        %1401 = vmatpush1.msra.mxu0 0.0
        %1402 = vmatprep.subr.mxu0 0.0
        %1403 = vmatpush1.msra.mxu0 0.0
        %1404 = vmatprep.subr.mxu0 0.0
        %1405 = vmatpush1.msra.mxu0 0.0
        %1406 = vmatprep.subr.mxu0 0.0
        %1407 = vmatpush1.msra.mxu0 0.0
        %1408 = vmatprep.subr.mxu0 0.0
        %1409 = vmatpush1.msra.mxu0 0.0
        %1410 = vmatprep.subr.mxu0 0.0
        %1411 = vmatpush1.msra.mxu0 0.0
        %1412 = vmatprep.subr.mxu0 0.0
        %1413 = vmatpush1.msra.mxu0 0.0
        %1414 = vmatprep.subr.mxu0 0.0
        %1415 = vmatpush1.msra.mxu0 0.0
        %1416 = vmatprep.mubr.f32.mxu0 0.0
        %1417 = vmatmul.mubr.f32.gmra.mrb[0].mxu0 %v1273
        %v1418 = vpop.f32.mrb[0].mxu0
        %v1419 = vadd.f32 0.0, %v1418
        %v1420 = vpop.f32.mrb[0].mxu0
        %v1421 = vadd.f32 0.0, %v1420
        %1422 = vdwg.mxu0
        %v1423 = vadd.f32 %v1277, %v1348
        %v1424 = vadd.f32 %v1278, %v1350
        %v1425 = vadd.f32 %v1279, %v1419
        %v1426 = vadd.f32 %v1280, %v1421
        %v1427 = vxor.u32 %v1423, 2147483648
        %v1428 = vmul.f32 %v1427, 1.442695
        %v1429 = vpow.pop %v1428
        %v1430 = vadd.f32 %v1429, 1.0
        %v1431 = vrcp.pop %v1430
        %v1432 = vmul.f32 1.0, %v1431
        %v1433 = vxor.u32 %v1424, 2147483648
        %v1434 = vmul.f32 %v1433, 1.442695
        %v1435 = vpow.pop %v1434
        %v1436 = vadd.f32 %v1435, 1.0
        %v1437 = vrcp.pop %v1436
        %v1438 = vmul.f32 1.0, %v1437
        %v1439 = vtanh.pop %v1425
        %v1440 = vxor.u32 %v1426, 2147483648
        %v1441 = vmul.f32 %v1440, 1.442695
        %v1442 = vpow.pop %v1441
        %v1443 = vadd.f32 %v1442, 1.0
        %v1444 = vrcp.pop %v1443
        %v1445 = vmul.f32 1.0, %v1444
        %v1446 = vmul.f32 %v1438, %v1271
        %v1447 = vmul.f32 %v1432, %v1439
        %v1448 = vadd.f32 %v1446, %v1447
        %v1449 = vtanh.pop %v1448
        %v1450 = vmul.f32 %v1445, %v1449
        %s1451 = scalar_lea.vmem %s290, 96 [#allocation4]
        %v1452 = vld [vmem:[%s1451] sm:$0xff]
        %v1453 = vld [vmem:[%s1451 + $0x8] sm:$0xff]
        %v1454 = vunpack.c.l.bf16 %v1452
        %v1455 = vunpack.c.h.bf16 %v1452
        %v1456 = vunpack.c.l.bf16 %v1453
        %v1457 = vunpack.c.h.bf16 %v1453
        %1458 = vmatprep.subr.mxu0 %v333
        %1459 = vmatpush1.msra.mxu0 %v332
        %1460 = vmatprep.subr.mxu0 %v337
        %1461 = vmatpush1.msra.mxu0 %v336
        %1462 = vmatprep.subr.mxu0 %v341
        %1463 = vmatpush1.msra.mxu0 %v340
        %1464 = vmatprep.subr.mxu0 %v345
        %1465 = vmatpush1.msra.mxu0 %v344
        %1466 = vmatprep.subr.mxu0 %v349
        %1467 = vmatpush1.msra.mxu0 %v348
        %1468 = vmatprep.subr.mxu0 %v353
        %1469 = vmatpush1.msra.mxu0 %v352
        %1470 = vmatprep.subr.mxu0 %v357
        %1471 = vmatpush1.msra.mxu0 %v356
        %1472 = vmatprep.subr.mxu0 %v361
        %1473 = vmatpush1.msra.mxu0 %v360
        %1474 = vmatprep.subr.mxu0 %v365
        %1475 = vmatpush1.msra.mxu0 %v364
        %1476 = vmatprep.subr.mxu0 %v369
        %1477 = vmatpush1.msra.mxu0 %v368
        %1478 = vmatprep.subr.mxu0 %v373
        %1479 = vmatpush1.msra.mxu0 %v372
        %1480 = vmatprep.subr.mxu0 %v377
        %1481 = vmatpush1.msra.mxu0 %v376
        %1482 = vmatprep.subr.mxu0 %v381
        %1483 = vmatpush1.msra.mxu0 %v380
        %1484 = vmatprep.subr.mxu0 %v385
        %1485 = vmatpush1.msra.mxu0 %v384
        %1486 = vmatprep.subr.mxu0 %v389
        %1487 = vmatpush1.msra.mxu0 %v388
        %1488 = vmatprep.subr.mxu0 %v393
        %1489 = vmatpush1.msra.mxu0 %v392
        %1490 = vmatprep.subr.mxu0 0.0
        %1491 = vmatpush1.msra.mxu0 0.0
        %1492 = vmatprep.subr.mxu0 0.0
        %1493 = vmatpush1.msra.mxu0 0.0
        %1494 = vmatprep.subr.mxu0 0.0
        %1495 = vmatpush1.msra.mxu0 0.0
        %1496 = vmatprep.subr.mxu0 0.0
        %1497 = vmatpush1.msra.mxu0 0.0
        %1498 = vmatprep.subr.mxu0 0.0
        %1499 = vmatpush1.msra.mxu0 0.0
        %1500 = vmatprep.subr.mxu0 0.0
        %1501 = vmatpush1.msra.mxu0 0.0
        %1502 = vmatprep.subr.mxu0 0.0
        %1503 = vmatpush1.msra.mxu0 0.0
        %1504 = vmatprep.subr.mxu0 0.0
        %1505 = vmatpush1.msra.mxu0 0.0
        %1506 = vmatprep.subr.mxu0 0.0
        %1507 = vmatpush1.msra.mxu0 0.0
        %1508 = vmatprep.subr.mxu0 0.0
        %1509 = vmatpush1.msra.mxu0 0.0
        %1510 = vmatprep.subr.mxu0 0.0
        %1511 = vmatpush1.msra.mxu0 0.0
        %1512 = vmatprep.subr.mxu0 0.0
        %1513 = vmatpush1.msra.mxu0 0.0
        %1514 = vmatprep.subr.mxu0 0.0
        %1515 = vmatpush1.msra.mxu0 0.0
        %1516 = vmatprep.subr.mxu0 0.0
        %1517 = vmatpush1.msra.mxu0 0.0
        %1518 = vmatprep.subr.mxu0 0.0
        %1519 = vmatpush1.msra.mxu0 0.0
        %1520 = vmatprep.subr.mxu0 0.0
        %1521 = vmatpush1.msra.mxu0 0.0
        %1522 = vmatprep.mubr.f32.mxu0 0.0
        %1523 = vmatmul.mubr.f32.gmra.mrb[0].mxu0 %v1450
        %v1524 = vpop.f32.mrb[0].mxu0
        %v1525 = vadd.f32 0.0, %v1524
        %v1526 = vpop.f32.mrb[0].mxu0
        %v1527 = vadd.f32 0.0, %v1526
        %1528 = vdwg.mxu0
        %1529 = vmatprep.subr.mxu0 %v335
        %1530 = vmatpush1.msra.mxu0 %v334
        %1531 = vmatprep.subr.mxu0 %v339
        %1532 = vmatpush1.msra.mxu0 %v338
        %1533 = vmatprep.subr.mxu0 %v343
        %1534 = vmatpush1.msra.mxu0 %v342
        %1535 = vmatprep.subr.mxu0 %v347
        %1536 = vmatpush1.msra.mxu0 %v346
        %1537 = vmatprep.subr.mxu0 %v351
        %1538 = vmatpush1.msra.mxu0 %v350
        %1539 = vmatprep.subr.mxu0 %v355
        %1540 = vmatpush1.msra.mxu0 %v354
        %1541 = vmatprep.subr.mxu0 %v359
        %1542 = vmatpush1.msra.mxu0 %v358
        %1543 = vmatprep.subr.mxu0 %v363
        %1544 = vmatpush1.msra.mxu0 %v362
        %1545 = vmatprep.subr.mxu0 %v367
        %1546 = vmatpush1.msra.mxu0 %v366
        %1547 = vmatprep.subr.mxu0 %v371
        %1548 = vmatpush1.msra.mxu0 %v370
        %1549 = vmatprep.subr.mxu0 %v375
        %1550 = vmatpush1.msra.mxu0 %v374
        %1551 = vmatprep.subr.mxu0 %v379
        %1552 = vmatpush1.msra.mxu0 %v378
        %1553 = vmatprep.subr.mxu0 %v383
        %1554 = vmatpush1.msra.mxu0 %v382
        %1555 = vmatprep.subr.mxu0 %v387
        %1556 = vmatpush1.msra.mxu0 %v386
        %1557 = vmatprep.subr.mxu0 %v391
        %1558 = vmatpush1.msra.mxu0 %v390
        %1559 = vmatprep.subr.mxu0 %v395
        %1560 = vmatpush1.msra.mxu0 %v394
        %1561 = vmatprep.subr.mxu0 0.0
        %1562 = vmatpush1.msra.mxu0 0.0
        %1563 = vmatprep.subr.mxu0 0.0
        %1564 = vmatpush1.msra.mxu0 0.0
        %1565 = vmatprep.subr.mxu0 0.0
        %1566 = vmatpush1.msra.mxu0 0.0
        %1567 = vmatprep.subr.mxu0 0.0
        %1568 = vmatpush1.msra.mxu0 0.0
        %1569 = vmatprep.subr.mxu0 0.0
        %1570 = vmatpush1.msra.mxu0 0.0
        %1571 = vmatprep.subr.mxu0 0.0
        %1572 = vmatpush1.msra.mxu0 0.0
        %1573 = vmatprep.subr.mxu0 0.0
        %1574 = vmatpush1.msra.mxu0 0.0
        %1575 = vmatprep.subr.mxu0 0.0
        %1576 = vmatpush1.msra.mxu0 0.0
        %1577 = vmatprep.subr.mxu0 0.0
        %1578 = vmatpush1.msra.mxu0 0.0
        %1579 = vmatprep.subr.mxu0 0.0
        %1580 = vmatpush1.msra.mxu0 0.0
        %1581 = vmatprep.subr.mxu0 0.0
        %1582 = vmatpush1.msra.mxu0 0.0
        %1583 = vmatprep.subr.mxu0 0.0
        %1584 = vmatpush1.msra.mxu0 0.0
        %1585 = vmatprep.subr.mxu0 0.0
        %1586 = vmatpush1.msra.mxu0 0.0
        %1587 = vmatprep.subr.mxu0 0.0
        %1588 = vmatpush1.msra.mxu0 0.0
        %1589 = vmatprep.subr.mxu0 0.0
        %1590 = vmatpush1.msra.mxu0 0.0
        %1591 = vmatprep.subr.mxu0 0.0
        %1592 = vmatpush1.msra.mxu0 0.0
        %1593 = vmatprep.mubr.f32.mxu0 0.0
        %1594 = vmatmul.mubr.f32.gmra.mrb[0].mxu0 %v1450
        %v1595 = vpop.f32.mrb[0].mxu0
        %v1596 = vadd.f32 0.0, %v1595
        %v1597 = vpop.f32.mrb[0].mxu0
        %v1598 = vadd.f32 0.0, %v1597
        %1599 = vdwg.mxu0
        %v1600 = vadd.f32 %v1454, %v1525
        %v1601 = vadd.f32 %v1455, %v1527
        %v1602 = vadd.f32 %v1456, %v1596
        %v1603 = vadd.f32 %v1457, %v1598
        %v1604 = vxor.u32 %v1600, 2147483648
        %v1605 = vmul.f32 %v1604, 1.442695
        %v1606 = vpow.pop %v1605
        %v1607 = vadd.f32 %v1606, 1.0
        %v1608 = vrcp.pop %v1607
        %v1609 = vmul.f32 1.0, %v1608
        %v1610 = vxor.u32 %v1601, 2147483648
        %v1611 = vmul.f32 %v1610, 1.442695
        %v1612 = vpow.pop %v1611
        %v1613 = vadd.f32 %v1612, 1.0
        %v1614 = vrcp.pop %v1613
        %v1615 = vmul.f32 1.0, %v1614
        %v1616 = vtanh.pop %v1602
        %v1617 = vxor.u32 %v1603, 2147483648
        %v1618 = vmul.f32 %v1617, 1.442695
        %v1619 = vpow.pop %v1618
        %v1620 = vadd.f32 %v1619, 1.0
        %v1621 = vrcp.pop %v1620
        %v1622 = vmul.f32 1.0, %v1621
        %v1623 = vmul.f32 %v1615, %v1448
        %v1624 = vmul.f32 %v1609, %v1616
        %v1625 = vadd.f32 %v1623, %v1624
        %v1626 = vtanh.pop %v1625
        %v1627 = vmul.f32 %v1622, %v1626
        %s1628 = scalar_lea.vmem %s290, 112 [#allocation4]
        %v1629 = vld [vmem:[%s1628] sm:$0xff]
        %v1630 = vld [vmem:[%s1628 + $0x8] sm:$0xff]
        %v1631 = vunpack.c.l.bf16 %v1629
        %v1632 = vunpack.c.h.bf16 %v1629
        %v1633 = vunpack.c.l.bf16 %v1630
        %v1634 = vunpack.c.h.bf16 %v1630
        %1635 = vmatprep.subr.mxu0 %v333
        %1636 = vmatpush1.msra.mxu0 %v332
        %1637 = vmatprep.subr.mxu0 %v337
        %1638 = vmatpush1.msra.mxu0 %v336
        %1639 = vmatprep.subr.mxu0 %v341
        %1640 = vmatpush1.msra.mxu0 %v340
        %1641 = vmatprep.subr.mxu0 %v345
        %1642 = vmatpush1.msra.mxu0 %v344
        %1643 = vmatprep.subr.mxu0 %v349
        %1644 = vmatpush1.msra.mxu0 %v348
        %1645 = vmatprep.subr.mxu0 %v353
        %1646 = vmatpush1.msra.mxu0 %v352
        %1647 = vmatprep.subr.mxu0 %v357
        %1648 = vmatpush1.msra.mxu0 %v356
        %1649 = vmatprep.subr.mxu0 %v361
        %1650 = vmatpush1.msra.mxu0 %v360
        %1651 = vmatprep.subr.mxu0 %v365
        %1652 = vmatpush1.msra.mxu0 %v364
        %1653 = vmatprep.subr.mxu0 %v369
        %1654 = vmatpush1.msra.mxu0 %v368
        %1655 = vmatprep.subr.mxu0 %v373
        %1656 = vmatpush1.msra.mxu0 %v372
        %1657 = vmatprep.subr.mxu0 %v377
        %1658 = vmatpush1.msra.mxu0 %v376
        %1659 = vmatprep.subr.mxu0 %v381
        %1660 = vmatpush1.msra.mxu0 %v380
        %1661 = vmatprep.subr.mxu0 %v385
        %1662 = vmatpush1.msra.mxu0 %v384
        %1663 = vmatprep.subr.mxu0 %v389
        %1664 = vmatpush1.msra.mxu0 %v388
        %1665 = vmatprep.subr.mxu0 %v393
        %1666 = vmatpush1.msra.mxu0 %v392
        %1667 = vmatprep.subr.mxu0 0.0
        %1668 = vmatpush1.msra.mxu0 0.0
        %1669 = vmatprep.subr.mxu0 0.0
        %1670 = vmatpush1.msra.mxu0 0.0
        %1671 = vmatprep.subr.mxu0 0.0
        %1672 = vmatpush1.msra.mxu0 0.0
        %1673 = vmatprep.subr.mxu0 0.0
        %1674 = vmatpush1.msra.mxu0 0.0
        %1675 = vmatprep.subr.mxu0 0.0
        %1676 = vmatpush1.msra.mxu0 0.0
        %1677 = vmatprep.subr.mxu0 0.0
        %1678 = vmatpush1.msra.mxu0 0.0
        %1679 = vmatprep.subr.mxu0 0.0
        %1680 = vmatpush1.msra.mxu0 0.0
        %1681 = vmatprep.subr.mxu0 0.0
        %1682 = vmatpush1.msra.mxu0 0.0
        %1683 = vmatprep.subr.mxu0 0.0
        %1684 = vmatpush1.msra.mxu0 0.0
        %1685 = vmatprep.subr.mxu0 0.0
        %1686 = vmatpush1.msra.mxu0 0.0
        %1687 = vmatprep.subr.mxu0 0.0
        %1688 = vmatpush1.msra.mxu0 0.0
        %1689 = vmatprep.subr.mxu0 0.0
        %1690 = vmatpush1.msra.mxu0 0.0
        %1691 = vmatprep.subr.mxu0 0.0
        %1692 = vmatpush1.msra.mxu0 0.0
        %1693 = vmatprep.subr.mxu0 0.0
        %1694 = vmatpush1.msra.mxu0 0.0
        %1695 = vmatprep.subr.mxu0 0.0
        %1696 = vmatpush1.msra.mxu0 0.0
        %1697 = vmatprep.subr.mxu0 0.0
        %1698 = vmatpush1.msra.mxu0 0.0
        %1699 = vmatprep.mubr.f32.mxu0 0.0
        %1700 = vmatmul.mubr.f32.gmra.mrb[0].mxu0 %v1627
        %v1701 = vpop.f32.mrb[0].mxu0
        %v1702 = vadd.f32 0.0, %v1701
        %v1703 = vpop.f32.mrb[0].mxu0
        %v1704 = vadd.f32 0.0, %v1703
        %1705 = vdwg.mxu0
        %1706 = vmatprep.subr.mxu0 %v335
        %1707 = vmatpush1.msra.mxu0 %v334
        %1708 = vmatprep.subr.mxu0 %v339
        %1709 = vmatpush1.msra.mxu0 %v338
        %1710 = vmatprep.subr.mxu0 %v343
        %1711 = vmatpush1.msra.mxu0 %v342
        %1712 = vmatprep.subr.mxu0 %v347
        %1713 = vmatpush1.msra.mxu0 %v346
        %1714 = vmatprep.subr.mxu0 %v351
        %1715 = vmatpush1.msra.mxu0 %v350
        %1716 = vmatprep.subr.mxu0 %v355
        %1717 = vmatpush1.msra.mxu0 %v354
        %1718 = vmatprep.subr.mxu0 %v359
        %1719 = vmatpush1.msra.mxu0 %v358
        %1720 = vmatprep.subr.mxu0 %v363
        %1721 = vmatpush1.msra.mxu0 %v362
        %1722 = vmatprep.subr.mxu0 %v367
        %1723 = vmatpush1.msra.mxu0 %v366
        %1724 = vmatprep.subr.mxu0 %v371
        %1725 = vmatpush1.msra.mxu0 %v370
        %1726 = vmatprep.subr.mxu0 %v375
        %1727 = vmatpush1.msra.mxu0 %v374
        %1728 = vmatprep.subr.mxu0 %v379
        %1729 = vmatpush1.msra.mxu0 %v378
        %1730 = vmatprep.subr.mxu0 %v383
        %1731 = vmatpush1.msra.mxu0 %v382
        %1732 = vmatprep.subr.mxu0 %v387
        %1733 = vmatpush1.msra.mxu0 %v386
        %1734 = vmatprep.subr.mxu0 %v391
        %1735 = vmatpush1.msra.mxu0 %v390
        %1736 = vmatprep.subr.mxu0 %v395
        %1737 = vmatpush1.msra.mxu0 %v394
        %1738 = vmatprep.subr.mxu0 0.0
        %1739 = vmatpush1.msra.mxu0 0.0
        %1740 = vmatprep.subr.mxu0 0.0
        %1741 = vmatpush1.msra.mxu0 0.0
        %1742 = vmatprep.subr.mxu0 0.0
        %1743 = vmatpush1.msra.mxu0 0.0
        %1744 = vmatprep.subr.mxu0 0.0
        %1745 = vmatpush1.msra.mxu0 0.0
        %1746 = vmatprep.subr.mxu0 0.0
        %1747 = vmatpush1.msra.mxu0 0.0
        %1748 = vmatprep.subr.mxu0 0.0
        %1749 = vmatpush1.msra.mxu0 0.0
        %1750 = vmatprep.subr.mxu0 0.0
        %1751 = vmatpush1.msra.mxu0 0.0
        %1752 = vmatprep.subr.mxu0 0.0
        %1753 = vmatpush1.msra.mxu0 0.0
        %1754 = vmatprep.subr.mxu0 0.0
        %1755 = vmatpush1.msra.mxu0 0.0
        %1756 = vmatprep.subr.mxu0 0.0
        %1757 = vmatpush1.msra.mxu0 0.0
        %1758 = vmatprep.subr.mxu0 0.0
        %1759 = vmatpush1.msra.mxu0 0.0
        %1760 = vmatprep.subr.mxu0 0.0
        %1761 = vmatpush1.msra.mxu0 0.0
        %1762 = vmatprep.subr.mxu0 0.0
        %1763 = vmatpush1.msra.mxu0 0.0
        %1764 = vmatprep.subr.mxu0 0.0
        %1765 = vmatpush1.msra.mxu0 0.0
        %1766 = vmatprep.subr.mxu0 0.0
        %1767 = vmatpush1.msra.mxu0 0.0
        %1768 = vmatprep.subr.mxu0 0.0
        %1769 = vmatpush1.msra.mxu0 0.0
        %1770 = vmatprep.mubr.f32.mxu0 0.0
        %1771 = vmatmul.mubr.f32.gmra.mrb[0].mxu0 %v1627
        %v1772 = vpop.f32.mrb[0].mxu0
        %v1773 = vadd.f32 0.0, %v1772
        %v1774 = vpop.f32.mrb[0].mxu0
        %v1775 = vadd.f32 0.0, %v1774
        %1776 = vdwg.mxu0
        %v1777 = vadd.f32 %v1631, %v1702
        %v1778 = vadd.f32 %v1632, %v1704
        %v1779 = vadd.f32 %v1633, %v1773
        %v1780 = vadd.f32 %v1634, %v1775
        %v1781 = vxor.u32 %v1777, 2147483648
        %v1782 = vmul.f32 %v1781, 1.442695
        %v1783 = vpow.pop %v1782
        %v1784 = vadd.f32 %v1783, 1.0
        %v1785 = vrcp.pop %v1784
        %v1786 = vmul.f32 1.0, %v1785
        %v1787 = vxor.u32 %v1778, 2147483648
        %v1788 = vmul.f32 %v1787, 1.442695
        %v1789 = vpow.pop %v1788
        %v1790 = vadd.f32 %v1789, 1.0
        %v1791 = vrcp.pop %v1790
        %v1792 = vmul.f32 1.0, %v1791
        %v1793 = vtanh.pop %v1779
        %v1794 = vxor.u32 %v1780, 2147483648
        %v1795 = vmul.f32 %v1794, 1.442695
        %v1796 = vpow.pop %v1795
        %v1797 = vadd.f32 %v1796, 1.0
        %v1798 = vrcp.pop %v1797
        %v1799 = vmul.f32 1.0, %v1798
        %v1800 = vmul.f32 %v1792, %v1625
        %v1801 = vmul.f32 %v1786, %v1793
        %v1802 = vadd.f32 %v1800, %v1801
        %v1803 = vtanh.pop %v1802
        %v1804 = vmul.f32 %v1799, %v1803
        %1805 = vst [vmem:[#allocation2] sm:$0xff] %v1804
        %1806 = vst [vmem:[#allocation3] sm:$0xff] %v1802
        %p1807 = scmp.eq.s32.totalorder %s25, 1
        // Predicated region
        $region72: #{cnn_rnn_forward.3} parent=62 // pred_check
          %p1808 = pneg %p1807
        $region73: #{cnn_rnn_forward.3} parent=62 // pred_check_branch
          %1810 = sbr.rel (%p1808) target = $region75
        $region74: #{cnn_rnn_forward.3} parent=62 // pred_region
          %v1811 = vld [vmem:[%s2] sm:$0xff]
          %v1812 = vld [vmem:[%s2 + $0x8] sm:$0xff]
          %v1813 = vld [vmem:[%s2 + $0x10] sm:$0xff]
          %v1814 = vld [vmem:[%s2 + $0x18] sm:$0xff]
          %v1815 = vld [vmem:[%s2 + $0x20] sm:$0xff]
          %v1816 = vld [vmem:[%s2 + $0x28] sm:$0xff]
          %v1817 = vld [vmem:[%s2 + $0x30] sm:$0xff]
          %v1818 = vld [vmem:[%s2 + $0x38] sm:$0xff]
          %v1819 = vld [vmem:[%s2 + $0x40] sm:$0xff]
          %v1820 = vld [vmem:[%s2 + $0x48] sm:$0xff]
          %v1821 = vld [vmem:[%s2 + $0x50] sm:$0xff]
          %v1822 = vld [vmem:[%s2 + $0x58] sm:$0xff]
          %v1823 = vld [vmem:[%s2 + $0x60] sm:$0xff]
          %v1824 = vld [vmem:[%s2 + $0x68] sm:$0xff]
          %v1825 = vld [vmem:[%s2 + $0x70] sm:$0xff]
          %v1826 = vld [vmem:[%s2 + $0x78] sm:$0xff]
          %v1827 = vld [vmem:[%s3] sm:$0x1]
          %v1829 = vlaneseq
          %v1830 = vshrl.u32 %v1829, 7
          %v1831 = vsub.s32 0, %v1830
          %v1832 = vrot.slane %v1827, %v1831
          %1834 = vmatprep.subr.mxu0 0.0
          %1835 = vmatpush1.msra.mxu0 %v1811
          %1836 = vmatprep.subr.mxu0 0.0
          %1837 = vmatpush1.msra.mxu0 %v1812
          %1838 = vmatprep.subr.mxu0 0.0
          %1839 = vmatpush1.msra.mxu0 %v1813
          %1840 = vmatprep.subr.mxu0 0.0
          %1841 = vmatpush1.msra.mxu0 %v1814
          %1842 = vmatprep.subr.mxu0 0.0
          %1843 = vmatpush1.msra.mxu0 %v1815
          %1844 = vmatprep.subr.mxu0 0.0
          %1845 = vmatpush1.msra.mxu0 %v1816
          %1846 = vmatprep.subr.mxu0 0.0
          %1847 = vmatpush1.msra.mxu0 %v1817
          %1848 = vmatprep.subr.mxu0 0.0
          %1849 = vmatpush1.msra.mxu0 %v1818
          %1850 = vmatprep.subr.mxu0 0.0
          %1851 = vmatpush1.msra.mxu0 %v1819
          %1852 = vmatprep.subr.mxu0 0.0
          %1853 = vmatpush1.msra.mxu0 %v1820
          %1854 = vmatprep.subr.mxu0 0.0
          %1855 = vmatpush1.msra.mxu0 %v1821
          %1856 = vmatprep.subr.mxu0 0.0
          %1857 = vmatpush1.msra.mxu0 %v1822
          %1858 = vmatprep.subr.mxu0 0.0
          %1859 = vmatpush1.msra.mxu0 %v1823
          %1860 = vmatprep.subr.mxu0 0.0
          %1861 = vmatpush1.msra.mxu0 %v1824
          %1862 = vmatprep.subr.mxu0 0.0
          %1863 = vmatpush1.msra.mxu0 %v1825
          %1864 = vmatprep.subr.mxu0 0.0
          %1865 = vmatpush1.msra.mxu0 %v1826
          %1866 = vmatprep.subr.mxu0 0.0
          %1867 = vmatpush1.msra.mxu0 0.0
          %1868 = vmatprep.subr.mxu0 0.0
          %1869 = vmatpush1.msra.mxu0 0.0
          %1870 = vmatprep.subr.mxu0 0.0
          %1871 = vmatpush1.msra.mxu0 0.0
          %1872 = vmatprep.subr.mxu0 0.0
          %1873 = vmatpush1.msra.mxu0 0.0
          %1874 = vmatprep.subr.mxu0 0.0
          %1875 = vmatpush1.msra.mxu0 0.0
          %1876 = vmatprep.subr.mxu0 0.0
          %1877 = vmatpush1.msra.mxu0 0.0
          %1878 = vmatprep.subr.mxu0 0.0
          %1879 = vmatpush1.msra.mxu0 0.0
          %1880 = vmatprep.subr.mxu0 0.0
          %1881 = vmatpush1.msra.mxu0 0.0
          %1882 = vmatprep.subr.mxu0 0.0
          %1883 = vmatpush1.msra.mxu0 0.0
          %1884 = vmatprep.subr.mxu0 0.0
          %1885 = vmatpush1.msra.mxu0 0.0
          %1886 = vmatprep.subr.mxu0 0.0
          %1887 = vmatpush1.msra.mxu0 0.0
          %1888 = vmatprep.subr.mxu0 0.0
          %1889 = vmatpush1.msra.mxu0 0.0
          %1890 = vmatprep.subr.mxu0 0.0
          %1891 = vmatpush1.msra.mxu0 0.0
          %1892 = vmatprep.subr.mxu0 0.0
          %1893 = vmatpush1.msra.mxu0 0.0
          %1894 = vmatprep.subr.mxu0 0.0
          %1895 = vmatpush1.msra.mxu0 0.0
          %1896 = vmatprep.subr.mxu0 0.0
          %1897 = vmatpush1.msra.mxu0 0.0
          %1898 = vmatprep.mubr.f32.mxu0 0.0
          %1899 = vmatmul.mubr.f32.gmra.mrb[0].mxu0 %v1804
          %v1900 = vpop.f32.mrb[0].mxu0
          %v1901 = vadd.f32 %v1832, %v1900
          %v1902 = vpop.f32.mrb[0].mxu0
          %1903 = vdwg.mxu0
          %v1904 = vmax.f32 %v1901, 0.0
          %v1905 = vld [vmem:[%s4] sm:$0xff]
          %v1906 = vld [vmem:[%s4 + $0x8] sm:$0xff]
          %v1907 = vld [vmem:[%s4 + $0x10] sm:$0xff]
          %v1908 = vld [vmem:[%s4 + $0x18] sm:$0xff]
          %v1909 = vld [vmem:[%s4 + $0x20] sm:$0xff]
          %v1910 = vld [vmem:[%s4 + $0x28] sm:$0xff]
          %v1911 = vld [vmem:[%s4 + $0x30] sm:$0xff]
          %v1912 = vld [vmem:[%s4 + $0x38] sm:$0xff]
          %v1913 = vld [vmem:[%s4 + $0x40] sm:$0xff]
          %v1914 = vld [vmem:[%s4 + $0x48] sm:$0xff]
          %v1915 = vld [vmem:[%s4 + $0x50] sm:$0xff]
          %v1916 = vld [vmem:[%s4 + $0x58] sm:$0xff]
          %v1917 = vld [vmem:[%s4 + $0x60] sm:$0xff]
          %v1918 = vld [vmem:[%s4 + $0x68] sm:$0xff]
          %v1919 = vld [vmem:[%s4 + $0x70] sm:$0xff]
          %v1920 = vld [vmem:[%s4 + $0x78] sm:$0xff]
          %v1921 = vld [vmem:[%s5] sm:$0x1]
          %v1923 = vlaneseq
          %v1924 = vshrl.u32 %v1923, 7
          %v1925 = vsub.s32 0, %v1924
          %v1926 = vrot.slane %v1921, %v1925
          %1928 = vmatprep.subr.mxu0 0.0
          %1929 = vmatpush1.msra.mxu0 %v1905
          %1930 = vmatprep.subr.mxu0 0.0
          %1931 = vmatpush1.msra.mxu0 %v1906
          %1932 = vmatprep.subr.mxu0 0.0
          %1933 = vmatpush1.msra.mxu0 %v1907
          %1934 = vmatprep.subr.mxu0 0.0
          %1935 = vmatpush1.msra.mxu0 %v1908
          %1936 = vmatprep.subr.mxu0 0.0
          %1937 = vmatpush1.msra.mxu0 %v1909
          %1938 = vmatprep.subr.mxu0 0.0
          %1939 = vmatpush1.msra.mxu0 %v1910
          %1940 = vmatprep.subr.mxu0 0.0
          %1941 = vmatpush1.msra.mxu0 %v1911
          %1942 = vmatprep.subr.mxu0 0.0
          %1943 = vmatpush1.msra.mxu0 %v1912
          %1944 = vmatprep.subr.mxu0 0.0
          %1945 = vmatpush1.msra.mxu0 %v1913
          %1946 = vmatprep.subr.mxu0 0.0
          %1947 = vmatpush1.msra.mxu0 %v1914
          %1948 = vmatprep.subr.mxu0 0.0
          %1949 = vmatpush1.msra.mxu0 %v1915
          %1950 = vmatprep.subr.mxu0 0.0
          %1951 = vmatpush1.msra.mxu0 %v1916
          %1952 = vmatprep.subr.mxu0 0.0
          %1953 = vmatpush1.msra.mxu0 %v1917
          %1954 = vmatprep.subr.mxu0 0.0
          %1955 = vmatpush1.msra.mxu0 %v1918
          %1956 = vmatprep.subr.mxu0 0.0
          %1957 = vmatpush1.msra.mxu0 %v1919
          %1958 = vmatprep.subr.mxu0 0.0
          %1959 = vmatpush1.msra.mxu0 %v1920
          %1960 = vmatprep.subr.mxu0 0.0
          %1961 = vmatpush1.msra.mxu0 0.0
          %1962 = vmatprep.subr.mxu0 0.0
          %1963 = vmatpush1.msra.mxu0 0.0
          %1964 = vmatprep.subr.mxu0 0.0
          %1965 = vmatpush1.msra.mxu0 0.0
          %1966 = vmatprep.subr.mxu0 0.0
          %1967 = vmatpush1.msra.mxu0 0.0
          %1968 = vmatprep.subr.mxu0 0.0
          %1969 = vmatpush1.msra.mxu0 0.0
          %1970 = vmatprep.subr.mxu0 0.0
          %1971 = vmatpush1.msra.mxu0 0.0
          %1972 = vmatprep.subr.mxu0 0.0
          %1973 = vmatpush1.msra.mxu0 0.0
          %1974 = vmatprep.subr.mxu0 0.0
          %1975 = vmatpush1.msra.mxu0 0.0
          %1976 = vmatprep.subr.mxu0 0.0
          %1977 = vmatpush1.msra.mxu0 0.0
          %1978 = vmatprep.subr.mxu0 0.0
          %1979 = vmatpush1.msra.mxu0 0.0
          %1980 = vmatprep.subr.mxu0 0.0
          %1981 = vmatpush1.msra.mxu0 0.0
          %1982 = vmatprep.subr.mxu0 0.0
          %1983 = vmatpush1.msra.mxu0 0.0
          %1984 = vmatprep.subr.mxu0 0.0
          %1985 = vmatpush1.msra.mxu0 0.0
          %1986 = vmatprep.subr.mxu0 0.0
          %1987 = vmatpush1.msra.mxu0 0.0
          %1988 = vmatprep.subr.mxu0 0.0
          %1989 = vmatpush1.msra.mxu0 0.0
          %1990 = vmatprep.subr.mxu0 0.0
          %1991 = vmatpush1.msra.mxu0 0.0
          %1992 = vmatprep.mubr.f32.mxu0 0.0
          %1993 = vmatmul.mubr.f32.gmra.mrb[0].mxu0 %v1904
          %v1994 = vpop.f32.mrb[0].mxu0
          %v1995 = vadd.f32 %v1926, %v1994
          %v1996 = vpop.f32.mrb[0].mxu0
          %1997 = vdwg.mxu0
          %1998 = vst [vmem:[%s316] sm:$0xff] %v1995
        $region75: #{cnn_rnn_forward.3} parent=62 // pred_fallthru
          _
        %s1999 = sand.u32 %s173, 1
        %s2000 = scalar_lea.sflag [#allocation6], %s1999
        %s2001 = sand.u32 %s173, 1
        %s2002 = smul.addr %s2001, 8
        %s2003 = scalar_lea.vmem [#allocation5], %s2002
        // Predicated region
        $region76: #{cnn_rnn_forward.3} parent=62 // pred_check
          %p2004 = pneg %p183
        $region77: #{cnn_rnn_forward.3} parent=62 // pred_check_branch
          %2006 = sbr.rel (%p2004) target = $region79
        $region78: #{cnn_rnn_forward.3} parent=62 // pred_region
          %s2008 = ssub.s32 128, 128
          %2009 = vsyncadd %s2000, %s2008
          %s2010 = smul.addr %s24, 128
          %s2011 = scalar_lea.hbm %s6, %s2010
          %s2013 = sshll.u32 %s2003, 4
          %s2014 = int_to_ptr.vmem [resolvable:$true] %s2013
          %2016 = dma.vmem_to_hbm [thread:$0]  %s2014, 128, %s2011, %s2000
        $region79: #{cnn_rnn_forward.3} parent=62 // pred_fallthru
          _
      $region63: #{cnn_rnn_forward.3} parent=5 // pred_fallthru
        _
      %p2017 = scmp.le.s32.totalorder 2, %s15
      // Predicated region
      $region80: #{cnn_rnn_forward.3} parent=5 // pred_check
        %p2018 = pneg %p2017
      $region81: #{cnn_rnn_forward.3} parent=5 // pred_check_branch
        %2020 = sbr.rel (%p2018) target = $region83
      $region82: #{cnn_rnn_forward.3} parent=5 // pred_region
        %s2021 = ssub.s32 %s15, 2
        // Predicated region
        $region84: #{cnn_rnn_forward.3} parent=82 // pred_check
          %p2022 = pneg %p189
        $region85: #{cnn_rnn_forward.3} parent=82 // pred_check_branch
          %2024 = sbr.rel (%p2022) target = $region87
        $region86: #{cnn_rnn_forward.3} parent=82 // pred_region
          %s2025 = sand.u32 %s174, 1
          %s2026 = scalar_lea.sflag [#allocation6], %s2025
          %s2027 = sand.u32 %s174, 1
          %s2028 = smul.addr %s2027, 8
          %s2029 = scalar_lea.vmem [#allocation5], %s2028
          %2030 = dma.done %s2026, 128
        $region87: #{cnn_rnn_forward.3} parent=82 // pred_fallthru
          _
      $region83: #{cnn_rnn_forward.3} parent=5 // pred_fallthru
        _
    $region6: #{cnn_rnn_forward.3} parent=1 // loop_footer
      %s19 = sadd.s32 1, %s15
    $region7: #{cnn_rnn_forward.3} parent=1 // loop_footer_branch
      %14 = sbr.rel target = $region3
    $region8: #{cnn_rnn_forward.3} parent=1 // loop_exit
      _
    %2031 = vsyncpa [#allocation6], 1
    %s2032 = scalar_lea.sflag [#allocation6], 1
    %2033 = vsyncpa %s2032, 1

</llo_original>
